<compile_context>
chip_gen: v6e
topology: v6e:2x2x1
jax: 0.10.0
libtpu: 0.0.40
codegen_flags: <defaults>
</compile_context>

<pallas_src>
import functools
import math

import jax
import jax.numpy as jnp
from jax import lax
from jax.experimental import pallas as pl
from jax.experimental.pallas import tpu as pltpu


# ------------------------------ fused kernel -------------------------------

def _fused_pretrain_kernel(x_ref, pos_ref, mask_ref,
                           wqkv_ref, bqkv_ref, wo_ref, bo_ref,
                           g1_ref, be1_ref, w1_ref, b1_ref,
                           w2_ref, b2_ref, g2_ref, be2_ref,
                           wout_ref, bout_ref,
                           o_ref, act_ref,
                           *, B, S, H, Dh, emb_scale, att_scale):
    D = H * Dh
    layer = pl.program_id(0)
    n_layers = pl.num_programs(0)

    # --- first grid step: fused token-embedding scale + positional add ------
    @pl.when(layer == 0)
    def _init():
        for b in range(B):
            act_ref[b * S:(b + 1) * S, :] = (
                x_ref[b * S:(b + 1) * S, :] * emb_scale + pos_ref[...])
        # TODO(synk): nn.Dropout after positional encoding omitted
        # (inference-mode identity, no RNG dropout).

    x = act_ref[...]                                            # [B*S, D] f32

    # --- fused QKV projection on flattened rows (single MXU matmul) ---------
    qkv = (jnp.dot(x, wqkv_ref[0], preferred_element_type=jnp.float32)
           + bqkv_ref[0])                                       # [B*S, 3D]
    wo = wo_ref[0]                                              # [D, D]

    # --- multi-head self-attention; batch & heads statically unrolled -------
    attn_parts = []
    for b in range(B):
        rows = qkv[b * S:(b + 1) * S, :]                        # [S, 3D]
        m = mask_ref[b]                                         # [S, S] additive
        acc = jnp.zeros((S, D), jnp.float32)
        for h in range(H):
            q = rows[:, h * Dh:(h + 1) * Dh]                    # [S, Dh]
            k = rows[:, D + h * Dh:D + (h + 1) * Dh]            # [S, Dh]
            v = rows[:, 2 * D + h * Dh:2 * D + (h + 1) * Dh]    # [S, Dh]
            # q @ k^T without materializing a transpose (contract last dims).
            s = lax.dot_general(q, k, (((1,), (1,)), ((), ())),
                                preferred_element_type=jnp.float32)
            s = s * att_scale + m
            s = s - jnp.max(s, axis=-1, keepdims=True)
            p = jnp.exp(s)
            p = p * pl.reciprocal(jnp.sum(p, axis=-1, keepdims=True),
                                  approx=True)
            pv = jnp.dot(p, v, preferred_element_type=jnp.float32)
            # Fold the out-projection into the head loop:
            # concat(heads) @ Wo == sum_h head_h @ Wo[h*Dh:(h+1)*Dh, :]
            acc = acc + jnp.dot(pv, wo[h * Dh:(h + 1) * Dh, :],
                                preferred_element_type=jnp.float32)
        attn_parts.append(acc)
    attn = jnp.concatenate(attn_parts, axis=0) + bo_ref[0]      # [B*S, D]

    # --- residual + LayerNorm1 (eps=1e-5) ------------------------------------
    y = x + attn
    mean = jnp.mean(y, axis=-1, keepdims=True)
    var = jnp.mean(jnp.square(y - mean), axis=-1, keepdims=True)
    y = (y - mean) * lax.rsqrt(var + 1e-5) * g1_ref[0] + be1_ref[0]

    # --- feed-forward (w1 -> ReLU -> w2) + residual + LayerNorm2 -------------
    ff = jnp.maximum(
        jnp.dot(y, w1_ref[0], preferred_element_type=jnp.float32) + b1_ref[0],
        0.0)
    ff = jnp.dot(ff, w2_ref[0], preferred_element_type=jnp.float32) + b2_ref[0]
    z = y + ff
    mean = jnp.mean(z, axis=-1, keepdims=True)
    var = jnp.mean(jnp.square(z - mean), axis=-1, keepdims=True)
    z = (z - mean) * lax.rsqrt(var + 1e-5) * g2_ref[0] + be2_ref[0]

    act_ref[...] = z                                            # stays in VMEM

    # --- last grid step: fused vocab head (128-lane-padded output) ----------
    @pl.when(layer == n_layers - 1)
    def _head():
        a = act_ref[...]                                        # [B*S, D]
        logits = (jnp.dot(a, wout_ref[...],
                          preferred_element_type=jnp.float32) + bout_ref[...])
        o_ref[...] = logits.reshape(B, S, logits.shape[-1]).astype(o_ref.dtype)


def pallas_pretrain_forward(emb_flat, pos2d, mask_add, stacked,
                            w_out, b_out, *, nhead):
    BS, D = emb_flat.shape
    S = pos2d.shape[0]
    B = BS // S
    L = stacked["wqkv"].shape[0]
    F = stacked["w1"].shape[2]
    Vp = w_out.shape[1]
    H = nhead
    Dh = D // H

    kernel = functools.partial(
        _fused_pretrain_kernel, B=B, S=S, H=H, Dh=Dh,
        emb_scale=math.sqrt(D), att_scale=1.0 / math.sqrt(Dh))

    lay = lambda l: (l, 0, 0)          # per-layer stacked weights
    const3 = lambda l: (0, 0, 0)       # resident across all layers
    const2 = lambda l: (0, 0)

    grid_spec = pltpu.PrefetchScalarGridSpec(
        num_scalar_prefetch=0,
        grid=(L,),
        in_specs=[
            pl.BlockSpec((B * S, D), const2),     # token embeddings (flattened)
            pl.BlockSpec((S, D), const2),         # positional encoding
            pl.BlockSpec((B, S, S), const3),      # additive attention mask
            pl.BlockSpec((1, D, 3 * D), lay),     # in_proj weight
            pl.BlockSpec((1, 1, 3 * D), lay),     # in_proj bias
            pl.BlockSpec((1, D, D), lay),         # out_proj weight
            pl.BlockSpec((1, 1, D), lay),         # out_proj bias
            pl.BlockSpec((1, 1, D), lay),         # ln1 gamma
            pl.BlockSpec((1, 1, D), lay),         # ln1 beta
            pl.BlockSpec((1, D, F), lay),         # ffn w1
            pl.BlockSpec((1, 1, F), lay),         # ffn b1
            pl.BlockSpec((1, F, D), lay),         # ffn w2
            pl.BlockSpec((1, 1, D), lay),         # ffn b2
            pl.BlockSpec((1, 1, D), lay),         # ln2 gamma
            pl.BlockSpec((1, 1, D), lay),         # ln2 beta
            pl.BlockSpec((D, Vp), const2),        # vocab head weight (padded)
            pl.BlockSpec((1, Vp), const2),        # vocab head bias (padded)
        ],
        out_specs=pl.BlockSpec((B, S, Vp), const3),
        scratch_shapes=[pltpu.VMEM((B * S, D), jnp.float32)],  # resident activation
    )
    # NOTE: at realistic model sizes on v7x (64 MiB VMEM), set
    # vmem_limit_bytes explicitly and K-tile the FFN weights.
    return pl.pallas_call(
        kernel,
        out_shape=jax.ShapeDtypeStruct((B, S, Vp), jnp.float32),
        grid_spec=grid_spec,
        compiler_params=pltpu.CompilerParams(
            dimension_semantics=("arbitrary",)),
    )(emb_flat, pos2d, mask_add,
      stacked["wqkv"], stacked["bqkv"], stacked["wo"], stacked["bo"],
      stacked["ln1_g"], stacked["ln1_b"], stacked["w1"], stacked["b1"],
      stacked["w2"], stacked["b2"], stacked["ln2_g"], stacked["ln2_b"],
      w_out, b_out)


# ------------------------------ model forward ------------------------------

@functools.partial(jax.jit, static_argnums=(4,))
def pretrain_model_forward(params, source, source_mask, source_padding_mask, nhead):
    S, B = source.shape
    V, D = params["embedding"].shape

    # TokenEmbedding gather (tiny; left to XLA), flattened batch-major [B*S, D].
    emb_flat = jnp.take(params["embedding"], source.T.reshape(-1), axis=0)
    pos2d = params["pos_enc"][:S, 0, :]                               # [S, D]

    # Per-batch additive mask: float attn_mask [S,S] + key-padding row [B,S].
    pad_add = jnp.where(source_padding_mask, -1e9, 0.0).astype(jnp.float32)
    mask_add = source_mask.astype(jnp.float32)[None, :, :] + pad_add[:, None, :]

    out = pallas_pretrain_forward(emb_flat, pos2d, mask_add,
                                  params["stacked"], params["w_out"],
                                  params["b_out"], nhead=nhead)          # [B,S,Vp]
    # Strip vocab padding, return PyTorch layout [S, B, V] (tiny XLA copy).
    return out[:, :, :V].transpose(1, 0, 2)


# ------------------------------ params / setup ------------------------------

def build_positional_encoding(max_len, d_model):
    pos = jnp.arange(max_len, dtype=jnp.float32).reshape(max_len, 1)
    div = jnp.power(10000.0,
                    (jnp.arange(d_model) // 2 * 2).astype(jnp.float32) / d_model)
    pe = pos / div
    pe = pe.at[:, 0::2].set(jnp.sin(pe[:, 0::2]))
    pe = pe.at[:, 1::2].set(jnp.cos(pe[:, 1::2]))
    return pe.reshape(max_len, 1, d_model)    # matches unsqueeze(1)


def init_params(key, d_model, dim_feedforward, max_seq, nhead, num_layers, vocab):
    def nrm(k, shape, std=0.02):
        return std * jax.random.normal(k, shape, dtype=jnp.float32)

    vocab_padded = ((vocab + 127) // 128) * 128   # lane-dense head output
    keys = jax.random.split(key, 2 + num_layers)

    w_head = jnp.zeros((d_model, vocab_padded), jnp.float32)
    w_head = w_head.at[:, :vocab].set(nrm(keys[1], (d_model, vocab)))

    layers = []
    for li in range(num_layers):
        lk = jax.random.split(keys[2 + li], 4)
        layers.append({
            # weights stored pre-transposed to [in, out] so the kernel does x @ w + b
            "wqkv": nrm(lk[0], (d_model, 3 * d_model)),
            "bqkv": jnp.zeros((1, 3 * d_model), jnp.float32),
            "wo": nrm(lk[1], (d_model, d_model)),
            "bo": jnp.zeros((1, d_model), jnp.float32),
            "ln1_g": jnp.ones((1, d_model), jnp.float32),
            "ln1_b": jnp.zeros((1, d_model), jnp.float32),
            "w1": nrm(lk[2], (d_model, dim_feedforward)),
            "b1": jnp.zeros((1, dim_feedforward), jnp.float32),
            "w2": nrm(lk[3], (dim_feedforward, d_model)),
            "b2": jnp.zeros((1, d_model), jnp.float32),
            "ln2_g": jnp.ones((1, d_model), jnp.float32),
            "ln2_b": jnp.zeros((1, d_model), jnp.float32),
        })
    stacked = {k: jnp.stack([lyr[k] for lyr in layers], axis=0)
               for k in layers[0]}            # each entry: [L, ...]

    return {
        "embedding": nrm(keys[0], (vocab, d_model), std=1.0),
        "pos_enc": build_positional_encoding(max_seq, d_model),
        "w_out": w_head,
        "b_out": jnp.zeros((1, vocab_padded), jnp.float32),
        "stacked": stacked,
    }


if __name__ == "__main__":
    d_model, dim_feedforward, dropout = 32, 64, 0.1
    max_sequence_length, nhead, num_layers, vocabulary_size = 16, 4, 2, 50
    S, B = 8, 2

    root = jax.random.PRNGKey(0)
    k_params, k_src = jax.random.split(root)
    params = init_params(k_params, d_model, dim_feedforward,
                         max_sequence_length, nhead, num_layers, vocabulary_size)

    source = jax.random.randint(k_src, (S, B), 0, vocabulary_size, dtype=jnp.int32)
    source_mask = jnp.zeros((S, S), jnp.float32)                      # additive attn mask
    source_padding_mask = jnp.zeros((B, S), dtype=bool).at[1, S - 1].set(True)

    logits = pretrain_model_forward(params, source, source_mask,
                                    source_padding_mask, nhead)
    jax.block_until_ready(logits)
    assert logits.shape == (S, B, vocabulary_size)
    assert bool(jnp.all(jnp.isfinite(logits)))
    print("KERNEL_OK")
</pallas_src>

<mosaic_0001>
module attributes {stable_mosaic.version = 11 : i64} {
  func.func @_fused_pretrain_kernel(%arg0: i32, %arg1: memref<16x32xf32, #tpu.memory_space<vmem>>, %arg2: memref<8x32xf32, #tpu.memory_space<vmem>>, %arg3: memref<2x8x8xf32, #tpu.memory_space<vmem>>, %arg4: memref<1x32x96xf32, #tpu.memory_space<vmem>>, %arg5: memref<1x1x96xf32, #tpu.memory_space<vmem>>, %arg6: memref<1x32x32xf32, #tpu.memory_space<vmem>>, %arg7: memref<1x1x32xf32, #tpu.memory_space<vmem>>, %arg8: memref<1x1x32xf32, #tpu.memory_space<vmem>>, %arg9: memref<1x1x32xf32, #tpu.memory_space<vmem>>, %arg10: memref<1x32x64xf32, #tpu.memory_space<vmem>>, %arg11: memref<1x1x64xf32, #tpu.memory_space<vmem>>, %arg12: memref<1x64x32xf32, #tpu.memory_space<vmem>>, %arg13: memref<1x1x32xf32, #tpu.memory_space<vmem>>, %arg14: memref<1x1x32xf32, #tpu.memory_space<vmem>>, %arg15: memref<1x1x32xf32, #tpu.memory_space<vmem>>, %arg16: memref<32x128xf32, #tpu.memory_space<vmem>>, %arg17: memref<1x128xf32, #tpu.memory_space<vmem>>, %arg18: memref<2x8x128xf32, #tpu.memory_space<vmem>>, %arg19: memref<16x32xf32, #tpu.memory_space<vmem>>) attributes {dimension_semantics = [#tpu.dimension_semantics<arbitrary>], iteration_bounds = array<i64: 2>, scalar_prefetch = 0 : i64, scratch_operands = 1 : i64, tpu.core_type = #tpu.core_type<tc>, window_params = [{pipeline_mode = #tpu.pipeline_mode<synchronous>, transform_indices = @transform_0, window_bounds = array<i64: 16, 32>}, {pipeline_mode = #tpu.pipeline_mode<synchronous>, transform_indices = @transform_1, window_bounds = array<i64: 8, 32>}, {pipeline_mode = #tpu.pipeline_mode<synchronous>, transform_indices = @transform_2, window_bounds = array<i64: 2, 8, 8>}, {transform_indices = @transform_3, window_bounds = array<i64: 1, 32, 96>}, {transform_indices = @transform_4, window_bounds = array<i64: 1, 1, 96>}, {transform_indices = @transform_5, window_bounds = array<i64: 1, 32, 32>}, {transform_indices = @transform_6, window_bounds = array<i64: 1, 1, 32>}, {transform_indices = @transform_7, window_bounds = array<i64: 1, 1, 32>}, {transform_indices = @transform_8, window_bounds = array<i64: 1, 1, 32>}, {transform_indices = @transform_9, window_bounds = array<i64: 1, 32, 64>}, {transform_indices = @transform_10, window_bounds = array<i64: 1, 1, 64>}, {transform_indices = @transform_11, window_bounds = array<i64: 1, 64, 32>}, {transform_indices = @transform_12, window_bounds = array<i64: 1, 1, 32>}, {transform_indices = @transform_13, window_bounds = array<i64: 1, 1, 32>}, {transform_indices = @transform_14, window_bounds = array<i64: 1, 1, 32>}, {pipeline_mode = #tpu.pipeline_mode<synchronous>, transform_indices = @transform_15, window_bounds = array<i64: 32, 128>}, {pipeline_mode = #tpu.pipeline_mode<synchronous>, transform_indices = @transform_16, window_bounds = array<i64: 1, 128>}, {pipeline_mode = #tpu.pipeline_mode<synchronous>, transform_indices = @transform_17, window_bounds = array<i64: 2, 8, 128>}]} {
    %c0_i32 = arith.constant 0 : i32
    %0 = arith.cmpi eq, %arg0, %c0_i32 : i32
    %1 = arith.extui %0 : i1 to i32
    %c0_i32_0 = arith.constant 0 : i32
    %2 = arith.cmpi ne, %1, %c0_i32_0 : i32
    scf.if %2 {
      %c0_109 = arith.constant 0 : index
      %c0_110 = arith.constant 0 : index
      %268 = vector.load %arg1[%c0_109, %c0_110] : memref<16x32xf32, #tpu.memory_space<vmem>>, vector<8x32xf32>
      %cst_111 = arith.constant 5.65685415 : f32
      %269 = vector.broadcast %cst_111 : f32 to vector<8x32xf32>
      %270 = arith.mulf %268, %269 : vector<8x32xf32>
      %c0_112 = arith.constant 0 : index
      %c0_113 = arith.constant 0 : index
      %271 = vector.load %arg2[%c0_112, %c0_113] : memref<8x32xf32, #tpu.memory_space<vmem>>, vector<8x32xf32>
      %272 = arith.addf %270, %271 : vector<8x32xf32>
      %c0_114 = arith.constant 0 : index
      %c0_115 = arith.constant 0 : index
      %273 = vector.load %arg19[%c0_114, %c0_115] : memref<16x32xf32, #tpu.memory_space<vmem>>, vector<8x32xf32>
      tpu.vector_store %arg19[%c0_114, %c0_115], %272 {strides = array<i32>} : memref<16x32xf32, #tpu.memory_space<vmem>>, vector<8x32xf32>,
      %c8 = arith.constant 8 : index
      %c0_116 = arith.constant 0 : index
      %274 = vector.load %arg1[%c8, %c0_116] : memref<16x32xf32, #tpu.memory_space<vmem>>, vector<8x32xf32>
      %cst_117 = arith.constant 5.65685415 : f32
      %275 = vector.broadcast %cst_117 : f32 to vector<8x32xf32>
      %276 = arith.mulf %274, %275 : vector<8x32xf32>
      %c0_118 = arith.constant 0 : index
      %c0_119 = arith.constant 0 : index
      %277 = vector.load %arg2[%c0_118, %c0_119] : memref<8x32xf32, #tpu.memory_space<vmem>>, vector<8x32xf32>
      %278 = arith.addf %276, %277 : vector<8x32xf32>
      %c8_120 = arith.constant 8 : index
      %c0_121 = arith.constant 0 : index
      %279 = vector.load %arg19[%c8_120, %c0_121] : memref<16x32xf32, #tpu.memory_space<vmem>>, vector<8x32xf32>
      tpu.vector_store %arg19[%c8_120, %c0_121], %278 {strides = array<i32>} : memref<16x32xf32, #tpu.memory_space<vmem>>, vector<8x32xf32>,
    } else {
    }
    %c0 = arith.constant 0 : index
    %c0_1 = arith.constant 0 : index
    %3 = vector.load %arg19[%c0, %c0_1] : memref<16x32xf32, #tpu.memory_space<vmem>>, vector<16x32xf32>
    %c0_2 = arith.constant 0 : index
    %c0_3 = arith.constant 0 : index
    %c0_4 = arith.constant 0 : index
    %4 = vector.load %arg4[%c0_2, %c0_3, %c0_4] : memref<1x32x96xf32, #tpu.memory_space<vmem>>, vector<1x32x96xf32>
    %5 = vector.shape_cast %4 : vector<1x32x96xf32> to vector<32x96xf32>
    %cst = arith.constant dense<0.000000e+00> : vector<16x96xf32>
    %6 = tpu.matmul %3, %5, %cst {dimension_numbers = #tpu.dot_dimension_numbers<[1], [0], [0], [1], [0, 0, 1, 1], [], []>} : vector<16x32xf32>, vector<32x96xf32>, vector<16x96xf32> -> vector<16x96xf32>
    %c0_5 = arith.constant 0 : index
    %c0_6 = arith.constant 0 : index
    %c0_7 = arith.constant 0 : index
    %7 = vector.load %arg5[%c0_5, %c0_6, %c0_7] : memref<1x1x96xf32, #tpu.memory_space<vmem>>, vector<1x1x96xf32>
    %8 = vector.shape_cast %7 : vector<1x1x96xf32> to vector<1x96xf32>
    %9 = vector.broadcast %8 : vector<1x96xf32> to vector<16x96xf32>
    %10 = arith.addf %6, %9 : vector<16x96xf32>
    %c0_8 = arith.constant 0 : index
    %c0_9 = arith.constant 0 : index
    %c0_10 = arith.constant 0 : index
    %11 = vector.load %arg6[%c0_8, %c0_9, %c0_10] : memref<1x32x32xf32, #tpu.memory_space<vmem>>, vector<1x32x32xf32>
    %12 = vector.shape_cast %11 : vector<1x32x32xf32> to vector<32x32xf32>
    %13 = vector.extract_strided_slice %10 {offsets = [0, 0], sizes = [8, 96], strides = [1, 1]} : vector<16x96xf32> to vector<8x96xf32>
    %c0_11 = arith.constant 0 : index
    %c0_12 = arith.constant 0 : index
    %c0_13 = arith.constant 0 : index
    %14 = vector.load %arg3[%c0_11, %c0_12, %c0_13] : memref<2x8x8xf32, #tpu.memory_space<vmem>>, vector<1x8x8xf32>
    %15 = vector.shape_cast %14 : vector<1x8x8xf32> to vector<8x8xf32>
    %cst_14 = arith.constant 0.000000e+00 : f32
    %16 = vector.broadcast %cst_14 : f32 to vector<8x32xf32>
    %17 = vector.extract_strided_slice %13 {offsets = [0, 0], sizes = [8, 8], strides = [1, 1]} : vector<8x96xf32> to vector<8x8xf32>
    %18 = vector.extract_strided_slice %13 {offsets = [0, 32], sizes = [8, 8], strides = [1, 1]} : vector<8x96xf32> to vector<8x8xf32>
    %19 = vector.extract_strided_slice %13 {offsets = [0, 64], sizes = [8, 8], strides = [1, 1]} : vector<8x96xf32> to vector<8x8xf32>
    %cst_15 = arith.constant dense<0.000000e+00> : vector<8x8xf32>
    %20 = tpu.matmul %17, %18, %cst_15 {dimension_numbers = #tpu.dot_dimension_numbers<[1], [1], [0], [0], [0, 0, 1, 0], [], []>} : vector<8x8xf32>, vector<8x8xf32>, vector<8x8xf32> -> vector<8x8xf32>
    %cst_16 = arith.constant 0.353553385 : f32
    %21 = vector.broadcast %cst_16 : f32 to vector<8x8xf32>
    %22 = arith.mulf %20, %21 : vector<8x8xf32>
    %23 = arith.addf %22, %15 : vector<8x8xf32>
    %cst_17 = arith.constant dense<0xFF800000> : vector<8xf32>
    %24 = vector.multi_reduction <maximumf>, %23, %cst_17 [1] : vector<8x8xf32> to vector<8xf32>
    %25 = vector.shape_cast %24 : vector<8xf32> to vector<8x1xf32>
    %26 = vector.broadcast %25 : vector<8x1xf32> to vector<8x8xf32>
    %27 = arith.subf %23, %26 : vector<8x8xf32>
    %28 = math.exp %27 : vector<8x8xf32>
    %cst_18 = arith.constant dense<0.000000e+00> : vector<8xf32>
    %29 = vector.multi_reduction <add>, %28, %cst_18 [1] : vector<8x8xf32> to vector<8xf32>
    %30 = vector.shape_cast %29 : vector<8xf32> to vector<8x1xf32>
    %31 = tpu.reciprocal %30 {approx = true} : vector<8x1xf32> -> vector<8x1xf32>
    %32 = vector.broadcast %31 : vector<8x1xf32> to vector<8x8xf32>
    %33 = arith.mulf %28, %32 : vector<8x8xf32>
    %cst_19 = arith.constant dense<0.000000e+00> : vector<8x8xf32>
    %34 = tpu.matmul %33, %19, %cst_19 {dimension_numbers = #tpu.dot_dimension_numbers<[1], [0], [0], [1], [0, 0, 1, 1], [], []>} : vector<8x8xf32>, vector<8x8xf32>, vector<8x8xf32> -> vector<8x8xf32>
    %35 = vector.extract_strided_slice %12 {offsets = [0, 0], sizes = [8, 32], strides = [1, 1]} : vector<32x32xf32> to vector<8x32xf32>
    %cst_20 = arith.constant dense<0.000000e+00> : vector<8x32xf32>
    %36 = tpu.matmul %34, %35, %cst_20 {dimension_numbers = #tpu.dot_dimension_numbers<[1], [0], [0], [1], [0, 0, 1, 1], [], []>} : vector<8x8xf32>, vector<8x32xf32>, vector<8x32xf32> -> vector<8x32xf32>
    %37 = arith.addf %16, %36 : vector<8x32xf32>
    %38 = vector.extract_strided_slice %13 {offsets = [0, 8], sizes = [8, 8], strides = [1, 1]} : vector<8x96xf32> to vector<8x8xf32>
    %39 = vector.extract_strided_slice %13 {offsets = [0, 40], sizes = [8, 8], strides = [1, 1]} : vector<8x96xf32> to vector<8x8xf32>
    %40 = vector.extract_strided_slice %13 {offsets = [0, 72], sizes = [8, 8], strides = [1, 1]} : vector<8x96xf32> to vector<8x8xf32>
    %cst_21 = arith.constant dense<0.000000e+00> : vector<8x8xf32>
    %41 = tpu.matmul %38, %39, %cst_21 {dimension_numbers = #tpu.dot_dimension_numbers<[1], [1], [0], [0], [0, 0, 1, 0], [], []>} : vector<8x8xf32>, vector<8x8xf32>, vector<8x8xf32> -> vector<8x8xf32>
    %cst_22 = arith.constant 0.353553385 : f32
    %42 = vector.broadcast %cst_22 : f32 to vector<8x8xf32>
    %43 = arith.mulf %41, %42 : vector<8x8xf32>
    %44 = arith.addf %43, %15 : vector<8x8xf32>
    %cst_23 = arith.constant dense<0xFF800000> : vector<8xf32>
    %45 = vector.multi_reduction <maximumf>, %44, %cst_23 [1] : vector<8x8xf32> to vector<8xf32>
    %46 = vector.shape_cast %45 : vector<8xf32> to vector<8x1xf32>
    %47 = vector.broadcast %46 : vector<8x1xf32> to vector<8x8xf32>
    %48 = arith.subf %44, %47 : vector<8x8xf32>
    %49 = math.exp %48 : vector<8x8xf32>
    %cst_24 = arith.constant dense<0.000000e+00> : vector<8xf32>
    %50 = vector.multi_reduction <add>, %49, %cst_24 [1] : vector<8x8xf32> to vector<8xf32>
    %51 = vector.shape_cast %50 : vector<8xf32> to vector<8x1xf32>
    %52 = tpu.reciprocal %51 {approx = true} : vector<8x1xf32> -> vector<8x1xf32>
    %53 = vector.broadcast %52 : vector<8x1xf32> to vector<8x8xf32>
    %54 = arith.mulf %49, %53 : vector<8x8xf32>
    %cst_25 = arith.constant dense<0.000000e+00> : vector<8x8xf32>
    %55 = tpu.matmul %54, %40, %cst_25 {dimension_numbers = #tpu.dot_dimension_numbers<[1], [0], [0], [1], [0, 0, 1, 1], [], []>} : vector<8x8xf32>, vector<8x8xf32>, vector<8x8xf32> -> vector<8x8xf32>
    %56 = vector.extract_strided_slice %12 {offsets = [8, 0], sizes = [8, 32], strides = [1, 1]} : vector<32x32xf32> to vector<8x32xf32>
    %cst_26 = arith.constant dense<0.000000e+00> : vector<8x32xf32>
    %57 = tpu.matmul %55, %56, %cst_26 {dimension_numbers = #tpu.dot_dimension_numbers<[1], [0], [0], [1], [0, 0, 1, 1], [], []>} : vector<8x8xf32>, vector<8x32xf32>, vector<8x32xf32> -> vector<8x32xf32>
    %58 = arith.addf %37, %57 : vector<8x32xf32>
    %59 = vector.extract_strided_slice %13 {offsets = [0, 16], sizes = [8, 8], strides = [1, 1]} : vector<8x96xf32> to vector<8x8xf32>
    %60 = vector.extract_strided_slice %13 {offsets = [0, 48], sizes = [8, 8], strides = [1, 1]} : vector<8x96xf32> to vector<8x8xf32>
    %61 = vector.extract_strided_slice %13 {offsets = [0, 80], sizes = [8, 8], strides = [1, 1]} : vector<8x96xf32> to vector<8x8xf32>
    %cst_27 = arith.constant dense<0.000000e+00> : vector<8x8xf32>
    %62 = tpu.matmul %59, %60, %cst_27 {dimension_numbers = #tpu.dot_dimension_numbers<[1], [1], [0], [0], [0, 0, 1, 0], [], []>} : vector<8x8xf32>, vector<8x8xf32>, vector<8x8xf32> -> vector<8x8xf32>
    %cst_28 = arith.constant 0.353553385 : f32
    %63 = vector.broadcast %cst_28 : f32 to vector<8x8xf32>
    %64 = arith.mulf %62, %63 : vector<8x8xf32>
    %65 = arith.addf %64, %15 : vector<8x8xf32>
    %cst_29 = arith.constant dense<0xFF800000> : vector<8xf32>
    %66 = vector.multi_reduction <maximumf>, %65, %cst_29 [1] : vector<8x8xf32> to vector<8xf32>
    %67 = vector.shape_cast %66 : vector<8xf32> to vector<8x1xf32>
    %68 = vector.broadcast %67 : vector<8x1xf32> to vector<8x8xf32>
    %69 = arith.subf %65, %68 : vector<8x8xf32>
    %70 = math.exp %69 : vector<8x8xf32>
    %cst_30 = arith.constant dense<0.000000e+00> : vector<8xf32>
    %71 = vector.multi_reduction <add>, %70, %cst_30 [1] : vector<8x8xf32> to vector<8xf32>
    %72 = vector.shape_cast %71 : vector<8xf32> to vector<8x1xf32>
    %73 = tpu.reciprocal %72 {approx = true} : vector<8x1xf32> -> vector<8x1xf32>
    %74 = vector.broadcast %73 : vector<8x1xf32> to vector<8x8xf32>
    %75 = arith.mulf %70, %74 : vector<8x8xf32>
    %cst_31 = arith.constant dense<0.000000e+00> : vector<8x8xf32>
    %76 = tpu.matmul %75, %61, %cst_31 {dimension_numbers = #tpu.dot_dimension_numbers<[1], [0], [0], [1], [0, 0, 1, 1], [], []>} : vector<8x8xf32>, vector<8x8xf32>, vector<8x8xf32> -> vector<8x8xf32>
    %77 = vector.extract_strided_slice %12 {offsets = [16, 0], sizes = [8, 32], strides = [1, 1]} : vector<32x32xf32> to vector<8x32xf32>
    %cst_32 = arith.constant dense<0.000000e+00> : vector<8x32xf32>
    %78 = tpu.matmul %76, %77, %cst_32 {dimension_numbers = #tpu.dot_dimension_numbers<[1], [0], [0], [1], [0, 0, 1, 1], [], []>} : vector<8x8xf32>, vector<8x32xf32>, vector<8x32xf32> -> vector<8x32xf32>
    %79 = arith.addf %58, %78 : vector<8x32xf32>
    %80 = vector.extract_strided_slice %13 {offsets = [0, 24], sizes = [8, 8], strides = [1, 1]} : vector<8x96xf32> to vector<8x8xf32>
    %81 = vector.extract_strided_slice %13 {offsets = [0, 56], sizes = [8, 8], strides = [1, 1]} : vector<8x96xf32> to vector<8x8xf32>
    %82 = vector.extract_strided_slice %13 {offsets = [0, 88], sizes = [8, 8], strides = [1, 1]} : vector<8x96xf32> to vector<8x8xf32>
    %cst_33 = arith.constant dense<0.000000e+00> : vector<8x8xf32>
    %83 = tpu.matmul %80, %81, %cst_33 {dimension_numbers = #tpu.dot_dimension_numbers<[1], [1], [0], [0], [0, 0, 1, 0], [], []>} : vector<8x8xf32>, vector<8x8xf32>, vector<8x8xf32> -> vector<8x8xf32>
    %cst_34 = arith.constant 0.353553385 : f32
    %84 = vector.broadcast %cst_34 : f32 to vector<8x8xf32>
    %85 = arith.mulf %83, %84 : vector<8x8xf32>
    %86 = arith.addf %85, %15 : vector<8x8xf32>
    %cst_35 = arith.constant dense<0xFF800000> : vector<8xf32>
    %87 = vector.multi_reduction <maximumf>, %86, %cst_35 [1] : vector<8x8xf32> to vector<8xf32>
    %88 = vector.shape_cast %87 : vector<8xf32> to vector<8x1xf32>
    %89 = vector.broadcast %88 : vector<8x1xf32> to vector<8x8xf32>
    %90 = arith.subf %86, %89 : vector<8x8xf32>
    %91 = math.exp %90 : vector<8x8xf32>
    %cst_36 = arith.constant dense<0.000000e+00> : vector<8xf32>
    %92 = vector.multi_reduction <add>, %91, %cst_36 [1] : vector<8x8xf32> to vector<8xf32>
    %93 = vector.shape_cast %92 : vector<8xf32> to vector<8x1xf32>
    %94 = tpu.reciprocal %93 {approx = true} : vector<8x1xf32> -> vector<8x1xf32>
    %95 = vector.broadcast %94 : vector<8x1xf32> to vector<8x8xf32>
    %96 = arith.mulf %91, %95 : vector<8x8xf32>
    %cst_37 = arith.constant dense<0.000000e+00> : vector<8x8xf32>
    %97 = tpu.matmul %96, %82, %cst_37 {dimension_numbers = #tpu.dot_dimension_numbers<[1], [0], [0], [1], [0, 0, 1, 1], [], []>} : vector<8x8xf32>, vector<8x8xf32>, vector<8x8xf32> -> vector<8x8xf32>
    %98 = vector.extract_strided_slice %12 {offsets = [24, 0], sizes = [8, 32], strides = [1, 1]} : vector<32x32xf32> to vector<8x32xf32>
    %cst_38 = arith.constant dense<0.000000e+00> : vector<8x32xf32>
    %99 = tpu.matmul %97, %98, %cst_38 {dimension_numbers = #tpu.dot_dimension_numbers<[1], [0], [0], [1], [0, 0, 1, 1], [], []>} : vector<8x8xf32>, vector<8x32xf32>, vector<8x32xf32> -> vector<8x32xf32>
    %100 = arith.addf %79, %99 : vector<8x32xf32>
    %101 = vector.extract_strided_slice %10 {offsets = [8, 0], sizes = [8, 96], strides = [1, 1]} : vector<16x96xf32> to vector<8x96xf32>
    %c1 = arith.constant 1 : index
    %c0_39 = arith.constant 0 : index
    %c0_40 = arith.constant 0 : index
    %102 = vector.load %arg3[%c1, %c0_39, %c0_40] : memref<2x8x8xf32, #tpu.memory_space<vmem>>, vector<1x8x8xf32>
    %103 = vector.shape_cast %102 : vector<1x8x8xf32> to vector<8x8xf32>
    %cst_41 = arith.constant 0.000000e+00 : f32
    %104 = vector.broadcast %cst_41 : f32 to vector<8x32xf32>
    %105 = vector.extract_strided_slice %101 {offsets = [0, 0], sizes = [8, 8], strides = [1, 1]} : vector<8x96xf32> to vector<8x8xf32>
    %106 = vector.extract_strided_slice %101 {offsets = [0, 32], sizes = [8, 8], strides = [1, 1]} : vector<8x96xf32> to vector<8x8xf32>
    %107 = vector.extract_strided_slice %101 {offsets = [0, 64], sizes = [8, 8], strides = [1, 1]} : vector<8x96xf32> to vector<8x8xf32>
    %cst_42 = arith.constant dense<0.000000e+00> : vector<8x8xf32>
    %108 = tpu.matmul %105, %106, %cst_42 {dimension_numbers = #tpu.dot_dimension_numbers<[1], [1], [0], [0], [0, 0, 1, 0], [], []>} : vector<8x8xf32>, vector<8x8xf32>, vector<8x8xf32> -> vector<8x8xf32>
    %cst_43 = arith.constant 0.353553385 : f32
    %109 = vector.broadcast %cst_43 : f32 to vector<8x8xf32>
    %110 = arith.mulf %108, %109 : vector<8x8xf32>
    %111 = arith.addf %110, %103 : vector<8x8xf32>
    %cst_44 = arith.constant dense<0xFF800000> : vector<8xf32>
    %112 = vector.multi_reduction <maximumf>, %111, %cst_44 [1] : vector<8x8xf32> to vector<8xf32>
    %113 = vector.shape_cast %112 : vector<8xf32> to vector<8x1xf32>
    %114 = vector.broadcast %113 : vector<8x1xf32> to vector<8x8xf32>
    %115 = arith.subf %111, %114 : vector<8x8xf32>
    %116 = math.exp %115 : vector<8x8xf32>
    %cst_45 = arith.constant dense<0.000000e+00> : vector<8xf32>
    %117 = vector.multi_reduction <add>, %116, %cst_45 [1] : vector<8x8xf32> to vector<8xf32>
    %118 = vector.shape_cast %117 : vector<8xf32> to vector<8x1xf32>
    %119 = tpu.reciprocal %118 {approx = true} : vector<8x1xf32> -> vector<8x1xf32>
    %120 = vector.broadcast %119 : vector<8x1xf32> to vector<8x8xf32>
    %121 = arith.mulf %116, %120 : vector<8x8xf32>
    %cst_46 = arith.constant dense<0.000000e+00> : vector<8x8xf32>
    %122 = tpu.matmul %121, %107, %cst_46 {dimension_numbers = #tpu.dot_dimension_numbers<[1], [0], [0], [1], [0, 0, 1, 1], [], []>} : vector<8x8xf32>, vector<8x8xf32>, vector<8x8xf32> -> vector<8x8xf32>
    %123 = vector.extract_strided_slice %12 {offsets = [0, 0], sizes = [8, 32], strides = [1, 1]} : vector<32x32xf32> to vector<8x32xf32>
    %cst_47 = arith.constant dense<0.000000e+00> : vector<8x32xf32>
    %124 = tpu.matmul %122, %123, %cst_47 {dimension_numbers = #tpu.dot_dimension_numbers<[1], [0], [0], [1], [0, 0, 1, 1], [], []>} : vector<8x8xf32>, vector<8x32xf32>, vector<8x32xf32> -> vector<8x32xf32>
    %125 = arith.addf %104, %124 : vector<8x32xf32>
    %126 = vector.extract_strided_slice %101 {offsets = [0, 8], sizes = [8, 8], strides = [1, 1]} : vector<8x96xf32> to vector<8x8xf32>
    %127 = vector.extract_strided_slice %101 {offsets = [0, 40], sizes = [8, 8], strides = [1, 1]} : vector<8x96xf32> to vector<8x8xf32>
    %128 = vector.extract_strided_slice %101 {offsets = [0, 72], sizes = [8, 8], strides = [1, 1]} : vector<8x96xf32> to vector<8x8xf32>
    %cst_48 = arith.constant dense<0.000000e+00> : vector<8x8xf32>
    %129 = tpu.matmul %126, %127, %cst_48 {dimension_numbers = #tpu.dot_dimension_numbers<[1], [1], [0], [0], [0, 0, 1, 0], [], []>} : vector<8x8xf32>, vector<8x8xf32>, vector<8x8xf32> -> vector<8x8xf32>
    %cst_49 = arith.constant 0.353553385 : f32
    %130 = vector.broadcast %cst_49 : f32 to vector<8x8xf32>
    %131 = arith.mulf %129, %130 : vector<8x8xf32>
    %132 = arith.addf %131, %103 : vector<8x8xf32>
    %cst_50 = arith.constant dense<0xFF800000> : vector<8xf32>
    %133 = vector.multi_reduction <maximumf>, %132, %cst_50 [1] : vector<8x8xf32> to vector<8xf32>
    %134 = vector.shape_cast %133 : vector<8xf32> to vector<8x1xf32>
    %135 = vector.broadcast %134 : vector<8x1xf32> to vector<8x8xf32>
    %136 = arith.subf %132, %135 : vector<8x8xf32>
    %137 = math.exp %136 : vector<8x8xf32>
    %cst_51 = arith.constant dense<0.000000e+00> : vector<8xf32>
    %138 = vector.multi_reduction <add>, %137, %cst_51 [1] : vector<8x8xf32> to vector<8xf32>
    %139 = vector.shape_cast %138 : vector<8xf32> to vector<8x1xf32>
    %140 = tpu.reciprocal %139 {approx = true} : vector<8x1xf32> -> vector<8x1xf32>
    %141 = vector.broadcast %140 : vector<8x1xf32> to vector<8x8xf32>
    %142 = arith.mulf %137, %141 : vector<8x8xf32>
    %cst_52 = arith.constant dense<0.000000e+00> : vector<8x8xf32>
    %143 = tpu.matmul %142, %128, %cst_52 {dimension_numbers = #tpu.dot_dimension_numbers<[1], [0], [0], [1], [0, 0, 1, 1], [], []>} : vector<8x8xf32>, vector<8x8xf32>, vector<8x8xf32> -> vector<8x8xf32>
    %144 = vector.extract_strided_slice %12 {offsets = [8, 0], sizes = [8, 32], strides = [1, 1]} : vector<32x32xf32> to vector<8x32xf32>
    %cst_53 = arith.constant dense<0.000000e+00> : vector<8x32xf32>
    %145 = tpu.matmul %143, %144, %cst_53 {dimension_numbers = #tpu.dot_dimension_numbers<[1], [0], [0], [1], [0, 0, 1, 1], [], []>} : vector<8x8xf32>, vector<8x32xf32>, vector<8x32xf32> -> vector<8x32xf32>
    %146 = arith.addf %125, %145 : vector<8x32xf32>
    %147 = vector.extract_strided_slice %101 {offsets = [0, 16], sizes = [8, 8], strides = [1, 1]} : vector<8x96xf32> to vector<8x8xf32>
    %148 = vector.extract_strided_slice %101 {offsets = [0, 48], sizes = [8, 8], strides = [1, 1]} : vector<8x96xf32> to vector<8x8xf32>
    %149 = vector.extract_strided_slice %101 {offsets = [0, 80], sizes = [8, 8], strides = [1, 1]} : vector<8x96xf32> to vector<8x8xf32>
    %cst_54 = arith.constant dense<0.000000e+00> : vector<8x8xf32>
    %150 = tpu.matmul %147, %148, %cst_54 {dimension_numbers = #tpu.dot_dimension_numbers<[1], [1], [0], [0], [0, 0, 1, 0], [], []>} : vector<8x8xf32>, vector<8x8xf32>, vector<8x8xf32> -> vector<8x8xf32>
    %cst_55 = arith.constant 0.353553385 : f32
    %151 = vector.broadcast %cst_55 : f32 to vector<8x8xf32>
    %152 = arith.mulf %150, %151 : vector<8x8xf32>
    %153 = arith.addf %152, %103 : vector<8x8xf32>
    %cst_56 = arith.constant dense<0xFF800000> : vector<8xf32>
    %154 = vector.multi_reduction <maximumf>, %153, %cst_56 [1] : vector<8x8xf32> to vector<8xf32>
    %155 = vector.shape_cast %154 : vector<8xf32> to vector<8x1xf32>
    %156 = vector.broadcast %155 : vector<8x1xf32> to vector<8x8xf32>
    %157 = arith.subf %153, %156 : vector<8x8xf32>
    %158 = math.exp %157 : vector<8x8xf32>
    %cst_57 = arith.constant dense<0.000000e+00> : vector<8xf32>
    %159 = vector.multi_reduction <add>, %158, %cst_57 [1] : vector<8x8xf32> to vector<8xf32>
    %160 = vector.shape_cast %159 : vector<8xf32> to vector<8x1xf32>
    %161 = tpu.reciprocal %160 {approx = true} : vector<8x1xf32> -> vector<8x1xf32>
    %162 = vector.broadcast %161 : vector<8x1xf32> to vector<8x8xf32>
    %163 = arith.mulf %158, %162 : vector<8x8xf32>
    %cst_58 = arith.constant dense<0.000000e+00> : vector<8x8xf32>
    %164 = tpu.matmul %163, %149, %cst_58 {dimension_numbers = #tpu.dot_dimension_numbers<[1], [0], [0], [1], [0, 0, 1, 1], [], []>} : vector<8x8xf32>, vector<8x8xf32>, vector<8x8xf32> -> vector<8x8xf32>
    %165 = vector.extract_strided_slice %12 {offsets = [16, 0], sizes = [8, 32], strides = [1, 1]} : vector<32x32xf32> to vector<8x32xf32>
    %cst_59 = arith.constant dense<0.000000e+00> : vector<8x32xf32>
    %166 = tpu.matmul %164, %165, %cst_59 {dimension_numbers = #tpu.dot_dimension_numbers<[1], [0], [0], [1], [0, 0, 1, 1], [], []>} : vector<8x8xf32>, vector<8x32xf32>, vector<8x32xf32> -> vector<8x32xf32>
    %167 = arith.addf %146, %166 : vector<8x32xf32>
    %168 = vector.extract_strided_slice %101 {offsets = [0, 24], sizes = [8, 8], strides = [1, 1]} : vector<8x96xf32> to vector<8x8xf32>
    %169 = vector.extract_strided_slice %101 {offsets = [0, 56], sizes = [8, 8], strides = [1, 1]} : vector<8x96xf32> to vector<8x8xf32>
    %170 = vector.extract_strided_slice %101 {offsets = [0, 88], sizes = [8, 8], strides = [1, 1]} : vector<8x96xf32> to vector<8x8xf32>
    %cst_60 = arith.constant dense<0.000000e+00> : vector<8x8xf32>
    %171 = tpu.matmul %168, %169, %cst_60 {dimension_numbers = #tpu.dot_dimension_numbers<[1], [1], [0], [0], [0, 0, 1, 0], [], []>} : vector<8x8xf32>, vector<8x8xf32>, vector<8x8xf32> -> vector<8x8xf32>
    %cst_61 = arith.constant 0.353553385 : f32
    %172 = vector.broadcast %cst_61 : f32 to vector<8x8xf32>
    %173 = arith.mulf %171, %172 : vector<8x8xf32>
    %174 = arith.addf %173, %103 : vector<8x8xf32>
    %cst_62 = arith.constant dense<0xFF800000> : vector<8xf32>
    %175 = vector.multi_reduction <maximumf>, %174, %cst_62 [1] : vector<8x8xf32> to vector<8xf32>
    %176 = vector.shape_cast %175 : vector<8xf32> to vector<8x1xf32>
    %177 = vector.broadcast %176 : vector<8x1xf32> to vector<8x8xf32>
    %178 = arith.subf %174, %177 : vector<8x8xf32>
    %179 = math.exp %178 : vector<8x8xf32>
    %cst_63 = arith.constant dense<0.000000e+00> : vector<8xf32>
    %180 = vector.multi_reduction <add>, %179, %cst_63 [1] : vector<8x8xf32> to vector<8xf32>
    %181 = vector.shape_cast %180 : vector<8xf32> to vector<8x1xf32>
    %182 = tpu.reciprocal %181 {approx = true} : vector<8x1xf32> -> vector<8x1xf32>
    %183 = vector.broadcast %182 : vector<8x1xf32> to vector<8x8xf32>
    %184 = arith.mulf %179, %183 : vector<8x8xf32>
    %cst_64 = arith.constant dense<0.000000e+00> : vector<8x8xf32>
    %185 = tpu.matmul %184, %170, %cst_64 {dimension_numbers = #tpu.dot_dimension_numbers<[1], [0], [0], [1], [0, 0, 1, 1], [], []>} : vector<8x8xf32>, vector<8x8xf32>, vector<8x8xf32> -> vector<8x8xf32>
    %186 = vector.extract_strided_slice %12 {offsets = [24, 0], sizes = [8, 32], strides = [1, 1]} : vector<32x32xf32> to vector<8x32xf32>
    %cst_65 = arith.constant dense<0.000000e+00> : vector<8x32xf32>
    %187 = tpu.matmul %185, %186, %cst_65 {dimension_numbers = #tpu.dot_dimension_numbers<[1], [0], [0], [1], [0, 0, 1, 1], [], []>} : vector<8x8xf32>, vector<8x32xf32>, vector<8x32xf32> -> vector<8x32xf32>
    %188 = arith.addf %167, %187 : vector<8x32xf32>
    %189 = tpu.concatenate %100, %188 in 0 : vector<8x32xf32>, vector<8x32xf32> -> vector<16x32xf32>
    %c0_66 = arith.constant 0 : index
    %c0_67 = arith.constant 0 : index
    %c0_68 = arith.constant 0 : index
    %190 = vector.load %arg7[%c0_66, %c0_67, %c0_68] : memref<1x1x32xf32, #tpu.memory_space<vmem>>, vector<1x1x32xf32>
    %191 = vector.shape_cast %190 : vector<1x1x32xf32> to vector<1x32xf32>
    %192 = vector.broadcast %191 : vector<1x32xf32> to vector<16x32xf32>
    %193 = arith.addf %189, %192 : vector<16x32xf32>
    %194 = arith.addf %3, %193 : vector<16x32xf32>
    %cst_69 = arith.constant dense<0.000000e+00> : vector<16xf32>
    %195 = vector.multi_reduction <add>, %194, %cst_69 [1] : vector<16x32xf32> to vector<16xf32>
    %196 = vector.shape_cast %195 : vector<16xf32> to vector<16x1xf32>
    %cst_70 = arith.constant 3.200000e+01 : f32
    %197 = vector.broadcast %cst_70 : f32 to vector<16x1xf32>
    %198 = arith.divf %196, %197 : vector<16x1xf32>
    %199 = vector.broadcast %198 : vector<16x1xf32> to vector<16x32xf32>
    %200 = arith.subf %194, %199 : vector<16x32xf32>
    %201 = arith.mulf %200, %200 : vector<16x32xf32>
    %cst_71 = arith.constant dense<0.000000e+00> : vector<16xf32>
    %202 = vector.multi_reduction <add>, %201, %cst_71 [1] : vector<16x32xf32> to vector<16xf32>
    %203 = vector.shape_cast %202 : vector<16xf32> to vector<16x1xf32>
    %cst_72 = arith.constant 3.200000e+01 : f32
    %204 = vector.broadcast %cst_72 : f32 to vector<16x1xf32>
    %205 = arith.divf %203, %204 : vector<16x1xf32>
    %206 = vector.broadcast %198 : vector<16x1xf32> to vector<16x32xf32>
    %207 = arith.subf %194, %206 : vector<16x32xf32>
    %cst_73 = arith.constant 9.99999974E-6 : f32
    %208 = vector.broadcast %cst_73 : f32 to vector<16x1xf32>
    %209 = arith.addf %205, %208 : vector<16x1xf32>
    %210 = math.rsqrt %209 : vector<16x1xf32>
    %211 = vector.broadcast %210 : vector<16x1xf32> to vector<16x32xf32>
    %212 = arith.mulf %207, %211 : vector<16x32xf32>
    %c0_74 = arith.constant 0 : index
    %c0_75 = arith.constant 0 : index
    %c0_76 = arith.constant 0 : index
    %213 = vector.load %arg8[%c0_74, %c0_75, %c0_76] : memref<1x1x32xf32, #tpu.memory_space<vmem>>, vector<1x1x32xf32>
    %214 = vector.shape_cast %213 : vector<1x1x32xf32> to vector<1x32xf32>
    %215 = vector.broadcast %214 : vector<1x32xf32> to vector<16x32xf32>
    %216 = arith.mulf %212, %215 : vector<16x32xf32>
    %c0_77 = arith.constant 0 : index
    %c0_78 = arith.constant 0 : index
    %c0_79 = arith.constant 0 : index
    %217 = vector.load %arg9[%c0_77, %c0_78, %c0_79] : memref<1x1x32xf32, #tpu.memory_space<vmem>>, vector<1x1x32xf32>
    %218 = vector.shape_cast %217 : vector<1x1x32xf32> to vector<1x32xf32>
    %219 = vector.broadcast %218 : vector<1x32xf32> to vector<16x32xf32>
    %220 = arith.addf %216, %219 : vector<16x32xf32>
    %c0_80 = arith.constant 0 : index
    %c0_81 = arith.constant 0 : index
    %c0_82 = arith.constant 0 : index
    %221 = vector.load %arg10[%c0_80, %c0_81, %c0_82] : memref<1x32x64xf32, #tpu.memory_space<vmem>>, vector<1x32x64xf32>
    %222 = vector.shape_cast %221 : vector<1x32x64xf32> to vector<32x64xf32>
    %cst_83 = arith.constant dense<0.000000e+00> : vector<16x64xf32>
    %223 = tpu.matmul %220, %222, %cst_83 {dimension_numbers = #tpu.dot_dimension_numbers<[1], [0], [0], [1], [0, 0, 1, 1], [], []>} : vector<16x32xf32>, vector<32x64xf32>, vector<16x64xf32> -> vector<16x64xf32>
    %c0_84 = arith.constant 0 : index
    %c0_85 = arith.constant 0 : index
    %c0_86 = arith.constant 0 : index
    %224 = vector.load %arg11[%c0_84, %c0_85, %c0_86] : memref<1x1x64xf32, #tpu.memory_space<vmem>>, vector<1x1x64xf32>
    %225 = vector.shape_cast %224 : vector<1x1x64xf32> to vector<1x64xf32>
    %226 = vector.broadcast %225 : vector<1x64xf32> to vector<16x64xf32>
    %227 = arith.addf %223, %226 : vector<16x64xf32>
    %cst_87 = arith.constant 0.000000e+00 : f32
    %228 = vector.broadcast %cst_87 : f32 to vector<16x64xf32>
    %229 = arith.maximumf %227, %228 : vector<16x64xf32>
    %c0_88 = arith.constant 0 : index
    %c0_89 = arith.constant 0 : index
    %c0_90 = arith.constant 0 : index
    %230 = vector.load %arg12[%c0_88, %c0_89, %c0_90] : memref<1x64x32xf32, #tpu.memory_space<vmem>>, vector<1x64x32xf32>
    %231 = vector.shape_cast %230 : vector<1x64x32xf32> to vector<64x32xf32>
    %cst_91 = arith.constant dense<0.000000e+00> : vector<16x32xf32>
    %232 = tpu.matmul %229, %231, %cst_91 {dimension_numbers = #tpu.dot_dimension_numbers<[1], [0], [0], [1], [0, 0, 1, 1], [], []>} : vector<16x64xf32>, vector<64x32xf32>, vector<16x32xf32> -> vector<16x32xf32>
    %c0_92 = arith.constant 0 : index
    %c0_93 = arith.constant 0 : index
    %c0_94 = arith.constant 0 : index
    %233 = vector.load %arg13[%c0_92, %c0_93, %c0_94] : memref<1x1x32xf32, #tpu.memory_space<vmem>>, vector<1x1x32xf32>
    %234 = vector.shape_cast %233 : vector<1x1x32xf32> to vector<1x32xf32>
    %235 = vector.broadcast %234 : vector<1x32xf32> to vector<16x32xf32>
    %236 = arith.addf %232, %235 : vector<16x32xf32>
    %237 = arith.addf %220, %236 : vector<16x32xf32>
    %cst_95 = arith.constant dense<0.000000e+00> : vector<16xf32>
    %238 = vector.multi_reduction <add>, %237, %cst_95 [1] : vector<16x32xf32> to vector<16xf32>
    %239 = vector.shape_cast %238 : vector<16xf32> to vector<16x1xf32>
    %cst_96 = arith.constant 3.200000e+01 : f32
    %240 = vector.broadcast %cst_96 : f32 to vector<16x1xf32>
    %241 = arith.divf %239, %240 : vector<16x1xf32>
    %242 = vector.broadcast %241 : vector<16x1xf32> to vector<16x32xf32>
    %243 = arith.subf %237, %242 : vector<16x32xf32>
    %244 = arith.mulf %243, %243 : vector<16x32xf32>
    %cst_97 = arith.constant dense<0.000000e+00> : vector<16xf32>
    %245 = vector.multi_reduction <add>, %244, %cst_97 [1] : vector<16x32xf32> to vector<16xf32>
    %246 = vector.shape_cast %245 : vector<16xf32> to vector<16x1xf32>
    %cst_98 = arith.constant 3.200000e+01 : f32
    %247 = vector.broadcast %cst_98 : f32 to vector<16x1xf32>
    %248 = arith.divf %246, %247 : vector<16x1xf32>
    %249 = vector.broadcast %241 : vector<16x1xf32> to vector<16x32xf32>
    %250 = arith.subf %237, %249 : vector<16x32xf32>
    %cst_99 = arith.constant 9.99999974E-6 : f32
    %251 = vector.broadcast %cst_99 : f32 to vector<16x1xf32>
    %252 = arith.addf %248, %251 : vector<16x1xf32>
    %253 = math.rsqrt %252 : vector<16x1xf32>
    %254 = vector.broadcast %253 : vector<16x1xf32> to vector<16x32xf32>
    %255 = arith.mulf %250, %254 : vector<16x32xf32>
    %c0_100 = arith.constant 0 : index
    %c0_101 = arith.constant 0 : index
    %c0_102 = arith.constant 0 : index
    %256 = vector.load %arg14[%c0_100, %c0_101, %c0_102] : memref<1x1x32xf32, #tpu.memory_space<vmem>>, vector<1x1x32xf32>
    %257 = vector.shape_cast %256 : vector<1x1x32xf32> to vector<1x32xf32>
    %258 = vector.broadcast %257 : vector<1x32xf32> to vector<16x32xf32>
    %259 = arith.mulf %255, %258 : vector<16x32xf32>
    %c0_103 = arith.constant 0 : index
    %c0_104 = arith.constant 0 : index
    %c0_105 = arith.constant 0 : index
    %260 = vector.load %arg15[%c0_103, %c0_104, %c0_105] : memref<1x1x32xf32, #tpu.memory_space<vmem>>, vector<1x1x32xf32>
    %261 = vector.shape_cast %260 : vector<1x1x32xf32> to vector<1x32xf32>
    %262 = vector.broadcast %261 : vector<1x32xf32> to vector<16x32xf32>
    %263 = arith.addf %259, %262 : vector<16x32xf32>
    %c0_106 = arith.constant 0 : index
    %c0_107 = arith.constant 0 : index
    %264 = vector.load %arg19[%c0_106, %c0_107] : memref<16x32xf32, #tpu.memory_space<vmem>>, vector<16x32xf32>
    tpu.vector_store %arg19[%c0_106, %c0_107], %263 {strides = array<i32>} : memref<16x32xf32, #tpu.memory_space<vmem>>, vector<16x32xf32>,
    %c1_i32 = arith.constant 1 : i32
    %265 = arith.cmpi eq, %arg0, %c1_i32 : i32
    %266 = arith.extui %265 : i1 to i32
    %c0_i32_108 = arith.constant 0 : i32
    %267 = arith.cmpi ne, %266, %c0_i32_108 : i32
    scf.if %267 {
      %c0_109 = arith.constant 0 : index
      %c0_110 = arith.constant 0 : index
      %268 = vector.load %arg19[%c0_109, %c0_110] : memref<16x32xf32, #tpu.memory_space<vmem>>, vector<16x32xf32>
      %c0_111 = arith.constant 0 : index
      %c0_112 = arith.constant 0 : index
      %269 = vector.load %arg16[%c0_111, %c0_112] : memref<32x128xf32, #tpu.memory_space<vmem>>, vector<32x128xf32>
      %cst_113 = arith.constant dense<0.000000e+00> : vector<16x128xf32>
      %270 = tpu.matmul %268, %269, %cst_113 {dimension_numbers = #tpu.dot_dimension_numbers<[1], [0], [0], [1], [0, 0, 1, 1], [], []>} : vector<16x32xf32>, vector<32x128xf32>, vector<16x128xf32> -> vector<16x128xf32>
      %c0_114 = arith.constant 0 : index
      %c0_115 = arith.constant 0 : index
      %271 = vector.load %arg17[%c0_114, %c0_115] : memref<1x128xf32, #tpu.memory_space<vmem>>, vector<1x128xf32>
      %272 = vector.broadcast %271 : vector<1x128xf32> to vector<16x128xf32>
      %273 = arith.addf %270, %272 : vector<16x128xf32>
      %274 = vector.shape_cast %273 : vector<16x128xf32> to vector<2x8x128xf32>
      %c0_116 = arith.constant 0 : index
      %c0_117 = arith.constant 0 : index
      %c0_118 = arith.constant 0 : index
      %275 = vector.load %arg18[%c0_116, %c0_117, %c0_118] : memref<2x8x128xf32, #tpu.memory_space<vmem>>, vector<2x8x128xf32>
      tpu.vector_store %arg18[%c0_116, %c0_117, %c0_118], %274 {strides = array<i32>} : memref<2x8x128xf32, #tpu.memory_space<vmem>>, vector<2x8x128xf32>,
    } else {
    }
    return
  }
  func.func @transform_0(%arg0: i32) -> (i32, i32) {
    %c0_i32 = arith.constant 0 : i32
    %c0_i32_0 = arith.constant 0 : i32
    %c0_i32_1 = arith.constant 0 : i32
    return %c0_i32, %c0_i32_0 : i32, i32
  }
  func.func @transform_1(%arg0: i32) -> (i32, i32) {
    %c0_i32 = arith.constant 0 : i32
    %c0_i32_0 = arith.constant 0 : i32
    %c0_i32_1 = arith.constant 0 : i32
    return %c0_i32, %c0_i32_0 : i32, i32
  }
  func.func @transform_2(%arg0: i32) -> (i32, i32, i32) {
    %c0_i32 = arith.constant 0 : i32
    %c0_i32_0 = arith.constant 0 : i32
    %c0_i32_1 = arith.constant 0 : i32
    %c0_i32_2 = arith.constant 0 : i32
    return %c0_i32, %c0_i32_0, %c0_i32_1 : i32, i32, i32
  }
  func.func @transform_3(%arg0: i32) -> (i32, i32, i32) {
    %c0_i32 = arith.constant 0 : i32
    %c0_i32_0 = arith.constant 0 : i32
    %c0_i32_1 = arith.constant 0 : i32
    return %arg0, %c0_i32, %c0_i32_0 : i32, i32, i32
  }
  func.func @transform_4(%arg0: i32) -> (i32, i32, i32) {
    %c0_i32 = arith.constant 0 : i32
    %c0_i32_0 = arith.constant 0 : i32
    %c0_i32_1 = arith.constant 0 : i32
    return %arg0, %c0_i32, %c0_i32_0 : i32, i32, i32
  }
  func.func @transform_5(%arg0: i32) -> (i32, i32, i32) {
    %c0_i32 = arith.constant 0 : i32
    %c0_i32_0 = arith.constant 0 : i32
    %c0_i32_1 = arith.constant 0 : i32
    return %arg0, %c0_i32, %c0_i32_0 : i32, i32, i32
  }
  func.func @transform_6(%arg0: i32) -> (i32, i32, i32) {
    %c0_i32 = arith.constant 0 : i32
    %c0_i32_0 = arith.constant 0 : i32
    %c0_i32_1 = arith.constant 0 : i32
    return %arg0, %c0_i32, %c0_i32_0 : i32, i32, i32
  }
  func.func @transform_7(%arg0: i32) -> (i32, i32, i32) {
    %c0_i32 = arith.constant 0 : i32
    %c0_i32_0 = arith.constant 0 : i32
    %c0_i32_1 = arith.constant 0 : i32
    return %arg0, %c0_i32, %c0_i32_0 : i32, i32, i32
  }
  func.func @transform_8(%arg0: i32) -> (i32, i32, i32) {
    %c0_i32 = arith.constant 0 : i32
    %c0_i32_0 = arith.constant 0 : i32
    %c0_i32_1 = arith.constant 0 : i32
    return %arg0, %c0_i32, %c0_i32_0 : i32, i32, i32
  }
  func.func @transform_9(%arg0: i32) -> (i32, i32, i32) {
    %c0_i32 = arith.constant 0 : i32
    %c0_i32_0 = arith.constant 0 : i32
    %c0_i32_1 = arith.constant 0 : i32
    return %arg0, %c0_i32, %c0_i32_0 : i32, i32, i32
  }
  func.func @transform_10(%arg0: i32) -> (i32, i32, i32) {
    %c0_i32 = arith.constant 0 : i32
    %c0_i32_0 = arith.constant 0 : i32
    %c0_i32_1 = arith.constant 0 : i32
    return %arg0, %c0_i32, %c0_i32_0 : i32, i32, i32
  }
  func.func @transform_11(%arg0: i32) -> (i32, i32, i32) {
    %c0_i32 = arith.constant 0 : i32
    %c0_i32_0 = arith.constant 0 : i32
    %c0_i32_1 = arith.constant 0 : i32
    return %arg0, %c0_i32, %c0_i32_0 : i32, i32, i32
  }
  func.func @transform_12(%arg0: i32) -> (i32, i32, i32) {
    %c0_i32 = arith.constant 0 : i32
    %c0_i32_0 = arith.constant 0 : i32
    %c0_i32_1 = arith.constant 0 : i32
    return %arg0, %c0_i32, %c0_i32_0 : i32, i32, i32
  }
  func.func @transform_13(%arg0: i32) -> (i32, i32, i32) {
    %c0_i32 = arith.constant 0 : i32
    %c0_i32_0 = arith.constant 0 : i32
    %c0_i32_1 = arith.constant 0 : i32
    return %arg0, %c0_i32, %c0_i32_0 : i32, i32, i32
  }
  func.func @transform_14(%arg0: i32) -> (i32, i32, i32) {
    %c0_i32 = arith.constant 0 : i32
    %c0_i32_0 = arith.constant 0 : i32
    %c0_i32_1 = arith.constant 0 : i32
    return %arg0, %c0_i32, %c0_i32_0 : i32, i32, i32
  }
  func.func @transform_15(%arg0: i32) -> (i32, i32) {
    %c0_i32 = arith.constant 0 : i32
    %c0_i32_0 = arith.constant 0 : i32
    %c0_i32_1 = arith.constant 0 : i32
    return %c0_i32, %c0_i32_0 : i32, i32
  }
  func.func @transform_16(%arg0: i32) -> (i32, i32) {
    %c0_i32 = arith.constant 0 : i32
    %c0_i32_0 = arith.constant 0 : i32
    %c0_i32_1 = arith.constant 0 : i32
    return %c0_i32, %c0_i32_0 : i32, i32
  }
  func.func @transform_17(%arg0: i32) -> (i32, i32, i32) {
    %c0_i32 = arith.constant 0 : i32
    %c0_i32_0 = arith.constant 0 : i32
    %c0_i32_1 = arith.constant 0 : i32
    %c0_i32_2 = arith.constant 0 : i32
    return %c0_i32, %c0_i32_0, %c0_i32_1 : i32, i32, i32
  }
}

</mosaic_0001>

<llo_original>
// kernel: pretrain_model_forward.1
$region0: #{pretrain_model_forward.1}
  #allocation0 [shape = 'u32[]', space=smem, size = 0x4, offset = 0x4, fixed_abs, tag = 'smem constant byte address 0x4 - core index']
  #allocation1 [shape = 'u32[144,128]{1,0:T(1,128)}', space=vmem, size = 0x12000, scoped, tag = 'internal scratch']
  #allocation2 [shape = 'f32[16,32]{1,0:T(8,128)}', space=vmem, size = 0x2000, scoped, tag = 'scratch operand']
  %s0 = inlined_call_operand.vmem [shape: f32[16,32], index: 0, kind: input, shape index: {}]
  %s1 = inlined_call_operand.vmem [shape: f32[8,32], index: 1, kind: input, shape index: {}]
  %s2 = inlined_call_operand.vmem [shape: f32[2,8,8], index: 2, kind: input, shape index: {}]
  %s3 = inlined_call_operand.vmem [shape: f32[2,32,96], index: 3, kind: input, shape index: {}]
  %s4 = inlined_call_operand.vmem [shape: f32[2,1,96], index: 4, kind: input, shape index: {}]
  %s5 = inlined_call_operand.vmem [shape: f32[2,32,32], index: 5, kind: input, shape index: {}]
  %s6 = inlined_call_operand.vmem [shape: f32[2,1,32], index: 6, kind: input, shape index: {}]
  %s7 = inlined_call_operand.vmem [shape: f32[2,1,32], index: 7, kind: input, shape index: {}]
  %s8 = inlined_call_operand.vmem [shape: f32[2,1,32], index: 8, kind: input, shape index: {}]
  %s9 = inlined_call_operand.vmem [shape: f32[2,32,64], index: 9, kind: input, shape index: {}]
  %s10 = inlined_call_operand.vmem [shape: f32[2,1,64], index: 10, kind: input, shape index: {}]
  %s11 = inlined_call_operand.vmem [shape: f32[2,64,32], index: 11, kind: input, shape index: {}]
  %s12 = inlined_call_operand.vmem [shape: f32[2,1,32], index: 12, kind: input, shape index: {}]
  %s13 = inlined_call_operand.vmem [shape: f32[2,1,32], index: 13, kind: input, shape index: {}]
  %s14 = inlined_call_operand.vmem [shape: f32[2,1,32], index: 14, kind: input, shape index: {}]
  %s15 = inlined_call_operand.vmem [shape: f32[32,128], index: 15, kind: input, shape index: {}]
  %s16 = inlined_call_operand.vmem [shape: f32[1,128], index: 16, kind: input, shape index: {}]
  %s17 = inlined_call_operand.vmem [shape: f32[2,8,128], index: 17, kind: output, shape index: {}]
  %s18 = sld [smem:[#allocation0]]
  $region109: #{pretrain_model_forward.1} parent=0
    _
  %s20 = ssub.s32 1, %s18
  %s21 = scalar_select 0, %s20, %s18
  loop: start=0, step=1, limit=4
  $region2: #{pretrain_model_forward.1} parent=0 // loop_pre_header
    _
  $region3: #{pretrain_model_forward.1} parent=0 // loop_header
    %s23 = sphi 0, %s27
    %p24 = scmp.ge.s32.totalorder %s23, 4
    %s31 = sphi 0, %s31
    %s33 = sphi 0, %s31
    %s34 = sphi 0, %s33
    %s48 = sphi 0, %s34
    %s52 = sphi 0, %s52
    %s54 = sphi 0, %s52
    %s55 = sphi 0, %s54
    %s69 = sphi 0, %s55
    %s73 = sphi 0, %s73
    %s75 = sphi 0, %s73
    %s76 = sphi 0, %s75
    %s90 = sphi 0, %s76
    %s96 = sphi 0, %s98
    %s99 = sphi 0, %s96
    %s100 = sphi 0, %s99
    %s116 = sphi 0, %s100
    %s122 = sphi 0, %s124
    %s125 = sphi 0, %s122
    %s126 = sphi 0, %s125
    %s142 = sphi 0, %s126
    %s148 = sphi 0, %s150
    %s151 = sphi 0, %s148
    %s152 = sphi 0, %s151
    %s168 = sphi 0, %s152
    %s174 = sphi 0, %s176
    %s177 = sphi 0, %s174
    %s178 = sphi 0, %s177
    %s194 = sphi 0, %s178
    %s200 = sphi 0, %s202
    %s203 = sphi 0, %s200
    %s204 = sphi 0, %s203
    %s220 = sphi 0, %s204
    %s226 = sphi 0, %s228
    %s229 = sphi 0, %s226
    %s230 = sphi 0, %s229
    %s246 = sphi 0, %s230
    %s252 = sphi 0, %s254
    %s255 = sphi 0, %s252
    %s256 = sphi 0, %s255
    %s272 = sphi 0, %s256
    %s278 = sphi 0, %s280
    %s281 = sphi 0, %s278
    %s282 = sphi 0, %s281
    %s298 = sphi 0, %s282
    %s304 = sphi 0, %s306
    %s307 = sphi 0, %s304
    %s308 = sphi 0, %s307
    %s324 = sphi 0, %s308
    %s330 = sphi 0, %s332
    %s333 = sphi 0, %s330
    %s334 = sphi 0, %s333
    %s350 = sphi 0, %s334
    %s356 = sphi 0, %s358
    %s359 = sphi 0, %s356
    %s360 = sphi 0, %s359
    %s376 = sphi 0, %s360
    %s382 = sphi 0, %s384
    %s385 = sphi 0, %s382
    %s386 = sphi 0, %s385
    %s402 = sphi 0, %s386
    %s406 = sphi 0, %s406
    %s408 = sphi 0, %s406
    %s409 = sphi 0, %s408
    %s423 = sphi 0, %s409
    %s427 = sphi 0, %s427
    %s429 = sphi 0, %s427
    %s430 = sphi 0, %s429
    %s444 = sphi 0, %s430
    %s448 = sphi 0, %s448
    %s450 = sphi 0, %s448
    %s451 = sphi 0, %s450
    %s465 = sphi 0, %s451
  $region4: #{pretrain_model_forward.1} parent=0 // loop_header_branch
    %26 = sbr.rel (%p24) target = $region8
  $region5: #{pretrain_model_forward.1} parent=0 // loop_body
    %s28 = ssub.s32 %s23, 1
    %s29 = ssub.s32 %s23, 2
    %s30 = sadd.s32 %s23, 1
    %s32 = sadd.s32 %s31, 1
    %p35 = scmp.eq.s32.totalorder %s23, 1
    %p36 = scmp.ne.s32.totalorder %s31, %s33
    %p37 = scmp.eq.s32.totalorder %s23, 0
    %p38 = por %p36, %p37
    %p39 = scmp.ne.s32.totalorder %s31, %s33
    %p40 = scmp.eq.s32.totalorder %s28, 1
    %p41 = por %p39, %p40
    %p42 = scmp.ne.s32.totalorder %s33, %s34
    %p43 = scmp.eq.s32.totalorder %s28, 0
    %p44 = por %p42, %p43
    %p45 = scmp.ne.s32.totalorder %s33, %s34
    %p46 = scmp.eq.s32.totalorder %s29, 1
    %p47 = por %p45, %p46
    %p49 = scmp.ne.s32.totalorder %s34, %s48
    %p50 = scmp.eq.s32.totalorder %s29, 0
    %p51 = por %p49, %p50
    %s53 = sadd.s32 %s52, 1
    %p56 = scmp.eq.s32.totalorder %s23, 1
    %p57 = scmp.ne.s32.totalorder %s52, %s54
    %p58 = scmp.eq.s32.totalorder %s23, 0
    %p59 = por %p57, %p58
    %p60 = scmp.ne.s32.totalorder %s52, %s54
    %p61 = scmp.eq.s32.totalorder %s28, 1
    %p62 = por %p60, %p61
    %p63 = scmp.ne.s32.totalorder %s54, %s55
    %p64 = scmp.eq.s32.totalorder %s28, 0
    %p65 = por %p63, %p64
    %p66 = scmp.ne.s32.totalorder %s54, %s55
    %p67 = scmp.eq.s32.totalorder %s29, 1
    %p68 = por %p66, %p67
    %p70 = scmp.ne.s32.totalorder %s55, %s69
    %p71 = scmp.eq.s32.totalorder %s29, 0
    %p72 = por %p70, %p71
    %s74 = sadd.s32 %s73, 1
    %p77 = scmp.eq.s32.totalorder %s23, 1
    %p78 = scmp.ne.s32.totalorder %s73, %s75
    %p79 = scmp.eq.s32.totalorder %s23, 0
    %p80 = por %p78, %p79
    %p81 = scmp.ne.s32.totalorder %s73, %s75
    %p82 = scmp.eq.s32.totalorder %s28, 1
    %p83 = por %p81, %p82
    %p84 = scmp.ne.s32.totalorder %s75, %s76
    %p85 = scmp.eq.s32.totalorder %s28, 0
    %p86 = por %p84, %p85
    %p87 = scmp.ne.s32.totalorder %s75, %s76
    %p88 = scmp.eq.s32.totalorder %s29, 1
    %p89 = por %p87, %p88
    %p91 = scmp.ne.s32.totalorder %s76, %s90
    %p92 = scmp.eq.s32.totalorder %s29, 0
    %p93 = por %p91, %p92
    %s94 = ssub.s32 %s23, %s30
    %p95 = scmp.eq.s32.totalorder %s94, 0
    %s97 = sadd.s32 %s96, 1
    %s98 = scalar_select %p95, %s96, %s97
    %p101 = pneg %p95
    %p102 = scmp.eq.s32.totalorder %s23, 1
    %p103 = por %p101, %p102
    %p104 = scmp.ne.s32.totalorder %s96, %s99
    %p105 = scmp.eq.s32.totalorder %s23, 0
    %p106 = por %p104, %p105
    %p107 = scmp.ne.s32.totalorder %s96, %s99
    %p108 = scmp.eq.s32.totalorder %s28, 1
    %p109 = por %p107, %p108
    %p110 = scmp.ne.s32.totalorder %s99, %s100
    %p111 = scmp.eq.s32.totalorder %s28, 0
    %p112 = por %p110, %p111
    %p113 = scmp.ne.s32.totalorder %s99, %s100
    %p114 = scmp.eq.s32.totalorder %s29, 1
    %p115 = por %p113, %p114
    %p117 = scmp.ne.s32.totalorder %s100, %s116
    %p118 = scmp.eq.s32.totalorder %s29, 0
    %p119 = por %p117, %p118
    %s120 = ssub.s32 %s23, %s30
    %p121 = scmp.eq.s32.totalorder %s120, 0
    %s123 = sadd.s32 %s122, 1
    %s124 = scalar_select %p121, %s122, %s123
    %p127 = pneg %p121
    %p128 = scmp.eq.s32.totalorder %s23, 1
    %p129 = por %p127, %p128
    %p130 = scmp.ne.s32.totalorder %s122, %s125
    %p131 = scmp.eq.s32.totalorder %s23, 0
    %p132 = por %p130, %p131
    %p133 = scmp.ne.s32.totalorder %s122, %s125
    %p134 = scmp.eq.s32.totalorder %s28, 1
    %p135 = por %p133, %p134
    %p136 = scmp.ne.s32.totalorder %s125, %s126
    %p137 = scmp.eq.s32.totalorder %s28, 0
    %p138 = por %p136, %p137
    %p139 = scmp.ne.s32.totalorder %s125, %s126
    %p140 = scmp.eq.s32.totalorder %s29, 1
    %p141 = por %p139, %p140
    %p143 = scmp.ne.s32.totalorder %s126, %s142
    %p144 = scmp.eq.s32.totalorder %s29, 0
    %p145 = por %p143, %p144
    %s146 = ssub.s32 %s23, %s30
    %p147 = scmp.eq.s32.totalorder %s146, 0
    %s149 = sadd.s32 %s148, 1
    %s150 = scalar_select %p147, %s148, %s149
    %p153 = pneg %p147
    %p154 = scmp.eq.s32.totalorder %s23, 1
    %p155 = por %p153, %p154
    %p156 = scmp.ne.s32.totalorder %s148, %s151
    %p157 = scmp.eq.s32.totalorder %s23, 0
    %p158 = por %p156, %p157
    %p159 = scmp.ne.s32.totalorder %s148, %s151
    %p160 = scmp.eq.s32.totalorder %s28, 1
    %p161 = por %p159, %p160
    %p162 = scmp.ne.s32.totalorder %s151, %s152
    %p163 = scmp.eq.s32.totalorder %s28, 0
    %p164 = por %p162, %p163
    %p165 = scmp.ne.s32.totalorder %s151, %s152
    %p166 = scmp.eq.s32.totalorder %s29, 1
    %p167 = por %p165, %p166
    %p169 = scmp.ne.s32.totalorder %s152, %s168
    %p170 = scmp.eq.s32.totalorder %s29, 0
    %p171 = por %p169, %p170
    %s172 = ssub.s32 %s23, %s30
    %p173 = scmp.eq.s32.totalorder %s172, 0
    %s175 = sadd.s32 %s174, 1
    %s176 = scalar_select %p173, %s174, %s175
    %p179 = pneg %p173
    %p180 = scmp.eq.s32.totalorder %s23, 1
    %p181 = por %p179, %p180
    %p182 = scmp.ne.s32.totalorder %s174, %s177
    %p183 = scmp.eq.s32.totalorder %s23, 0
    %p184 = por %p182, %p183
    %p185 = scmp.ne.s32.totalorder %s174, %s177
    %p186 = scmp.eq.s32.totalorder %s28, 1
    %p187 = por %p185, %p186
    %p188 = scmp.ne.s32.totalorder %s177, %s178
    %p189 = scmp.eq.s32.totalorder %s28, 0
    %p190 = por %p188, %p189
    %p191 = scmp.ne.s32.totalorder %s177, %s178
    %p192 = scmp.eq.s32.totalorder %s29, 1
    %p193 = por %p191, %p192
    %p195 = scmp.ne.s32.totalorder %s178, %s194
    %p196 = scmp.eq.s32.totalorder %s29, 0
    %p197 = por %p195, %p196
    %s198 = ssub.s32 %s23, %s30
    %p199 = scmp.eq.s32.totalorder %s198, 0
    %s201 = sadd.s32 %s200, 1
    %s202 = scalar_select %p199, %s200, %s201
    %p205 = pneg %p199
    %p206 = scmp.eq.s32.totalorder %s23, 1
    %p207 = por %p205, %p206
    %p208 = scmp.ne.s32.totalorder %s200, %s203
    %p209 = scmp.eq.s32.totalorder %s23, 0
    %p210 = por %p208, %p209
    %p211 = scmp.ne.s32.totalorder %s200, %s203
    %p212 = scmp.eq.s32.totalorder %s28, 1
    %p213 = por %p211, %p212
    %p214 = scmp.ne.s32.totalorder %s203, %s204
    %p215 = scmp.eq.s32.totalorder %s28, 0
    %p216 = por %p214, %p215
    %p217 = scmp.ne.s32.totalorder %s203, %s204
    %p218 = scmp.eq.s32.totalorder %s29, 1
    %p219 = por %p217, %p218
    %p221 = scmp.ne.s32.totalorder %s204, %s220
    %p222 = scmp.eq.s32.totalorder %s29, 0
    %p223 = por %p221, %p222
    %s224 = ssub.s32 %s23, %s30
    %p225 = scmp.eq.s32.totalorder %s224, 0
    %s227 = sadd.s32 %s226, 1
    %s228 = scalar_select %p225, %s226, %s227
    %p231 = pneg %p225
    %p232 = scmp.eq.s32.totalorder %s23, 1
    %p233 = por %p231, %p232
    %p234 = scmp.ne.s32.totalorder %s226, %s229
    %p235 = scmp.eq.s32.totalorder %s23, 0
    %p236 = por %p234, %p235
    %p237 = scmp.ne.s32.totalorder %s226, %s229
    %p238 = scmp.eq.s32.totalorder %s28, 1
    %p239 = por %p237, %p238
    %p240 = scmp.ne.s32.totalorder %s229, %s230
    %p241 = scmp.eq.s32.totalorder %s28, 0
    %p242 = por %p240, %p241
    %p243 = scmp.ne.s32.totalorder %s229, %s230
    %p244 = scmp.eq.s32.totalorder %s29, 1
    %p245 = por %p243, %p244
    %p247 = scmp.ne.s32.totalorder %s230, %s246
    %p248 = scmp.eq.s32.totalorder %s29, 0
    %p249 = por %p247, %p248
    %s250 = ssub.s32 %s23, %s30
    %p251 = scmp.eq.s32.totalorder %s250, 0
    %s253 = sadd.s32 %s252, 1
    %s254 = scalar_select %p251, %s252, %s253
    %p257 = pneg %p251
    %p258 = scmp.eq.s32.totalorder %s23, 1
    %p259 = por %p257, %p258
    %p260 = scmp.ne.s32.totalorder %s252, %s255
    %p261 = scmp.eq.s32.totalorder %s23, 0
    %p262 = por %p260, %p261
    %p263 = scmp.ne.s32.totalorder %s252, %s255
    %p264 = scmp.eq.s32.totalorder %s28, 1
    %p265 = por %p263, %p264
    %p266 = scmp.ne.s32.totalorder %s255, %s256
    %p267 = scmp.eq.s32.totalorder %s28, 0
    %p268 = por %p266, %p267
    %p269 = scmp.ne.s32.totalorder %s255, %s256
    %p270 = scmp.eq.s32.totalorder %s29, 1
    %p271 = por %p269, %p270
    %p273 = scmp.ne.s32.totalorder %s256, %s272
    %p274 = scmp.eq.s32.totalorder %s29, 0
    %p275 = por %p273, %p274
    %s276 = ssub.s32 %s23, %s30
    %p277 = scmp.eq.s32.totalorder %s276, 0
    %s279 = sadd.s32 %s278, 1
    %s280 = scalar_select %p277, %s278, %s279
    %p283 = pneg %p277
    %p284 = scmp.eq.s32.totalorder %s23, 1
    %p285 = por %p283, %p284
    %p286 = scmp.ne.s32.totalorder %s278, %s281
    %p287 = scmp.eq.s32.totalorder %s23, 0
    %p288 = por %p286, %p287
    %p289 = scmp.ne.s32.totalorder %s278, %s281
    %p290 = scmp.eq.s32.totalorder %s28, 1
    %p291 = por %p289, %p290
    %p292 = scmp.ne.s32.totalorder %s281, %s282
    %p293 = scmp.eq.s32.totalorder %s28, 0
    %p294 = por %p292, %p293
    %p295 = scmp.ne.s32.totalorder %s281, %s282
    %p296 = scmp.eq.s32.totalorder %s29, 1
    %p297 = por %p295, %p296
    %p299 = scmp.ne.s32.totalorder %s282, %s298
    %p300 = scmp.eq.s32.totalorder %s29, 0
    %p301 = por %p299, %p300
    %s302 = ssub.s32 %s23, %s30
    %p303 = scmp.eq.s32.totalorder %s302, 0
    %s305 = sadd.s32 %s304, 1
    %s306 = scalar_select %p303, %s304, %s305
    %p309 = pneg %p303
    %p310 = scmp.eq.s32.totalorder %s23, 1
    %p311 = por %p309, %p310
    %p312 = scmp.ne.s32.totalorder %s304, %s307
    %p313 = scmp.eq.s32.totalorder %s23, 0
    %p314 = por %p312, %p313
    %p315 = scmp.ne.s32.totalorder %s304, %s307
    %p316 = scmp.eq.s32.totalorder %s28, 1
    %p317 = por %p315, %p316
    %p318 = scmp.ne.s32.totalorder %s307, %s308
    %p319 = scmp.eq.s32.totalorder %s28, 0
    %p320 = por %p318, %p319
    %p321 = scmp.ne.s32.totalorder %s307, %s308
    %p322 = scmp.eq.s32.totalorder %s29, 1
    %p323 = por %p321, %p322
    %p325 = scmp.ne.s32.totalorder %s308, %s324
    %p326 = scmp.eq.s32.totalorder %s29, 0
    %p327 = por %p325, %p326
    %s328 = ssub.s32 %s23, %s30
    %p329 = scmp.eq.s32.totalorder %s328, 0
    %s331 = sadd.s32 %s330, 1
    %s332 = scalar_select %p329, %s330, %s331
    %p335 = pneg %p329
    %p336 = scmp.eq.s32.totalorder %s23, 1
    %p337 = por %p335, %p336
    %p338 = scmp.ne.s32.totalorder %s330, %s333
    %p339 = scmp.eq.s32.totalorder %s23, 0
    %p340 = por %p338, %p339
    %p341 = scmp.ne.s32.totalorder %s330, %s333
    %p342 = scmp.eq.s32.totalorder %s28, 1
    %p343 = por %p341, %p342
    %p344 = scmp.ne.s32.totalorder %s333, %s334
    %p345 = scmp.eq.s32.totalorder %s28, 0
    %p346 = por %p344, %p345
    %p347 = scmp.ne.s32.totalorder %s333, %s334
    %p348 = scmp.eq.s32.totalorder %s29, 1
    %p349 = por %p347, %p348
    %p351 = scmp.ne.s32.totalorder %s334, %s350
    %p352 = scmp.eq.s32.totalorder %s29, 0
    %p353 = por %p351, %p352
    %s354 = ssub.s32 %s23, %s30
    %p355 = scmp.eq.s32.totalorder %s354, 0
    %s357 = sadd.s32 %s356, 1
    %s358 = scalar_select %p355, %s356, %s357
    %p361 = pneg %p355
    %p362 = scmp.eq.s32.totalorder %s23, 1
    %p363 = por %p361, %p362
    %p364 = scmp.ne.s32.totalorder %s356, %s359
    %p365 = scmp.eq.s32.totalorder %s23, 0
    %p366 = por %p364, %p365
    %p367 = scmp.ne.s32.totalorder %s356, %s359
    %p368 = scmp.eq.s32.totalorder %s28, 1
    %p369 = por %p367, %p368
    %p370 = scmp.ne.s32.totalorder %s359, %s360
    %p371 = scmp.eq.s32.totalorder %s28, 0
    %p372 = por %p370, %p371
    %p373 = scmp.ne.s32.totalorder %s359, %s360
    %p374 = scmp.eq.s32.totalorder %s29, 1
    %p375 = por %p373, %p374
    %p377 = scmp.ne.s32.totalorder %s360, %s376
    %p378 = scmp.eq.s32.totalorder %s29, 0
    %p379 = por %p377, %p378
    %s380 = ssub.s32 %s23, %s30
    %p381 = scmp.eq.s32.totalorder %s380, 0
    %s383 = sadd.s32 %s382, 1
    %s384 = scalar_select %p381, %s382, %s383
    %p387 = pneg %p381
    %p388 = scmp.eq.s32.totalorder %s23, 1
    %p389 = por %p387, %p388
    %p390 = scmp.ne.s32.totalorder %s382, %s385
    %p391 = scmp.eq.s32.totalorder %s23, 0
    %p392 = por %p390, %p391
    %p393 = scmp.ne.s32.totalorder %s382, %s385
    %p394 = scmp.eq.s32.totalorder %s28, 1
    %p395 = por %p393, %p394
    %p396 = scmp.ne.s32.totalorder %s385, %s386
    %p397 = scmp.eq.s32.totalorder %s28, 0
    %p398 = por %p396, %p397
    %p399 = scmp.ne.s32.totalorder %s385, %s386
    %p400 = scmp.eq.s32.totalorder %s29, 1
    %p401 = por %p399, %p400
    %p403 = scmp.ne.s32.totalorder %s386, %s402
    %p404 = scmp.eq.s32.totalorder %s29, 0
    %p405 = por %p403, %p404
    %s407 = sadd.s32 %s406, 1
    %p410 = scmp.eq.s32.totalorder %s23, 1
    %p411 = scmp.ne.s32.totalorder %s406, %s408
    %p412 = scmp.eq.s32.totalorder %s23, 0
    %p413 = por %p411, %p412
    %p414 = scmp.ne.s32.totalorder %s406, %s408
    %p415 = scmp.eq.s32.totalorder %s28, 1
    %p416 = por %p414, %p415
    %p417 = scmp.ne.s32.totalorder %s408, %s409
    %p418 = scmp.eq.s32.totalorder %s28, 0
    %p419 = por %p417, %p418
    %p420 = scmp.ne.s32.totalorder %s408, %s409
    %p421 = scmp.eq.s32.totalorder %s29, 1
    %p422 = por %p420, %p421
    %p424 = scmp.ne.s32.totalorder %s409, %s423
    %p425 = scmp.eq.s32.totalorder %s29, 0
    %p426 = por %p424, %p425
    %s428 = sadd.s32 %s427, 1
    %p431 = scmp.eq.s32.totalorder %s23, 1
    %p432 = scmp.ne.s32.totalorder %s427, %s429
    %p433 = scmp.eq.s32.totalorder %s23, 0
    %p434 = por %p432, %p433
    %p435 = scmp.ne.s32.totalorder %s427, %s429
    %p436 = scmp.eq.s32.totalorder %s28, 1
    %p437 = por %p435, %p436
    %p438 = scmp.ne.s32.totalorder %s429, %s430
    %p439 = scmp.eq.s32.totalorder %s28, 0
    %p440 = por %p438, %p439
    %p441 = scmp.ne.s32.totalorder %s429, %s430
    %p442 = scmp.eq.s32.totalorder %s29, 1
    %p443 = por %p441, %p442
    %p445 = scmp.ne.s32.totalorder %s430, %s444
    %p446 = scmp.eq.s32.totalorder %s29, 0
    %p447 = por %p445, %p446
    %s449 = sadd.s32 %s448, 1
    %p452 = scmp.eq.s32.totalorder %s23, 1
    %p453 = scmp.ne.s32.totalorder %s448, %s450
    %p454 = scmp.eq.s32.totalorder %s23, 0
    %p455 = por %p453, %p454
    %p456 = scmp.ne.s32.totalorder %s448, %s450
    %p457 = scmp.eq.s32.totalorder %s28, 1
    %p458 = por %p456, %p457
    %p459 = scmp.ne.s32.totalorder %s450, %s451
    %p460 = scmp.eq.s32.totalorder %s28, 0
    %p461 = por %p459, %p460
    %p462 = scmp.ne.s32.totalorder %s450, %s451
    %p463 = scmp.eq.s32.totalorder %s29, 1
    %p464 = por %p462, %p463
    %p466 = scmp.ne.s32.totalorder %s451, %s465
    %p467 = scmp.eq.s32.totalorder %s29, 0
    %p468 = por %p466, %p467
    %p469 = scmp.le.s32.totalorder 1, %s23
    %p470 = scmp.lt.s32.totalorder %s23, 3
    %p471 = pnand %p469, %p470
    %p472 = pneg %p471
    // Predicated region
    $region9: #{pretrain_model_forward.1} parent=5 // pred_check
      _
    $region10: #{pretrain_model_forward.1} parent=5 // pred_check_branch
      %474 = sbr.rel (%p471) target = $region12
    $region11: #{pretrain_model_forward.1} parent=5 // pred_region
      %s475 = ssub.s32 %s23, 1
      // Predicated region
      $region13: #{pretrain_model_forward.1} parent=11 // pred_check
        %p476 = pneg %p44
      $region14: #{pretrain_model_forward.1} parent=11 // pred_check_branch
        %478 = sbr.rel (%p476) target = $region16
      $region15: #{pretrain_model_forward.1} parent=11 // pred_region
        _
      $region16: #{pretrain_model_forward.1} parent=11 // pred_fallthru
        _
      // Predicated region
      $region17: #{pretrain_model_forward.1} parent=11 // pred_check
        %p479 = pneg %p65
      $region18: #{pretrain_model_forward.1} parent=11 // pred_check_branch
        %481 = sbr.rel (%p479) target = $region20
      $region19: #{pretrain_model_forward.1} parent=11 // pred_region
        _
      $region20: #{pretrain_model_forward.1} parent=11 // pred_fallthru
        _
      // Predicated region
      $region21: #{pretrain_model_forward.1} parent=11 // pred_check
        %p482 = pneg %p86
      $region22: #{pretrain_model_forward.1} parent=11 // pred_check_branch
        %484 = sbr.rel (%p482) target = $region24
      $region23: #{pretrain_model_forward.1} parent=11 // pred_region
        _
      $region24: #{pretrain_model_forward.1} parent=11 // pred_fallthru
        _
      // Predicated region
      $region25: #{pretrain_model_forward.1} parent=11 // pred_check
        %p485 = pneg %p419
      $region26: #{pretrain_model_forward.1} parent=11 // pred_check_branch
        %487 = sbr.rel (%p485) target = $region28
      $region27: #{pretrain_model_forward.1} parent=11 // pred_region
        _
      $region28: #{pretrain_model_forward.1} parent=11 // pred_fallthru
        _
      // Predicated region
      $region29: #{pretrain_model_forward.1} parent=11 // pred_check
        %p488 = pneg %p440
      $region30: #{pretrain_model_forward.1} parent=11 // pred_check_branch
        %490 = sbr.rel (%p488) target = $region32
      $region31: #{pretrain_model_forward.1} parent=11 // pred_region
        _
      $region32: #{pretrain_model_forward.1} parent=11 // pred_fallthru
        _
    $region12: #{pretrain_model_forward.1} parent=5 // pred_fallthru
      _
    %p491 = scmp.lt.s32.totalorder %s23, 2
    // Predicated region
    $region33: #{pretrain_model_forward.1} parent=5 // pred_check
      %p492 = pneg %p491
    $region34: #{pretrain_model_forward.1} parent=5 // pred_check_branch
      %494 = sbr.rel (%p492) target = $region36
    $region35: #{pretrain_model_forward.1} parent=5 // pred_region
      // Predicated region
      $region37: #{pretrain_model_forward.1} parent=35 // pred_check
        %p495 = pneg %p106
      $region38: #{pretrain_model_forward.1} parent=35 // pred_check_branch
        %497 = sbr.rel (%p495) target = $region40
      $region39: #{pretrain_model_forward.1} parent=35 // pred_region
        %p498 = scmp.lt.s32.totalorder %s23, 1
        %s499 = scalar_select %p498, %s23, 1
        %s500 = smul.addr %s499, 4
        %s501 = smul.addr %s500, 8
        %s502 = scalar_lea.vmem %s3, %s501
      $region40: #{pretrain_model_forward.1} parent=35 // pred_fallthru
        _
      // Predicated region
      $region41: #{pretrain_model_forward.1} parent=35 // pred_check
        %p503 = pneg %p132
      $region42: #{pretrain_model_forward.1} parent=35 // pred_check_branch
        %505 = sbr.rel (%p503) target = $region44
      $region43: #{pretrain_model_forward.1} parent=35 // pred_region
        %p506 = scmp.lt.s32.totalorder %s23, 1
        %s507 = scalar_select %p506, %s23, 1
        %s508 = scalar_lea.vmem %s4, %s507
      $region44: #{pretrain_model_forward.1} parent=35 // pred_fallthru
        _
      // Predicated region
      $region45: #{pretrain_model_forward.1} parent=35 // pred_check
        %p509 = pneg %p158
      $region46: #{pretrain_model_forward.1} parent=35 // pred_check_branch
        %511 = sbr.rel (%p509) target = $region48
      $region47: #{pretrain_model_forward.1} parent=35 // pred_region
        %p512 = scmp.lt.s32.totalorder %s23, 1
        %s513 = scalar_select %p512, %s23, 1
        %s514 = smul.addr %s513, 4
        %s515 = smul.addr %s514, 8
        %s516 = scalar_lea.vmem %s5, %s515
      $region48: #{pretrain_model_forward.1} parent=35 // pred_fallthru
        _
      // Predicated region
      $region49: #{pretrain_model_forward.1} parent=35 // pred_check
        %p517 = pneg %p184
      $region50: #{pretrain_model_forward.1} parent=35 // pred_check_branch
        %519 = sbr.rel (%p517) target = $region52
      $region51: #{pretrain_model_forward.1} parent=35 // pred_region
        %p520 = scmp.lt.s32.totalorder %s23, 1
        %s521 = scalar_select %p520, %s23, 1
        %s522 = scalar_lea.vmem %s6, %s521
      $region52: #{pretrain_model_forward.1} parent=35 // pred_fallthru
        _
      // Predicated region
      $region53: #{pretrain_model_forward.1} parent=35 // pred_check
        %p523 = pneg %p210
      $region54: #{pretrain_model_forward.1} parent=35 // pred_check_branch
        %525 = sbr.rel (%p523) target = $region56
      $region55: #{pretrain_model_forward.1} parent=35 // pred_region
        %p526 = scmp.lt.s32.totalorder %s23, 1
        %s527 = scalar_select %p526, %s23, 1
        %s528 = scalar_lea.vmem %s7, %s527
      $region56: #{pretrain_model_forward.1} parent=35 // pred_fallthru
        _
      // Predicated region
      $region57: #{pretrain_model_forward.1} parent=35 // pred_check
        %p529 = pneg %p236
      $region58: #{pretrain_model_forward.1} parent=35 // pred_check_branch
        %531 = sbr.rel (%p529) target = $region60
      $region59: #{pretrain_model_forward.1} parent=35 // pred_region
        %p532 = scmp.lt.s32.totalorder %s23, 1
        %s533 = scalar_select %p532, %s23, 1
        %s534 = scalar_lea.vmem %s8, %s533
      $region60: #{pretrain_model_forward.1} parent=35 // pred_fallthru
        _
      // Predicated region
      $region61: #{pretrain_model_forward.1} parent=35 // pred_check
        %p535 = pneg %p262
      $region62: #{pretrain_model_forward.1} parent=35 // pred_check_branch
        %537 = sbr.rel (%p535) target = $region64
      $region63: #{pretrain_model_forward.1} parent=35 // pred_region
        %p538 = scmp.lt.s32.totalorder %s23, 1
        %s539 = scalar_select %p538, %s23, 1
        %s540 = smul.addr %s539, 4
        %s541 = smul.addr %s540, 8
        %s542 = scalar_lea.vmem %s9, %s541
      $region64: #{pretrain_model_forward.1} parent=35 // pred_fallthru
        _
      // Predicated region
      $region65: #{pretrain_model_forward.1} parent=35 // pred_check
        %p543 = pneg %p288
      $region66: #{pretrain_model_forward.1} parent=35 // pred_check_branch
        %545 = sbr.rel (%p543) target = $region68
      $region67: #{pretrain_model_forward.1} parent=35 // pred_region
        %p546 = scmp.lt.s32.totalorder %s23, 1
        %s547 = scalar_select %p546, %s23, 1
        %s548 = scalar_lea.vmem %s10, %s547
      $region68: #{pretrain_model_forward.1} parent=35 // pred_fallthru
        _
      // Predicated region
      $region69: #{pretrain_model_forward.1} parent=35 // pred_check
        %p549 = pneg %p314
      $region70: #{pretrain_model_forward.1} parent=35 // pred_check_branch
        %551 = sbr.rel (%p549) target = $region72
      $region71: #{pretrain_model_forward.1} parent=35 // pred_region
        %p552 = scmp.lt.s32.totalorder %s23, 1
        %s553 = scalar_select %p552, %s23, 1
        %s554 = smul.addr %s553, 8
        %s555 = smul.addr %s554, 8
        %s556 = scalar_lea.vmem %s11, %s555
      $region72: #{pretrain_model_forward.1} parent=35 // pred_fallthru
        _
      // Predicated region
      $region73: #{pretrain_model_forward.1} parent=35 // pred_check
        %p557 = pneg %p340
      $region74: #{pretrain_model_forward.1} parent=35 // pred_check_branch
        %559 = sbr.rel (%p557) target = $region76
      $region75: #{pretrain_model_forward.1} parent=35 // pred_region
        %p560 = scmp.lt.s32.totalorder %s23, 1
        %s561 = scalar_select %p560, %s23, 1
        %s562 = scalar_lea.vmem %s12, %s561
      $region76: #{pretrain_model_forward.1} parent=35 // pred_fallthru
        _
      // Predicated region
      $region77: #{pretrain_model_forward.1} parent=35 // pred_check
        %p563 = pneg %p366
      $region78: #{pretrain_model_forward.1} parent=35 // pred_check_branch
        %565 = sbr.rel (%p563) target = $region80
      $region79: #{pretrain_model_forward.1} parent=35 // pred_region
        %p566 = scmp.lt.s32.totalorder %s23, 1
        %s567 = scalar_select %p566, %s23, 1
        %s568 = scalar_lea.vmem %s13, %s567
      $region80: #{pretrain_model_forward.1} parent=35 // pred_fallthru
        _
      // Predicated region
      $region81: #{pretrain_model_forward.1} parent=35 // pred_check
        %p569 = pneg %p392
      $region82: #{pretrain_model_forward.1} parent=35 // pred_check_branch
        %571 = sbr.rel (%p569) target = $region84
      $region83: #{pretrain_model_forward.1} parent=35 // pred_region
        %p572 = scmp.lt.s32.totalorder %s23, 1
        %s573 = scalar_select %p572, %s23, 1
        %s574 = scalar_lea.vmem %s14, %s573
      $region84: #{pretrain_model_forward.1} parent=35 // pred_fallthru
        _
    $region36: #{pretrain_model_forward.1} parent=5 // pred_fallthru
      _
    %p575 = scmp.le.s32.totalorder 1, %s23
    %p576 = scmp.lt.s32.totalorder %s23, 3
    %p577 = pnand %p575, %p576
    %p578 = pneg %p577
    // Predicated region
    $region85: #{pretrain_model_forward.1} parent=5 // pred_check
      _
    $region86: #{pretrain_model_forward.1} parent=5 // pred_check_branch
      %580 = sbr.rel (%p577) target = $region88
    $region87: #{pretrain_model_forward.1} parent=5 // pred_region
      %s581 = ssub.s32 %s23, 1
      %p582 = pneg %p44
      %p583 = pneg %p41
      %p584 = pneg %p65
      %p585 = pneg %p62
      %p586 = pneg %p86
      %p587 = pneg %p83
      %p588 = scmp.lt.s32.totalorder %s28, 1
      %s589 = scalar_select %p588, %s28, 1
      %s590 = smul.addr %s589, 4
      %s591 = smul.addr %s590, 8
      %s592 = scalar_lea.vmem %s3, %s591
      %p593 = pneg %p112
      %p594 = pneg %p109
      %p595 = scmp.lt.s32.totalorder %s28, 1
      %s596 = scalar_select %p595, %s28, 1
      %s597 = scalar_lea.vmem %s4, %s596
      %p598 = pneg %p138
      %p599 = pneg %p135
      %p600 = scmp.lt.s32.totalorder %s28, 1
      %s601 = scalar_select %p600, %s28, 1
      %s602 = smul.addr %s601, 4
      %s603 = smul.addr %s602, 8
      %s604 = scalar_lea.vmem %s5, %s603
      %p605 = pneg %p164
      %p606 = pneg %p161
      %p607 = scmp.lt.s32.totalorder %s28, 1
      %s608 = scalar_select %p607, %s28, 1
      %s609 = scalar_lea.vmem %s6, %s608
      %p610 = pneg %p190
      %p611 = pneg %p187
      %p612 = scmp.lt.s32.totalorder %s28, 1
      %s613 = scalar_select %p612, %s28, 1
      %s614 = scalar_lea.vmem %s7, %s613
      %p615 = pneg %p216
      %p616 = pneg %p213
      %p617 = scmp.lt.s32.totalorder %s28, 1
      %s618 = scalar_select %p617, %s28, 1
      %s619 = scalar_lea.vmem %s8, %s618
      %p620 = pneg %p242
      %p621 = pneg %p239
      %p622 = scmp.lt.s32.totalorder %s28, 1
      %s623 = scalar_select %p622, %s28, 1
      %s624 = smul.addr %s623, 4
      %s625 = smul.addr %s624, 8
      %s626 = scalar_lea.vmem %s9, %s625
      %p627 = pneg %p268
      %p628 = pneg %p265
      %p629 = scmp.lt.s32.totalorder %s28, 1
      %s630 = scalar_select %p629, %s28, 1
      %s631 = scalar_lea.vmem %s10, %s630
      %p632 = pneg %p294
      %p633 = pneg %p291
      %p634 = scmp.lt.s32.totalorder %s28, 1
      %s635 = scalar_select %p634, %s28, 1
      %s636 = smul.addr %s635, 8
      %s637 = smul.addr %s636, 8
      %s638 = scalar_lea.vmem %s11, %s637
      %p639 = pneg %p320
      %p640 = pneg %p317
      %p641 = scmp.lt.s32.totalorder %s28, 1
      %s642 = scalar_select %p641, %s28, 1
      %s643 = scalar_lea.vmem %s12, %s642
      %p644 = pneg %p346
      %p645 = pneg %p343
      %p646 = scmp.lt.s32.totalorder %s28, 1
      %s647 = scalar_select %p646, %s28, 1
      %s648 = scalar_lea.vmem %s13, %s647
      %p649 = pneg %p372
      %p650 = pneg %p369
      %p651 = scmp.lt.s32.totalorder %s28, 1
      %s652 = scalar_select %p651, %s28, 1
      %s653 = scalar_lea.vmem %s14, %s652
      %p654 = pneg %p398
      %p655 = pneg %p395
      %p656 = pneg %p419
      %p657 = pneg %p416
      %p658 = pneg %p440
      %p659 = pneg %p437
      %p660 = pneg %p461
      %p661 = pneg %p458
      %p662 = scmp.lt.s32.totalorder %s28, 1
      %s663 = scalar_select %p662, %s28, 1
      %s664 = smul.addr %s663, 4
      %s665 = smul.addr %s664, 8
      %s666 = scalar_lea.vmem %s3, %s665
      %p667 = scmp.lt.s32.totalorder %s28, 1
      %s668 = scalar_select %p667, %s28, 1
      %s669 = scalar_lea.vmem %s4, %s668
      %p670 = scmp.lt.s32.totalorder %s28, 1
      %s671 = scalar_select %p670, %s28, 1
      %s672 = smul.addr %s671, 4
      %s673 = smul.addr %s672, 8
      %s674 = scalar_lea.vmem %s5, %s673
      %p675 = scmp.lt.s32.totalorder %s28, 1
      %s676 = scalar_select %p675, %s28, 1
      %s677 = scalar_lea.vmem %s6, %s676
      %p678 = scmp.lt.s32.totalorder %s28, 1
      %s679 = scalar_select %p678, %s28, 1
      %s680 = scalar_lea.vmem %s7, %s679
      %p681 = scmp.lt.s32.totalorder %s28, 1
      %s682 = scalar_select %p681, %s28, 1
      %s683 = scalar_lea.vmem %s8, %s682
      %p684 = scmp.lt.s32.totalorder %s28, 1
      %s685 = scalar_select %p684, %s28, 1
      %s686 = smul.addr %s685, 4
      %s687 = smul.addr %s686, 8
      %s688 = scalar_lea.vmem %s9, %s687
      %p689 = scmp.lt.s32.totalorder %s28, 1
      %s690 = scalar_select %p689, %s28, 1
      %s691 = scalar_lea.vmem %s10, %s690
      %p692 = scmp.lt.s32.totalorder %s28, 1
      %s693 = scalar_select %p692, %s28, 1
      %s694 = smul.addr %s693, 8
      %s695 = smul.addr %s694, 8
      %s696 = scalar_lea.vmem %s11, %s695
      %p697 = scmp.lt.s32.totalorder %s28, 1
      %s698 = scalar_select %p697, %s28, 1
      %s699 = scalar_lea.vmem %s12, %s698
      %p700 = scmp.lt.s32.totalorder %s28, 1
      %s701 = scalar_select %p700, %s28, 1
      %s702 = scalar_lea.vmem %s13, %s701
      %p703 = scmp.lt.s32.totalorder %s28, 1
      %s704 = scalar_select %p703, %s28, 1
      %s705 = scalar_lea.vmem %s14, %s704
      %p706 = scmp.eq.s32.totalorder %s28, 0
      // Predicated region
      $region89: #{pretrain_model_forward.1} parent=87 // pred_check
        %p707 = pneg %p706
      $region90: #{pretrain_model_forward.1} parent=87 // pred_check_branch
        %709 = sbr.rel (%p707) target = $region92
      $region91: #{pretrain_model_forward.1} parent=87 // pred_region
        %v710 = vld [vmem:[%s0] sm:$0xff]
        %v711 = vmul.f32 %v710, 5.656854
        %v712 = vld [vmem:[%s1] sm:$0xff]
        %v713 = vadd.f32 %v711, %v712
        %vm714 = vcmask 261120
        %715 = vst.msk [vmem:[#allocation2] sm:$0xff] %vm714, %v713
        %v716 = vld [vmem:[%s0 + $0x8] sm:$0xff]
        %v717 = vmul.f32 %v716, 5.656854
        %v718 = vld [vmem:[%s1] sm:$0xff]
        %v719 = vadd.f32 %v717, %v718
        %720 = vst.msk [vmem:[#allocation2 + $0x8] sm:$0xff] %vm714, %v719
      $region92: #{pretrain_model_forward.1} parent=87 // pred_fallthru
        _
      %v721 = vld [vmem:[#allocation2] sm:$0xff]
      %v722 = vld [vmem:[#allocation2 + $0x8] sm:$0xff]
      %v723 = vld [vmem:[%s666] sm:$0xff]
      %v724 = vld [vmem:[%s666 + $0x8] sm:$0xff]
      %v725 = vld [vmem:[%s666 + $0x10] sm:$0xff]
      %v726 = vld [vmem:[%s666 + $0x18] sm:$0xff]
      %v727 = vld [vmem:[%s669] sm:$0x1]
      %v729 = vlaneseq
      %v730 = vshrl.u32 %v729, 7
      %v731 = vsub.s32 0, %v730
      %v732 = vrot.slane %v727, %v731
      %vm734 = vcmask 261120
      %v736 = vsel %vm734, %v721, 0
      %v739 = vsel %vm734, %v722, 0
      %741 = vmatprep.subr.mxu0 0.0
      %742 = vmatpush1.msra.mxu0 0.0
      %743 = vmatprep.subr.mxu0 0.0
      %744 = vmatpush1.msra.mxu0 0.0
      %745 = vmatprep.subr.mxu0 0.0
      %746 = vmatpush1.msra.mxu0 0.0
      %747 = vmatprep.subr.mxu0 0.0
      %748 = vmatpush1.msra.mxu0 0.0
      %749 = vmatprep.subr.mxu0 0.0
      %750 = vmatpush1.msra.mxu0 0.0
      %751 = vmatprep.subr.mxu0 0.0
      %752 = vmatpush1.msra.mxu0 0.0
      %753 = vmatprep.subr.mxu0 0.0
      %754 = vmatpush1.msra.mxu0 0.0
      %755 = vmatprep.subr.mxu0 0.0
      %756 = vmatpush1.msra.mxu0 0.0
      %757 = vmatprep.subr.mxu0 0.0
      %758 = vmatpush1.msra.mxu0 0.0
      %759 = vmatprep.subr.mxu0 0.0
      %760 = vmatpush1.msra.mxu0 0.0
      %761 = vmatprep.subr.mxu0 0.0
      %762 = vmatpush1.msra.mxu0 0.0
      %763 = vmatprep.subr.mxu0 0.0
      %764 = vmatpush1.msra.mxu0 0.0
      %765 = vmatprep.subr.mxu0 0.0
      %766 = vmatpush1.msra.mxu0 %v726
      %767 = vmatprep.subr.mxu0 0.0
      %768 = vmatpush1.msra.mxu0 %v725
      %769 = vmatprep.subr.mxu0 0.0
      %770 = vmatpush1.msra.mxu0 %v724
      %771 = vmatprep.subr.mxu0 0.0
      %772 = vmatpush1.msra.mxu0 %v723
      %773 = vmatprep.subr.mxu0 0.0
      %774 = vmatpush2.msra.mxu0 0.0
      %775 = vmatprep.subr.mxu0 0.0
      %776 = vmatpush2.msra.mxu0 0.0
      %777 = vmatprep.subr.mxu0 0.0
      %778 = vmatpush2.msra.mxu0 0.0
      %779 = vmatprep.subr.mxu0 0.0
      %780 = vmatpush2.msra.mxu0 0.0
      %781 = vmatprep.subr.mxu0 0.0
      %782 = vmatpush2.msra.mxu0 0.0
      %783 = vmatprep.subr.mxu0 0.0
      %784 = vmatpush2.msra.mxu0 0.0
      %785 = vmatprep.subr.mxu0 0.0
      %786 = vmatpush2.msra.mxu0 0.0
      %787 = vmatprep.subr.mxu0 0.0
      %788 = vmatpush2.msra.mxu0 0.0
      %789 = vmatprep.subr.mxu0 0.0
      %790 = vmatpush2.msra.mxu0 0.0
      %791 = vmatprep.subr.mxu0 0.0
      %792 = vmatpush2.msra.mxu0 0.0
      %793 = vmatprep.subr.mxu0 0.0
      %794 = vmatpush2.msra.mxu0 0.0
      %795 = vmatprep.subr.mxu0 0.0
      %796 = vmatpush2.msra.mxu0 0.0
      %797 = vmatprep.subr.mxu0 0.0
      %798 = vmatpush2.msra.mxu0 0.0
      %799 = vmatprep.subr.mxu0 0.0
      %800 = vmatpush2.msra.mxu0 0.0
      %801 = vmatprep.subr.mxu0 0.0
      %802 = vmatpush2.msra.mxu0 0.0
      %803 = vmatprep.subr.mxu0 0.0
      %804 = vmatpush2.msra.mxu0 0.0
      %805 = vmatprep.mubr.f32.mxu0 0.0
      %806 = vmatmul.mubr.f32.gmra.mxu0 %v736
      %v807 = vpop.f32.mrf.mxu0
      %v808 = vadd.f32 %v732, %v807
      %v809 = vpop.f32.mrf.mxu0
      %810 = vmatprep.mubr.f32.mxu0 0.0
      %811 = vmatmul.mubr.f32.gmra.mxu0 %v739
      %v812 = vpop.f32.mrf.mxu0
      %v813 = vadd.f32 %v732, %v812
      %v814 = vpop.f32.mrf.mxu0
      %815 = vdwg.mxu0
      %v816 = vld [vmem:[%s674] sm:$0xff]
      %v817 = vld [vmem:[%s674 + $0x8] sm:$0xff]
      %v818 = vld [vmem:[%s674 + $0x10] sm:$0xff]
      %v819 = vld [vmem:[%s674 + $0x18] sm:$0xff]
      %v820 = vld [vmem:[%s2] sm:$0xff]
      %822 = vrot.lane.b32.xlu0 %v808, 96
      %v823 = vpop.permute.xlu0 %822
      %vm824 = vcmask 64512
      %v825 = vsel %vm824, %v808, 0
      %v827 = vsel %vm824, %v823, 0
      %829 = vmatprep.subr.mxu0 0.0
      %830 = vmatpush1.xpose.msra.mxu0 0.0
      %831 = vmatprep.subr.mxu0 0.0
      %832 = vmatpush1.xpose.msra.mxu0 0.0
      %833 = vmatprep.subr.mxu0 0.0
      %834 = vmatpush1.xpose.msra.mxu0 0.0
      %835 = vmatprep.subr.mxu0 0.0
      %836 = vmatpush1.xpose.msra.mxu0 0.0
      %837 = vmatprep.subr.mxu0 0.0
      %838 = vmatpush1.xpose.msra.mxu0 0.0
      %839 = vmatprep.subr.mxu0 0.0
      %840 = vmatpush1.xpose.msra.mxu0 0.0
      %841 = vmatprep.subr.mxu0 0.0
      %842 = vmatpush1.xpose.msra.mxu0 0.0
      %843 = vmatprep.subr.mxu0 0.0
      %844 = vmatpush1.xpose.msra.mxu0 0.0
      %845 = vmatprep.subr.mxu0 0.0
      %846 = vmatpush1.xpose.msra.mxu0 0.0
      %847 = vmatprep.subr.mxu0 0.0
      %848 = vmatpush1.xpose.msra.mxu0 0.0
      %849 = vmatprep.subr.mxu0 0.0
      %850 = vmatpush1.xpose.msra.mxu0 0.0
      %851 = vmatprep.subr.mxu0 0.0
      %852 = vmatpush1.xpose.msra.mxu0 0.0
      %853 = vmatprep.subr.mxu0 0.0
      %854 = vmatpush1.xpose.msra.mxu0 0.0
      %855 = vmatprep.subr.mxu0 0.0
      %856 = vmatpush1.xpose.msra.mxu0 0.0
      %857 = vmatprep.subr.mxu0 0.0
      %858 = vmatpush1.xpose.msra.mxu0 0.0
      %859 = vmatprep.subr.mxu0 0.0
      %860 = vmatpush1.xpose.msra.mxu0 %v827
      %861 = vmatprep.subr.mxu0 0.0
      %862 = vmatpush2.xpose.msra.mxu0 0.0
      %863 = vmatprep.subr.mxu0 0.0
      %864 = vmatpush2.xpose.msra.mxu0 0.0
      %865 = vmatprep.subr.mxu0 0.0
      %866 = vmatpush2.xpose.msra.mxu0 0.0
      %867 = vmatprep.subr.mxu0 0.0
      %868 = vmatpush2.xpose.msra.mxu0 0.0
      %869 = vmatprep.subr.mxu0 0.0
      %870 = vmatpush2.xpose.msra.mxu0 0.0
      %871 = vmatprep.subr.mxu0 0.0
      %872 = vmatpush2.xpose.msra.mxu0 0.0
      %873 = vmatprep.subr.mxu0 0.0
      %874 = vmatpush2.xpose.msra.mxu0 0.0
      %875 = vmatprep.subr.mxu0 0.0
      %876 = vmatpush2.xpose.msra.mxu0 0.0
      %877 = vmatprep.subr.mxu0 0.0
      %878 = vmatpush2.xpose.msra.mxu0 0.0
      %879 = vmatprep.subr.mxu0 0.0
      %880 = vmatpush2.xpose.msra.mxu0 0.0
      %881 = vmatprep.subr.mxu0 0.0
      %882 = vmatpush2.xpose.msra.mxu0 0.0
      %883 = vmatprep.subr.mxu0 0.0
      %884 = vmatpush2.xpose.msra.mxu0 0.0
      %885 = vmatprep.subr.mxu0 0.0
      %886 = vmatpush2.xpose.msra.mxu0 0.0
      %887 = vmatprep.subr.mxu0 0.0
      %888 = vmatpush2.xpose.msra.mxu0 0.0
      %889 = vmatprep.subr.mxu0 0.0
      %890 = vmatpush2.xpose.msra.mxu0 0.0
      %891 = vmatprep.subr.mxu0 0.0
      %892 = vmatpush2.xpose.msra.mxu0 0.0
      %893 = vmatprep.mubr.f32.mxu0 0.0
      %894 = vmatmul.mubr.f32.gmra.mxu0 %v825
      %v895 = vpop.f32.mrf.mxu0
      %v896 = vadd.f32 0.0, %v895
      %v897 = vpop.f32.mrf.mxu0
      %898 = vdwg.mxu0
      %v899 = vmul.f32 %v896, 0.35355338
      %v900 = vadd.f32 %v899, %v820
      %v901 = vsel %vm824, %v900, -inf
      %902 = vmax.xlane.f32.xlu0 %v901
      %v903 = vpop.xlane.xlu0 %902
      %v904 = vsub.f32 %v900, %v903
      %v905 = vmul.f32 %v904, 1.442695
      %v906 = vpow.pop %v905
      %v907 = vsel %vm824, %v906, 0.0
      %908 = vadd.xlane.f32.xlu0 %v907
      %v909 = vpop.xlane.xlu0 %908
      %v910 = vrcp.pop %v909
      %v911 = vmul.f32 %v906, %v910
      %912 = vrot.lane.b32.xlu0 %v808, 64
      %v913 = vpop.permute.xlu0 %912
      %v916 = vsel %vm824, %v911, 0
      %918 = vmatprep.subr.mxu0 0.0
      %919 = vmatpush1.msra.mxu0 0.0
      %920 = vmatprep.subr.mxu0 0.0
      %921 = vmatpush1.msra.mxu0 0.0
      %922 = vmatprep.subr.mxu0 0.0
      %923 = vmatpush1.msra.mxu0 0.0
      %924 = vmatprep.subr.mxu0 0.0
      %925 = vmatpush1.msra.mxu0 0.0
      %926 = vmatprep.subr.mxu0 0.0
      %927 = vmatpush1.msra.mxu0 0.0
      %928 = vmatprep.subr.mxu0 0.0
      %929 = vmatpush1.msra.mxu0 0.0
      %930 = vmatprep.subr.mxu0 0.0
      %931 = vmatpush1.msra.mxu0 0.0
      %932 = vmatprep.subr.mxu0 0.0
      %933 = vmatpush1.msra.mxu0 0.0
      %934 = vmatprep.subr.mxu0 0.0
      %935 = vmatpush1.msra.mxu0 0.0
      %936 = vmatprep.subr.mxu0 0.0
      %937 = vmatpush1.msra.mxu0 0.0
      %938 = vmatprep.subr.mxu0 0.0
      %939 = vmatpush1.msra.mxu0 0.0
      %940 = vmatprep.subr.mxu0 0.0
      %941 = vmatpush1.msra.mxu0 0.0
      %942 = vmatprep.subr.mxu0 0.0
      %943 = vmatpush1.msra.mxu0 0.0
      %944 = vmatprep.subr.mxu0 0.0
      %945 = vmatpush1.msra.mxu0 0.0
      %946 = vmatprep.subr.mxu0 0.0
      %947 = vmatpush1.msra.mxu0 0.0
      %948 = vmatprep.subr.mxu0 0.0
      %949 = vmatpush1.msra.mxu0 %v913
      %950 = vmatprep.subr.mxu0 0.0
      %951 = vmatpush2.msra.mxu0 0.0
      %952 = vmatprep.subr.mxu0 0.0
      %953 = vmatpush2.msra.mxu0 0.0
      %954 = vmatprep.subr.mxu0 0.0
      %955 = vmatpush2.msra.mxu0 0.0
      %956 = vmatprep.subr.mxu0 0.0
      %957 = vmatpush2.msra.mxu0 0.0
      %958 = vmatprep.subr.mxu0 0.0
      %959 = vmatpush2.msra.mxu0 0.0
      %960 = vmatprep.subr.mxu0 0.0
      %961 = vmatpush2.msra.mxu0 0.0
      %962 = vmatprep.subr.mxu0 0.0
      %963 = vmatpush2.msra.mxu0 0.0
      %964 = vmatprep.subr.mxu0 0.0
      %965 = vmatpush2.msra.mxu0 0.0
      %966 = vmatprep.subr.mxu0 0.0
      %967 = vmatpush2.msra.mxu0 0.0
      %968 = vmatprep.subr.mxu0 0.0
      %969 = vmatpush2.msra.mxu0 0.0
      %970 = vmatprep.subr.mxu0 0.0
      %971 = vmatpush2.msra.mxu0 0.0
      %972 = vmatprep.subr.mxu0 0.0
      %973 = vmatpush2.msra.mxu0 0.0
      %974 = vmatprep.subr.mxu0 0.0
      %975 = vmatpush2.msra.mxu0 0.0
      %976 = vmatprep.subr.mxu0 0.0
      %977 = vmatpush2.msra.mxu0 0.0
      %978 = vmatprep.subr.mxu0 0.0
      %979 = vmatpush2.msra.mxu0 0.0
      %980 = vmatprep.subr.mxu0 0.0
      %981 = vmatpush2.msra.mxu0 0.0
      %982 = vmatprep.mubr.f32.mxu0 0.0
      %983 = vmatmul.mubr.f32.gmra.mxu0 %v916
      %v984 = vpop.f32.mrf.mxu0
      %v985 = vadd.f32 0.0, %v984
      %v986 = vpop.f32.mrf.mxu0
      %987 = vdwg.mxu0
      %988 = vrot.lane.b32.xlu0 %v808, 120
      %v989 = vpop.permute.xlu0 %988
      %990 = vrot.lane.b32.xlu0 %v808, 88
      %v991 = vpop.permute.xlu0 %990
      %v992 = vsel %vm824, %v989, 0
      %v994 = vsel %vm824, %v991, 0
      %996 = vmatprep.subr.mxu0 0.0
      %997 = vmatpush1.xpose.msra.mxu0 0.0
      %998 = vmatprep.subr.mxu0 0.0
      %999 = vmatpush1.xpose.msra.mxu0 0.0
      %1000 = vmatprep.subr.mxu0 0.0
      %1001 = vmatpush1.xpose.msra.mxu0 0.0
      %1002 = vmatprep.subr.mxu0 0.0
      %1003 = vmatpush1.xpose.msra.mxu0 0.0
      %1004 = vmatprep.subr.mxu0 0.0
      %1005 = vmatpush1.xpose.msra.mxu0 0.0
      %1006 = vmatprep.subr.mxu0 0.0
      %1007 = vmatpush1.xpose.msra.mxu0 0.0
      %1008 = vmatprep.subr.mxu0 0.0
      %1009 = vmatpush1.xpose.msra.mxu0 0.0
      %1010 = vmatprep.subr.mxu0 0.0
      %1011 = vmatpush1.xpose.msra.mxu0 0.0
      %1012 = vmatprep.subr.mxu0 0.0
      %1013 = vmatpush1.xpose.msra.mxu0 0.0
      %1014 = vmatprep.subr.mxu0 0.0
      %1015 = vmatpush1.xpose.msra.mxu0 0.0
      %1016 = vmatprep.subr.mxu0 0.0
      %1017 = vmatpush1.xpose.msra.mxu0 0.0
      %1018 = vmatprep.subr.mxu0 0.0
      %1019 = vmatpush1.xpose.msra.mxu0 0.0
      %1020 = vmatprep.subr.mxu0 0.0
      %1021 = vmatpush1.xpose.msra.mxu0 0.0
      %1022 = vmatprep.subr.mxu0 0.0
      %1023 = vmatpush1.xpose.msra.mxu0 0.0
      %1024 = vmatprep.subr.mxu0 0.0
      %1025 = vmatpush1.xpose.msra.mxu0 0.0
      %1026 = vmatprep.subr.mxu0 0.0
      %1027 = vmatpush1.xpose.msra.mxu0 %v994
      %1028 = vmatprep.subr.mxu0 0.0
      %1029 = vmatpush2.xpose.msra.mxu0 0.0
      %1030 = vmatprep.subr.mxu0 0.0
      %1031 = vmatpush2.xpose.msra.mxu0 0.0
      %1032 = vmatprep.subr.mxu0 0.0
      %1033 = vmatpush2.xpose.msra.mxu0 0.0
      %1034 = vmatprep.subr.mxu0 0.0
      %1035 = vmatpush2.xpose.msra.mxu0 0.0
      %1036 = vmatprep.subr.mxu0 0.0
      %1037 = vmatpush2.xpose.msra.mxu0 0.0
      %1038 = vmatprep.subr.mxu0 0.0
      %1039 = vmatpush2.xpose.msra.mxu0 0.0
      %1040 = vmatprep.subr.mxu0 0.0
      %1041 = vmatpush2.xpose.msra.mxu0 0.0
      %1042 = vmatprep.subr.mxu0 0.0
      %1043 = vmatpush2.xpose.msra.mxu0 0.0
      %1044 = vmatprep.subr.mxu0 0.0
      %1045 = vmatpush2.xpose.msra.mxu0 0.0
      %1046 = vmatprep.subr.mxu0 0.0
      %1047 = vmatpush2.xpose.msra.mxu0 0.0
      %1048 = vmatprep.subr.mxu0 0.0
      %1049 = vmatpush2.xpose.msra.mxu0 0.0
      %1050 = vmatprep.subr.mxu0 0.0
      %1051 = vmatpush2.xpose.msra.mxu0 0.0
      %1052 = vmatprep.subr.mxu0 0.0
      %1053 = vmatpush2.xpose.msra.mxu0 0.0
      %1054 = vmatprep.subr.mxu0 0.0
      %1055 = vmatpush2.xpose.msra.mxu0 0.0
      %1056 = vmatprep.subr.mxu0 0.0
      %1057 = vmatpush2.xpose.msra.mxu0 0.0
      %1058 = vmatprep.subr.mxu0 0.0
      %1059 = vmatpush2.xpose.msra.mxu0 0.0
      %1060 = vmatprep.mubr.f32.mxu0 0.0
      %1061 = vmatmul.mubr.f32.gmra.mxu0 %v992
      %v1062 = vpop.f32.mrf.mxu0
      %v1063 = vadd.f32 0.0, %v1062
      %v1064 = vpop.f32.mrf.mxu0
      %1065 = vdwg.mxu0
      %v1066 = vmul.f32 %v1063, 0.35355338
      %v1067 = vadd.f32 %v1066, %v820
      %v1068 = vsel %vm824, %v1067, -inf
      %1069 = vmax.xlane.f32.xlu0 %v1068
      %v1070 = vpop.xlane.xlu0 %1069
      %v1071 = vsub.f32 %v1067, %v1070
      %v1072 = vmul.f32 %v1071, 1.442695
      %v1073 = vpow.pop %v1072
      %v1074 = vsel %vm824, %v1073, 0.0
      %1075 = vadd.xlane.f32.xlu0 %v1074
      %v1076 = vpop.xlane.xlu0 %1075
      %v1077 = vrcp.pop %v1076
      %v1078 = vmul.f32 %v1073, %v1077
      %1079 = vrot.lane.b32.xlu0 %v808, 56
      %v1080 = vpop.permute.xlu0 %1079
      %v1083 = vsel %vm824, %v1078, 0
      %1085 = vmatprep.subr.mxu0 0.0
      %1086 = vmatpush1.msra.mxu0 0.0
      %1087 = vmatprep.subr.mxu0 0.0
      %1088 = vmatpush1.msra.mxu0 0.0
      %1089 = vmatprep.subr.mxu0 0.0
      %1090 = vmatpush1.msra.mxu0 0.0
      %1091 = vmatprep.subr.mxu0 0.0
      %1092 = vmatpush1.msra.mxu0 0.0
      %1093 = vmatprep.subr.mxu0 0.0
      %1094 = vmatpush1.msra.mxu0 0.0
      %1095 = vmatprep.subr.mxu0 0.0
      %1096 = vmatpush1.msra.mxu0 0.0
      %1097 = vmatprep.subr.mxu0 0.0
      %1098 = vmatpush1.msra.mxu0 0.0
      %1099 = vmatprep.subr.mxu0 0.0
      %1100 = vmatpush1.msra.mxu0 0.0
      %1101 = vmatprep.subr.mxu0 0.0
      %1102 = vmatpush1.msra.mxu0 0.0
      %1103 = vmatprep.subr.mxu0 0.0
      %1104 = vmatpush1.msra.mxu0 0.0
      %1105 = vmatprep.subr.mxu0 0.0
      %1106 = vmatpush1.msra.mxu0 0.0
      %1107 = vmatprep.subr.mxu0 0.0
      %1108 = vmatpush1.msra.mxu0 0.0
      %1109 = vmatprep.subr.mxu0 0.0
      %1110 = vmatpush1.msra.mxu0 0.0
      %1111 = vmatprep.subr.mxu0 0.0
      %1112 = vmatpush1.msra.mxu0 0.0
      %1113 = vmatprep.subr.mxu0 0.0
      %1114 = vmatpush1.msra.mxu0 0.0
      %1115 = vmatprep.subr.mxu0 0.0
      %1116 = vmatpush1.msra.mxu0 %v1080
      %1117 = vmatprep.subr.mxu0 0.0
      %1118 = vmatpush2.msra.mxu0 0.0
      %1119 = vmatprep.subr.mxu0 0.0
      %1120 = vmatpush2.msra.mxu0 0.0
      %1121 = vmatprep.subr.mxu0 0.0
      %1122 = vmatpush2.msra.mxu0 0.0
      %1123 = vmatprep.subr.mxu0 0.0
      %1124 = vmatpush2.msra.mxu0 0.0
      %1125 = vmatprep.subr.mxu0 0.0
      %1126 = vmatpush2.msra.mxu0 0.0
      %1127 = vmatprep.subr.mxu0 0.0
      %1128 = vmatpush2.msra.mxu0 0.0
      %1129 = vmatprep.subr.mxu0 0.0
      %1130 = vmatpush2.msra.mxu0 0.0
      %1131 = vmatprep.subr.mxu0 0.0
      %1132 = vmatpush2.msra.mxu0 0.0
      %1133 = vmatprep.subr.mxu0 0.0
      %1134 = vmatpush2.msra.mxu0 0.0
      %1135 = vmatprep.subr.mxu0 0.0
      %1136 = vmatpush2.msra.mxu0 0.0
      %1137 = vmatprep.subr.mxu0 0.0
      %1138 = vmatpush2.msra.mxu0 0.0
      %1139 = vmatprep.subr.mxu0 0.0
      %1140 = vmatpush2.msra.mxu0 0.0
      %1141 = vmatprep.subr.mxu0 0.0
      %1142 = vmatpush2.msra.mxu0 0.0
      %1143 = vmatprep.subr.mxu0 0.0
      %1144 = vmatpush2.msra.mxu0 0.0
      %1145 = vmatprep.subr.mxu0 0.0
      %1146 = vmatpush2.msra.mxu0 0.0
      %1147 = vmatprep.subr.mxu0 0.0
      %1148 = vmatpush2.msra.mxu0 0.0
      %1149 = vmatprep.mubr.f32.mxu0 0.0
      %1150 = vmatmul.mubr.f32.gmra.mxu0 %v1083
      %v1151 = vpop.f32.mrf.mxu0
      %v1152 = vadd.f32 0.0, %v1151
      %v1153 = vpop.f32.mrf.mxu0
      %1154 = vdwg.mxu0
      %v1156 = vsel %vm824, %v1152, 0
      %1158 = vmatprep.subr.mxu0 0.0
      %1159 = vmatpush1.msra.mxu0 0.0
      %1160 = vmatprep.subr.mxu0 0.0
      %1161 = vmatpush1.msra.mxu0 0.0
      %1162 = vmatprep.subr.mxu0 0.0
      %1163 = vmatpush1.msra.mxu0 0.0
      %1164 = vmatprep.subr.mxu0 0.0
      %1165 = vmatpush1.msra.mxu0 0.0
      %1166 = vmatprep.subr.mxu0 0.0
      %1167 = vmatpush1.msra.mxu0 0.0
      %1168 = vmatprep.subr.mxu0 0.0
      %1169 = vmatpush1.msra.mxu0 0.0
      %1170 = vmatprep.subr.mxu0 0.0
      %1171 = vmatpush1.msra.mxu0 0.0
      %1172 = vmatprep.subr.mxu0 0.0
      %1173 = vmatpush1.msra.mxu0 0.0
      %1174 = vmatprep.subr.mxu0 0.0
      %1175 = vmatpush1.msra.mxu0 0.0
      %1176 = vmatprep.subr.mxu0 0.0
      %1177 = vmatpush1.msra.mxu0 0.0
      %1178 = vmatprep.subr.mxu0 0.0
      %1179 = vmatpush1.msra.mxu0 0.0
      %1180 = vmatprep.subr.mxu0 0.0
      %1181 = vmatpush1.msra.mxu0 0.0
      %1182 = vmatprep.subr.mxu0 0.0
      %1183 = vmatpush1.msra.mxu0 0.0
      %1184 = vmatprep.subr.mxu0 0.0
      %1185 = vmatpush1.msra.mxu0 0.0
      %1186 = vmatprep.subr.mxu0 0.0
      %1187 = vmatpush1.msra.mxu0 0.0
      %1188 = vmatprep.subr.mxu0 0.0
      %1189 = vmatpush1.msra.mxu0 %v817
      %1190 = vmatprep.subr.mxu0 0.0
      %1191 = vmatpush2.msra.mxu0 0.0
      %1192 = vmatprep.subr.mxu0 0.0
      %1193 = vmatpush2.msra.mxu0 0.0
      %1194 = vmatprep.subr.mxu0 0.0
      %1195 = vmatpush2.msra.mxu0 0.0
      %1196 = vmatprep.subr.mxu0 0.0
      %1197 = vmatpush2.msra.mxu0 0.0
      %1198 = vmatprep.subr.mxu0 0.0
      %1199 = vmatpush2.msra.mxu0 0.0
      %1200 = vmatprep.subr.mxu0 0.0
      %1201 = vmatpush2.msra.mxu0 0.0
      %1202 = vmatprep.subr.mxu0 0.0
      %1203 = vmatpush2.msra.mxu0 0.0
      %1204 = vmatprep.subr.mxu0 0.0
      %1205 = vmatpush2.msra.mxu0 0.0
      %1206 = vmatprep.subr.mxu0 0.0
      %1207 = vmatpush2.msra.mxu0 0.0
      %1208 = vmatprep.subr.mxu0 0.0
      %1209 = vmatpush2.msra.mxu0 0.0
      %1210 = vmatprep.subr.mxu0 0.0
      %1211 = vmatpush2.msra.mxu0 0.0
      %1212 = vmatprep.subr.mxu0 0.0
      %1213 = vmatpush2.msra.mxu0 0.0
      %1214 = vmatprep.subr.mxu0 0.0
      %1215 = vmatpush2.msra.mxu0 0.0
      %1216 = vmatprep.subr.mxu0 0.0
      %1217 = vmatpush2.msra.mxu0 0.0
      %1218 = vmatprep.subr.mxu0 0.0
      %1219 = vmatpush2.msra.mxu0 0.0
      %1220 = vmatprep.subr.mxu0 0.0
      %1221 = vmatpush2.msra.mxu0 0.0
      %1222 = vmatprep.mubr.f32.mxu0 0.0
      %1223 = vmatmul.mubr.f32.gmra.mxu0 %v1156
      %v1224 = vpop.f32.mrf.mxu0
      %v1225 = vadd.f32 0.0, %v1224
      %v1226 = vpop.f32.mrf.mxu0
      %1227 = vdwg.mxu0
      %v1229 = vsel %vm824, %v985, 0
      %1231 = vmatprep.subr.mxu0 0.0
      %1232 = vmatpush1.msra.mxu0 0.0
      %1233 = vmatprep.subr.mxu0 0.0
      %1234 = vmatpush1.msra.mxu0 0.0
      %1235 = vmatprep.subr.mxu0 0.0
      %1236 = vmatpush1.msra.mxu0 0.0
      %1237 = vmatprep.subr.mxu0 0.0
      %1238 = vmatpush1.msra.mxu0 0.0
      %1239 = vmatprep.subr.mxu0 0.0
      %1240 = vmatpush1.msra.mxu0 0.0
      %1241 = vmatprep.subr.mxu0 0.0
      %1242 = vmatpush1.msra.mxu0 0.0
      %1243 = vmatprep.subr.mxu0 0.0
      %1244 = vmatpush1.msra.mxu0 0.0
      %1245 = vmatprep.subr.mxu0 0.0
      %1246 = vmatpush1.msra.mxu0 0.0
      %1247 = vmatprep.subr.mxu0 0.0
      %1248 = vmatpush1.msra.mxu0 0.0
      %1249 = vmatprep.subr.mxu0 0.0
      %1250 = vmatpush1.msra.mxu0 0.0
      %1251 = vmatprep.subr.mxu0 0.0
      %1252 = vmatpush1.msra.mxu0 0.0
      %1253 = vmatprep.subr.mxu0 0.0
      %1254 = vmatpush1.msra.mxu0 0.0
      %1255 = vmatprep.subr.mxu0 0.0
      %1256 = vmatpush1.msra.mxu0 0.0
      %1257 = vmatprep.subr.mxu0 0.0
      %1258 = vmatpush1.msra.mxu0 0.0
      %1259 = vmatprep.subr.mxu0 0.0
      %1260 = vmatpush1.msra.mxu0 0.0
      %1261 = vmatprep.subr.mxu0 0.0
      %1262 = vmatpush1.msra.mxu0 %v816
      %1263 = vmatprep.subr.mxu0 0.0
      %1264 = vmatpush2.msra.mxu0 0.0
      %1265 = vmatprep.subr.mxu0 0.0
      %1266 = vmatpush2.msra.mxu0 0.0
      %1267 = vmatprep.subr.mxu0 0.0
      %1268 = vmatpush2.msra.mxu0 0.0
      %1269 = vmatprep.subr.mxu0 0.0
      %1270 = vmatpush2.msra.mxu0 0.0
      %1271 = vmatprep.subr.mxu0 0.0
      %1272 = vmatpush2.msra.mxu0 0.0
      %1273 = vmatprep.subr.mxu0 0.0
      %1274 = vmatpush2.msra.mxu0 0.0
      %1275 = vmatprep.subr.mxu0 0.0
      %1276 = vmatpush2.msra.mxu0 0.0
      %1277 = vmatprep.subr.mxu0 0.0
      %1278 = vmatpush2.msra.mxu0 0.0
      %1279 = vmatprep.subr.mxu0 0.0
      %1280 = vmatpush2.msra.mxu0 0.0
      %1281 = vmatprep.subr.mxu0 0.0
      %1282 = vmatpush2.msra.mxu0 0.0
      %1283 = vmatprep.subr.mxu0 0.0
      %1284 = vmatpush2.msra.mxu0 0.0
      %1285 = vmatprep.subr.mxu0 0.0
      %1286 = vmatpush2.msra.mxu0 0.0
      %1287 = vmatprep.subr.mxu0 0.0
      %1288 = vmatpush2.msra.mxu0 0.0
      %1289 = vmatprep.subr.mxu0 0.0
      %1290 = vmatpush2.msra.mxu0 0.0
      %1291 = vmatprep.subr.mxu0 0.0
      %1292 = vmatpush2.msra.mxu0 0.0
      %1293 = vmatprep.subr.mxu0 0.0
      %1294 = vmatpush2.msra.mxu0 0.0
      %1295 = vmatprep.mubr.f32.mxu0 0.0
      %1296 = vmatmul.mubr.f32.gmra.mxu0 %v1229
      %v1297 = vpop.f32.mrf.mxu0
      %v1298 = vadd.f32 %v1225, %v1297
      %v1299 = vpop.f32.mrf.mxu0
      %1300 = vdwg.mxu0
      %1301 = vrot.lane.b32.xlu0 %v808, 112
      %v1302 = vpop.permute.xlu0 %1301
      %1303 = vrot.lane.b32.xlu0 %v808, 80
      %v1304 = vpop.permute.xlu0 %1303
      %v1305 = vsel %vm824, %v1302, 0
      %v1307 = vsel %vm824, %v1304, 0
      %1309 = vmatprep.subr.mxu0 0.0
      %1310 = vmatpush1.xpose.msra.mxu0 0.0
      %1311 = vmatprep.subr.mxu0 0.0
      %1312 = vmatpush1.xpose.msra.mxu0 0.0
      %1313 = vmatprep.subr.mxu0 0.0
      %1314 = vmatpush1.xpose.msra.mxu0 0.0
      %1315 = vmatprep.subr.mxu0 0.0
      %1316 = vmatpush1.xpose.msra.mxu0 0.0
      %1317 = vmatprep.subr.mxu0 0.0
      %1318 = vmatpush1.xpose.msra.mxu0 0.0
      %1319 = vmatprep.subr.mxu0 0.0
      %1320 = vmatpush1.xpose.msra.mxu0 0.0
      %1321 = vmatprep.subr.mxu0 0.0
      %1322 = vmatpush1.xpose.msra.mxu0 0.0
      %1323 = vmatprep.subr.mxu0 0.0
      %1324 = vmatpush1.xpose.msra.mxu0 0.0
      %1325 = vmatprep.subr.mxu0 0.0
      %1326 = vmatpush1.xpose.msra.mxu0 0.0
      %1327 = vmatprep.subr.mxu0 0.0
      %1328 = vmatpush1.xpose.msra.mxu0 0.0
      %1329 = vmatprep.subr.mxu0 0.0
      %1330 = vmatpush1.xpose.msra.mxu0 0.0
      %1331 = vmatprep.subr.mxu0 0.0
      %1332 = vmatpush1.xpose.msra.mxu0 0.0
      %1333 = vmatprep.subr.mxu0 0.0
      %1334 = vmatpush1.xpose.msra.mxu0 0.0
      %1335 = vmatprep.subr.mxu0 0.0
      %1336 = vmatpush1.xpose.msra.mxu0 0.0
      %1337 = vmatprep.subr.mxu0 0.0
      %1338 = vmatpush1.xpose.msra.mxu0 0.0
      %1339 = vmatprep.subr.mxu0 0.0
      %1340 = vmatpush1.xpose.msra.mxu0 %v1307
      %1341 = vmatprep.subr.mxu0 0.0
      %1342 = vmatpush2.xpose.msra.mxu0 0.0
      %1343 = vmatprep.subr.mxu0 0.0
      %1344 = vmatpush2.xpose.msra.mxu0 0.0
      %1345 = vmatprep.subr.mxu0 0.0
      %1346 = vmatpush2.xpose.msra.mxu0 0.0
      %1347 = vmatprep.subr.mxu0 0.0
      %1348 = vmatpush2.xpose.msra.mxu0 0.0
      %1349 = vmatprep.subr.mxu0 0.0
      %1350 = vmatpush2.xpose.msra.mxu0 0.0
      %1351 = vmatprep.subr.mxu0 0.0
      %1352 = vmatpush2.xpose.msra.mxu0 0.0
      %1353 = vmatprep.subr.mxu0 0.0
      %1354 = vmatpush2.xpose.msra.mxu0 0.0
      %1355 = vmatprep.subr.mxu0 0.0
      %1356 = vmatpush2.xpose.msra.mxu0 0.0
      %1357 = vmatprep.subr.mxu0 0.0
      %1358 = vmatpush2.xpose.msra.mxu0 0.0
      %1359 = vmatprep.subr.mxu0 0.0
      %1360 = vmatpush2.xpose.msra.mxu0 0.0
      %1361 = vmatprep.subr.mxu0 0.0
      %1362 = vmatpush2.xpose.msra.mxu0 0.0
      %1363 = vmatprep.subr.mxu0 0.0
      %1364 = vmatpush2.xpose.msra.mxu0 0.0
      %1365 = vmatprep.subr.mxu0 0.0
      %1366 = vmatpush2.xpose.msra.mxu0 0.0
      %1367 = vmatprep.subr.mxu0 0.0
      %1368 = vmatpush2.xpose.msra.mxu0 0.0
      %1369 = vmatprep.subr.mxu0 0.0
      %1370 = vmatpush2.xpose.msra.mxu0 0.0
      %1371 = vmatprep.subr.mxu0 0.0
      %1372 = vmatpush2.xpose.msra.mxu0 0.0
      %1373 = vmatprep.mubr.f32.mxu0 0.0
      %1374 = vmatmul.mubr.f32.gmra.mxu0 %v1305
      %v1375 = vpop.f32.mrf.mxu0
      %v1376 = vadd.f32 0.0, %v1375
      %v1377 = vpop.f32.mrf.mxu0
      %1378 = vdwg.mxu0
      %v1379 = vmul.f32 %v1376, 0.35355338
      %v1380 = vadd.f32 %v1379, %v820
      %v1381 = vsel %vm824, %v1380, -inf
      %1382 = vmax.xlane.f32.xlu0 %v1381
      %v1383 = vpop.xlane.xlu0 %1382
      %v1384 = vsub.f32 %v1380, %v1383
      %v1385 = vmul.f32 %v1384, 1.442695
      %v1386 = vpow.pop %v1385
      %v1387 = vsel %vm824, %v1386, 0.0
      %1388 = vadd.xlane.f32.xlu0 %v1387
      %v1389 = vpop.xlane.xlu0 %1388
      %v1390 = vrcp.pop %v1389
      %v1391 = vmul.f32 %v1386, %v1390
      %1392 = vrot.lane.b32.xlu0 %v808, 48
      %v1393 = vpop.permute.xlu0 %1392
      %v1396 = vsel %vm824, %v1391, 0
      %1398 = vmatprep.subr.mxu0 0.0
      %1399 = vmatpush1.msra.mxu0 0.0
      %1400 = vmatprep.subr.mxu0 0.0
      %1401 = vmatpush1.msra.mxu0 0.0
      %1402 = vmatprep.subr.mxu0 0.0
      %1403 = vmatpush1.msra.mxu0 0.0
      %1404 = vmatprep.subr.mxu0 0.0
      %1405 = vmatpush1.msra.mxu0 0.0
      %1406 = vmatprep.subr.mxu0 0.0
      %1407 = vmatpush1.msra.mxu0 0.0
      %1408 = vmatprep.subr.mxu0 0.0
      %1409 = vmatpush1.msra.mxu0 0.0
      %1410 = vmatprep.subr.mxu0 0.0
      %1411 = vmatpush1.msra.mxu0 0.0
      %1412 = vmatprep.subr.mxu0 0.0
      %1413 = vmatpush1.msra.mxu0 0.0
      %1414 = vmatprep.subr.mxu0 0.0
      %1415 = vmatpush1.msra.mxu0 0.0
      %1416 = vmatprep.subr.mxu0 0.0
      %1417 = vmatpush1.msra.mxu0 0.0
      %1418 = vmatprep.subr.mxu0 0.0
      %1419 = vmatpush1.msra.mxu0 0.0
      %1420 = vmatprep.subr.mxu0 0.0
      %1421 = vmatpush1.msra.mxu0 0.0
      %1422 = vmatprep.subr.mxu0 0.0
      %1423 = vmatpush1.msra.mxu0 0.0
      %1424 = vmatprep.subr.mxu0 0.0
      %1425 = vmatpush1.msra.mxu0 0.0
      %1426 = vmatprep.subr.mxu0 0.0
      %1427 = vmatpush1.msra.mxu0 0.0
      %1428 = vmatprep.subr.mxu0 0.0
      %1429 = vmatpush1.msra.mxu0 %v1393
      %1430 = vmatprep.subr.mxu0 0.0
      %1431 = vmatpush2.msra.mxu0 0.0
      %1432 = vmatprep.subr.mxu0 0.0
      %1433 = vmatpush2.msra.mxu0 0.0
      %1434 = vmatprep.subr.mxu0 0.0
      %1435 = vmatpush2.msra.mxu0 0.0
      %1436 = vmatprep.subr.mxu0 0.0
      %1437 = vmatpush2.msra.mxu0 0.0
      %1438 = vmatprep.subr.mxu0 0.0
      %1439 = vmatpush2.msra.mxu0 0.0
      %1440 = vmatprep.subr.mxu0 0.0
      %1441 = vmatpush2.msra.mxu0 0.0
      %1442 = vmatprep.subr.mxu0 0.0
      %1443 = vmatpush2.msra.mxu0 0.0
      %1444 = vmatprep.subr.mxu0 0.0
      %1445 = vmatpush2.msra.mxu0 0.0
      %1446 = vmatprep.subr.mxu0 0.0
      %1447 = vmatpush2.msra.mxu0 0.0
      %1448 = vmatprep.subr.mxu0 0.0
      %1449 = vmatpush2.msra.mxu0 0.0
      %1450 = vmatprep.subr.mxu0 0.0
      %1451 = vmatpush2.msra.mxu0 0.0
      %1452 = vmatprep.subr.mxu0 0.0
      %1453 = vmatpush2.msra.mxu0 0.0
      %1454 = vmatprep.subr.mxu0 0.0
      %1455 = vmatpush2.msra.mxu0 0.0
      %1456 = vmatprep.subr.mxu0 0.0
      %1457 = vmatpush2.msra.mxu0 0.0
      %1458 = vmatprep.subr.mxu0 0.0
      %1459 = vmatpush2.msra.mxu0 0.0
      %1460 = vmatprep.subr.mxu0 0.0
      %1461 = vmatpush2.msra.mxu0 0.0
      %1462 = vmatprep.mubr.f32.mxu0 0.0
      %1463 = vmatmul.mubr.f32.gmra.mxu0 %v1396
      %v1464 = vpop.f32.mrf.mxu0
      %v1465 = vadd.f32 0.0, %v1464
      %v1466 = vpop.f32.mrf.mxu0
      %1467 = vdwg.mxu0
      %v1469 = vsel %vm824, %v1465, 0
      %1471 = vmatprep.subr.mxu0 0.0
      %1472 = vmatpush1.msra.mxu0 0.0
      %1473 = vmatprep.subr.mxu0 0.0
      %1474 = vmatpush1.msra.mxu0 0.0
      %1475 = vmatprep.subr.mxu0 0.0
      %1476 = vmatpush1.msra.mxu0 0.0
      %1477 = vmatprep.subr.mxu0 0.0
      %1478 = vmatpush1.msra.mxu0 0.0
      %1479 = vmatprep.subr.mxu0 0.0
      %1480 = vmatpush1.msra.mxu0 0.0
      %1481 = vmatprep.subr.mxu0 0.0
      %1482 = vmatpush1.msra.mxu0 0.0
      %1483 = vmatprep.subr.mxu0 0.0
      %1484 = vmatpush1.msra.mxu0 0.0
      %1485 = vmatprep.subr.mxu0 0.0
      %1486 = vmatpush1.msra.mxu0 0.0
      %1487 = vmatprep.subr.mxu0 0.0
      %1488 = vmatpush1.msra.mxu0 0.0
      %1489 = vmatprep.subr.mxu0 0.0
      %1490 = vmatpush1.msra.mxu0 0.0
      %1491 = vmatprep.subr.mxu0 0.0
      %1492 = vmatpush1.msra.mxu0 0.0
      %1493 = vmatprep.subr.mxu0 0.0
      %1494 = vmatpush1.msra.mxu0 0.0
      %1495 = vmatprep.subr.mxu0 0.0
      %1496 = vmatpush1.msra.mxu0 0.0
      %1497 = vmatprep.subr.mxu0 0.0
      %1498 = vmatpush1.msra.mxu0 0.0
      %1499 = vmatprep.subr.mxu0 0.0
      %1500 = vmatpush1.msra.mxu0 0.0
      %1501 = vmatprep.subr.mxu0 0.0
      %1502 = vmatpush1.msra.mxu0 %v818
      %1503 = vmatprep.subr.mxu0 0.0
      %1504 = vmatpush2.msra.mxu0 0.0
      %1505 = vmatprep.subr.mxu0 0.0
      %1506 = vmatpush2.msra.mxu0 0.0
      %1507 = vmatprep.subr.mxu0 0.0
      %1508 = vmatpush2.msra.mxu0 0.0
      %1509 = vmatprep.subr.mxu0 0.0
      %1510 = vmatpush2.msra.mxu0 0.0
      %1511 = vmatprep.subr.mxu0 0.0
      %1512 = vmatpush2.msra.mxu0 0.0
      %1513 = vmatprep.subr.mxu0 0.0
      %1514 = vmatpush2.msra.mxu0 0.0
      %1515 = vmatprep.subr.mxu0 0.0
      %1516 = vmatpush2.msra.mxu0 0.0
      %1517 = vmatprep.subr.mxu0 0.0
      %1518 = vmatpush2.msra.mxu0 0.0
      %1519 = vmatprep.subr.mxu0 0.0
      %1520 = vmatpush2.msra.mxu0 0.0
      %1521 = vmatprep.subr.mxu0 0.0
      %1522 = vmatpush2.msra.mxu0 0.0
      %1523 = vmatprep.subr.mxu0 0.0
      %1524 = vmatpush2.msra.mxu0 0.0
      %1525 = vmatprep.subr.mxu0 0.0
      %1526 = vmatpush2.msra.mxu0 0.0
      %1527 = vmatprep.subr.mxu0 0.0
      %1528 = vmatpush2.msra.mxu0 0.0
      %1529 = vmatprep.subr.mxu0 0.0
      %1530 = vmatpush2.msra.mxu0 0.0
      %1531 = vmatprep.subr.mxu0 0.0
      %1532 = vmatpush2.msra.mxu0 0.0
      %1533 = vmatprep.subr.mxu0 0.0
      %1534 = vmatpush2.msra.mxu0 0.0
      %1535 = vmatprep.mubr.f32.mxu0 0.0
      %1536 = vmatmul.mubr.f32.gmra.mxu0 %v1469
      %v1537 = vpop.f32.mrf.mxu0
      %v1538 = vadd.f32 0.0, %v1537
      %v1539 = vpop.f32.mrf.mxu0
      %1540 = vdwg.mxu0
      %v1541 = vadd.f32 %v1298, %v1538
      %1542 = vrot.lane.b32.xlu0 %v808, 104
      %v1543 = vpop.permute.xlu0 %1542
      %1544 = vrot.lane.b32.xlu0 %v808, 72
      %v1545 = vpop.permute.xlu0 %1544
      %v1546 = vsel %vm824, %v1543, 0
      %v1548 = vsel %vm824, %v1545, 0
      %1550 = vmatprep.subr.mxu0 0.0
      %1551 = vmatpush1.xpose.msra.mxu0 0.0
      %1552 = vmatprep.subr.mxu0 0.0
      %1553 = vmatpush1.xpose.msra.mxu0 0.0
      %1554 = vmatprep.subr.mxu0 0.0
      %1555 = vmatpush1.xpose.msra.mxu0 0.0
      %1556 = vmatprep.subr.mxu0 0.0
      %1557 = vmatpush1.xpose.msra.mxu0 0.0
      %1558 = vmatprep.subr.mxu0 0.0
      %1559 = vmatpush1.xpose.msra.mxu0 0.0
      %1560 = vmatprep.subr.mxu0 0.0
      %1561 = vmatpush1.xpose.msra.mxu0 0.0
      %1562 = vmatprep.subr.mxu0 0.0
      %1563 = vmatpush1.xpose.msra.mxu0 0.0
      %1564 = vmatprep.subr.mxu0 0.0
      %1565 = vmatpush1.xpose.msra.mxu0 0.0
      %1566 = vmatprep.subr.mxu0 0.0
      %1567 = vmatpush1.xpose.msra.mxu0 0.0
      %1568 = vmatprep.subr.mxu0 0.0
      %1569 = vmatpush1.xpose.msra.mxu0 0.0
      %1570 = vmatprep.subr.mxu0 0.0
      %1571 = vmatpush1.xpose.msra.mxu0 0.0
      %1572 = vmatprep.subr.mxu0 0.0
      %1573 = vmatpush1.xpose.msra.mxu0 0.0
      %1574 = vmatprep.subr.mxu0 0.0
      %1575 = vmatpush1.xpose.msra.mxu0 0.0
      %1576 = vmatprep.subr.mxu0 0.0
      %1577 = vmatpush1.xpose.msra.mxu0 0.0
      %1578 = vmatprep.subr.mxu0 0.0
      %1579 = vmatpush1.xpose.msra.mxu0 0.0
      %1580 = vmatprep.subr.mxu0 0.0
      %1581 = vmatpush1.xpose.msra.mxu0 %v1548
      %1582 = vmatprep.subr.mxu0 0.0
      %1583 = vmatpush2.xpose.msra.mxu0 0.0
      %1584 = vmatprep.subr.mxu0 0.0
      %1585 = vmatpush2.xpose.msra.mxu0 0.0
      %1586 = vmatprep.subr.mxu0 0.0
      %1587 = vmatpush2.xpose.msra.mxu0 0.0
      %1588 = vmatprep.subr.mxu0 0.0
      %1589 = vmatpush2.xpose.msra.mxu0 0.0
      %1590 = vmatprep.subr.mxu0 0.0
      %1591 = vmatpush2.xpose.msra.mxu0 0.0
      %1592 = vmatprep.subr.mxu0 0.0
      %1593 = vmatpush2.xpose.msra.mxu0 0.0
      %1594 = vmatprep.subr.mxu0 0.0
      %1595 = vmatpush2.xpose.msra.mxu0 0.0
      %1596 = vmatprep.subr.mxu0 0.0
      %1597 = vmatpush2.xpose.msra.mxu0 0.0
      %1598 = vmatprep.subr.mxu0 0.0
      %1599 = vmatpush2.xpose.msra.mxu0 0.0
      %1600 = vmatprep.subr.mxu0 0.0
      %1601 = vmatpush2.xpose.msra.mxu0 0.0
      %1602 = vmatprep.subr.mxu0 0.0
      %1603 = vmatpush2.xpose.msra.mxu0 0.0
      %1604 = vmatprep.subr.mxu0 0.0
      %1605 = vmatpush2.xpose.msra.mxu0 0.0
      %1606 = vmatprep.subr.mxu0 0.0
      %1607 = vmatpush2.xpose.msra.mxu0 0.0
      %1608 = vmatprep.subr.mxu0 0.0
      %1609 = vmatpush2.xpose.msra.mxu0 0.0
      %1610 = vmatprep.subr.mxu0 0.0
      %1611 = vmatpush2.xpose.msra.mxu0 0.0
      %1612 = vmatprep.subr.mxu0 0.0
      %1613 = vmatpush2.xpose.msra.mxu0 0.0
      %1614 = vmatprep.mubr.f32.mxu0 0.0
      %1615 = vmatmul.mubr.f32.gmra.mxu0 %v1546
      %v1616 = vpop.f32.mrf.mxu0
      %v1617 = vadd.f32 0.0, %v1616
      %v1618 = vpop.f32.mrf.mxu0
      %1619 = vdwg.mxu0
      %v1620 = vmul.f32 %v1617, 0.35355338
      %v1621 = vadd.f32 %v1620, %v820
      %v1622 = vsel %vm824, %v1621, -inf
      %1623 = vmax.xlane.f32.xlu0 %v1622
      %v1624 = vpop.xlane.xlu0 %1623
      %v1625 = vsub.f32 %v1621, %v1624
      %v1626 = vmul.f32 %v1625, 1.442695
      %v1627 = vpow.pop %v1626
      %v1628 = vsel %vm824, %v1627, 0.0
      %1629 = vadd.xlane.f32.xlu0 %v1628
      %v1630 = vpop.xlane.xlu0 %1629
      %v1631 = vrcp.pop %v1630
      %v1632 = vmul.f32 %v1627, %v1631
      %1633 = vrot.lane.b32.xlu0 %v808, 40
      %v1634 = vpop.permute.xlu0 %1633
      %v1637 = vsel %vm824, %v1632, 0
      %1639 = vmatprep.subr.mxu0 0.0
      %1640 = vmatpush1.msra.mxu0 0.0
      %1641 = vmatprep.subr.mxu0 0.0
      %1642 = vmatpush1.msra.mxu0 0.0
      %1643 = vmatprep.subr.mxu0 0.0
      %1644 = vmatpush1.msra.mxu0 0.0
      %1645 = vmatprep.subr.mxu0 0.0
      %1646 = vmatpush1.msra.mxu0 0.0
      %1647 = vmatprep.subr.mxu0 0.0
      %1648 = vmatpush1.msra.mxu0 0.0
      %1649 = vmatprep.subr.mxu0 0.0
      %1650 = vmatpush1.msra.mxu0 0.0
      %1651 = vmatprep.subr.mxu0 0.0
      %1652 = vmatpush1.msra.mxu0 0.0
      %1653 = vmatprep.subr.mxu0 0.0
      %1654 = vmatpush1.msra.mxu0 0.0
      %1655 = vmatprep.subr.mxu0 0.0
      %1656 = vmatpush1.msra.mxu0 0.0
      %1657 = vmatprep.subr.mxu0 0.0
      %1658 = vmatpush1.msra.mxu0 0.0
      %1659 = vmatprep.subr.mxu0 0.0
      %1660 = vmatpush1.msra.mxu0 0.0
      %1661 = vmatprep.subr.mxu0 0.0
      %1662 = vmatpush1.msra.mxu0 0.0
      %1663 = vmatprep.subr.mxu0 0.0
      %1664 = vmatpush1.msra.mxu0 0.0
      %1665 = vmatprep.subr.mxu0 0.0
      %1666 = vmatpush1.msra.mxu0 0.0
      %1667 = vmatprep.subr.mxu0 0.0
      %1668 = vmatpush1.msra.mxu0 0.0
      %1669 = vmatprep.subr.mxu0 0.0
      %1670 = vmatpush1.msra.mxu0 %v1634
      %1671 = vmatprep.subr.mxu0 0.0
      %1672 = vmatpush2.msra.mxu0 0.0
      %1673 = vmatprep.subr.mxu0 0.0
      %1674 = vmatpush2.msra.mxu0 0.0
      %1675 = vmatprep.subr.mxu0 0.0
      %1676 = vmatpush2.msra.mxu0 0.0
      %1677 = vmatprep.subr.mxu0 0.0
      %1678 = vmatpush2.msra.mxu0 0.0
      %1679 = vmatprep.subr.mxu0 0.0
      %1680 = vmatpush2.msra.mxu0 0.0
      %1681 = vmatprep.subr.mxu0 0.0
      %1682 = vmatpush2.msra.mxu0 0.0
      %1683 = vmatprep.subr.mxu0 0.0
      %1684 = vmatpush2.msra.mxu0 0.0
      %1685 = vmatprep.subr.mxu0 0.0
      %1686 = vmatpush2.msra.mxu0 0.0
      %1687 = vmatprep.subr.mxu0 0.0
      %1688 = vmatpush2.msra.mxu0 0.0
      %1689 = vmatprep.subr.mxu0 0.0
      %1690 = vmatpush2.msra.mxu0 0.0
      %1691 = vmatprep.subr.mxu0 0.0
      %1692 = vmatpush2.msra.mxu0 0.0
      %1693 = vmatprep.subr.mxu0 0.0
      %1694 = vmatpush2.msra.mxu0 0.0
      %1695 = vmatprep.subr.mxu0 0.0
      %1696 = vmatpush2.msra.mxu0 0.0
      %1697 = vmatprep.subr.mxu0 0.0
      %1698 = vmatpush2.msra.mxu0 0.0
      %1699 = vmatprep.subr.mxu0 0.0
      %1700 = vmatpush2.msra.mxu0 0.0
      %1701 = vmatprep.subr.mxu0 0.0
      %1702 = vmatpush2.msra.mxu0 0.0
      %1703 = vmatprep.mubr.f32.mxu0 0.0
      %1704 = vmatmul.mubr.f32.gmra.mxu0 %v1637
      %v1705 = vpop.f32.mrf.mxu0
      %v1706 = vadd.f32 0.0, %v1705
      %v1707 = vpop.f32.mrf.mxu0
      %1708 = vdwg.mxu0
      %v1710 = vsel %vm824, %v1706, 0
      %1712 = vmatprep.subr.mxu0 0.0
      %1713 = vmatpush1.msra.mxu0 0.0
      %1714 = vmatprep.subr.mxu0 0.0
      %1715 = vmatpush1.msra.mxu0 0.0
      %1716 = vmatprep.subr.mxu0 0.0
      %1717 = vmatpush1.msra.mxu0 0.0
      %1718 = vmatprep.subr.mxu0 0.0
      %1719 = vmatpush1.msra.mxu0 0.0
      %1720 = vmatprep.subr.mxu0 0.0
      %1721 = vmatpush1.msra.mxu0 0.0
      %1722 = vmatprep.subr.mxu0 0.0
      %1723 = vmatpush1.msra.mxu0 0.0
      %1724 = vmatprep.subr.mxu0 0.0
      %1725 = vmatpush1.msra.mxu0 0.0
      %1726 = vmatprep.subr.mxu0 0.0
      %1727 = vmatpush1.msra.mxu0 0.0
      %1728 = vmatprep.subr.mxu0 0.0
      %1729 = vmatpush1.msra.mxu0 0.0
      %1730 = vmatprep.subr.mxu0 0.0
      %1731 = vmatpush1.msra.mxu0 0.0
      %1732 = vmatprep.subr.mxu0 0.0
      %1733 = vmatpush1.msra.mxu0 0.0
      %1734 = vmatprep.subr.mxu0 0.0
      %1735 = vmatpush1.msra.mxu0 0.0
      %1736 = vmatprep.subr.mxu0 0.0
      %1737 = vmatpush1.msra.mxu0 0.0
      %1738 = vmatprep.subr.mxu0 0.0
      %1739 = vmatpush1.msra.mxu0 0.0
      %1740 = vmatprep.subr.mxu0 0.0
      %1741 = vmatpush1.msra.mxu0 0.0
      %1742 = vmatprep.subr.mxu0 0.0
      %1743 = vmatpush1.msra.mxu0 %v819
      %1744 = vmatprep.subr.mxu0 0.0
      %1745 = vmatpush2.msra.mxu0 0.0
      %1746 = vmatprep.subr.mxu0 0.0
      %1747 = vmatpush2.msra.mxu0 0.0
      %1748 = vmatprep.subr.mxu0 0.0
      %1749 = vmatpush2.msra.mxu0 0.0
      %1750 = vmatprep.subr.mxu0 0.0
      %1751 = vmatpush2.msra.mxu0 0.0
      %1752 = vmatprep.subr.mxu0 0.0
      %1753 = vmatpush2.msra.mxu0 0.0
      %1754 = vmatprep.subr.mxu0 0.0
      %1755 = vmatpush2.msra.mxu0 0.0
      %1756 = vmatprep.subr.mxu0 0.0
      %1757 = vmatpush2.msra.mxu0 0.0
      %1758 = vmatprep.subr.mxu0 0.0
      %1759 = vmatpush2.msra.mxu0 0.0
      %1760 = vmatprep.subr.mxu0 0.0
      %1761 = vmatpush2.msra.mxu0 0.0
      %1762 = vmatprep.subr.mxu0 0.0
      %1763 = vmatpush2.msra.mxu0 0.0
      %1764 = vmatprep.subr.mxu0 0.0
      %1765 = vmatpush2.msra.mxu0 0.0
      %1766 = vmatprep.subr.mxu0 0.0
      %1767 = vmatpush2.msra.mxu0 0.0
      %1768 = vmatprep.subr.mxu0 0.0
      %1769 = vmatpush2.msra.mxu0 0.0
      %1770 = vmatprep.subr.mxu0 0.0
      %1771 = vmatpush2.msra.mxu0 0.0
      %1772 = vmatprep.subr.mxu0 0.0
      %1773 = vmatpush2.msra.mxu0 0.0
      %1774 = vmatprep.subr.mxu0 0.0
      %1775 = vmatpush2.msra.mxu0 0.0
      %1776 = vmatprep.mubr.f32.mxu0 0.0
      %1777 = vmatmul.mubr.f32.gmra.mxu0 %v1710
      %v1778 = vpop.f32.mrf.mxu0
      %v1779 = vadd.f32 0.0, %v1778
      %v1780 = vpop.f32.mrf.mxu0
      %1781 = vdwg.mxu0
      %v1782 = vadd.f32 %v1541, %v1779
      %s1783 = scalar_lea.vmem %s2, 8
      %v1784 = vld [vmem:[%s1783] sm:$0xff]
      %1786 = vrot.lane.b32.xlu0 %v813, 96
      %v1787 = vpop.permute.xlu0 %1786
      %v1788 = vsel %vm824, %v813, 0
      %v1790 = vsel %vm824, %v1787, 0
      %1792 = vmatprep.subr.mxu0 0.0
      %1793 = vmatpush1.xpose.msra.mxu0 0.0
      %1794 = vmatprep.subr.mxu0 0.0
      %1795 = vmatpush1.xpose.msra.mxu0 0.0
      %1796 = vmatprep.subr.mxu0 0.0
      %1797 = vmatpush1.xpose.msra.mxu0 0.0
      %1798 = vmatprep.subr.mxu0 0.0
      %1799 = vmatpush1.xpose.msra.mxu0 0.0
      %1800 = vmatprep.subr.mxu0 0.0
      %1801 = vmatpush1.xpose.msra.mxu0 0.0
      %1802 = vmatprep.subr.mxu0 0.0
      %1803 = vmatpush1.xpose.msra.mxu0 0.0
      %1804 = vmatprep.subr.mxu0 0.0
      %1805 = vmatpush1.xpose.msra.mxu0 0.0
      %1806 = vmatprep.subr.mxu0 0.0
      %1807 = vmatpush1.xpose.msra.mxu0 0.0
      %1808 = vmatprep.subr.mxu0 0.0
      %1809 = vmatpush1.xpose.msra.mxu0 0.0
      %1810 = vmatprep.subr.mxu0 0.0
      %1811 = vmatpush1.xpose.msra.mxu0 0.0
      %1812 = vmatprep.subr.mxu0 0.0
      %1813 = vmatpush1.xpose.msra.mxu0 0.0
      %1814 = vmatprep.subr.mxu0 0.0
      %1815 = vmatpush1.xpose.msra.mxu0 0.0
      %1816 = vmatprep.subr.mxu0 0.0
      %1817 = vmatpush1.xpose.msra.mxu0 0.0
      %1818 = vmatprep.subr.mxu0 0.0
      %1819 = vmatpush1.xpose.msra.mxu0 0.0
      %1820 = vmatprep.subr.mxu0 0.0
      %1821 = vmatpush1.xpose.msra.mxu0 0.0
      %1822 = vmatprep.subr.mxu0 0.0
      %1823 = vmatpush1.xpose.msra.mxu0 %v1790
      %1824 = vmatprep.subr.mxu0 0.0
      %1825 = vmatpush2.xpose.msra.mxu0 0.0
      %1826 = vmatprep.subr.mxu0 0.0
      %1827 = vmatpush2.xpose.msra.mxu0 0.0
      %1828 = vmatprep.subr.mxu0 0.0
      %1829 = vmatpush2.xpose.msra.mxu0 0.0
      %1830 = vmatprep.subr.mxu0 0.0
      %1831 = vmatpush2.xpose.msra.mxu0 0.0
      %1832 = vmatprep.subr.mxu0 0.0
      %1833 = vmatpush2.xpose.msra.mxu0 0.0
      %1834 = vmatprep.subr.mxu0 0.0
      %1835 = vmatpush2.xpose.msra.mxu0 0.0
      %1836 = vmatprep.subr.mxu0 0.0
      %1837 = vmatpush2.xpose.msra.mxu0 0.0
      %1838 = vmatprep.subr.mxu0 0.0
      %1839 = vmatpush2.xpose.msra.mxu0 0.0
      %1840 = vmatprep.subr.mxu0 0.0
      %1841 = vmatpush2.xpose.msra.mxu0 0.0
      %1842 = vmatprep.subr.mxu0 0.0
      %1843 = vmatpush2.xpose.msra.mxu0 0.0
      %1844 = vmatprep.subr.mxu0 0.0
      %1845 = vmatpush2.xpose.msra.mxu0 0.0
      %1846 = vmatprep.subr.mxu0 0.0
      %1847 = vmatpush2.xpose.msra.mxu0 0.0
      %1848 = vmatprep.subr.mxu0 0.0
      %1849 = vmatpush2.xpose.msra.mxu0 0.0
      %1850 = vmatprep.subr.mxu0 0.0
      %1851 = vmatpush2.xpose.msra.mxu0 0.0
      %1852 = vmatprep.subr.mxu0 0.0
      %1853 = vmatpush2.xpose.msra.mxu0 0.0
      %1854 = vmatprep.subr.mxu0 0.0
      %1855 = vmatpush2.xpose.msra.mxu0 0.0
      %1856 = vmatprep.mubr.f32.mxu0 0.0
      %1857 = vmatmul.mubr.f32.gmra.mxu0 %v1788
      %v1858 = vpop.f32.mrf.mxu0
      %v1859 = vadd.f32 0.0, %v1858
      %v1860 = vpop.f32.mrf.mxu0
      %1861 = vdwg.mxu0
      %v1862 = vmul.f32 %v1859, 0.35355338
      %v1863 = vadd.f32 %v1862, %v1784
      %v1864 = vsel %vm824, %v1863, -inf
      %1865 = vmax.xlane.f32.xlu0 %v1864
      %v1866 = vpop.xlane.xlu0 %1865
      %v1867 = vsub.f32 %v1863, %v1866
      %v1868 = vmul.f32 %v1867, 1.442695
      %v1869 = vpow.pop %v1868
      %v1870 = vsel %vm824, %v1869, 0.0
      %1871 = vadd.xlane.f32.xlu0 %v1870
      %v1872 = vpop.xlane.xlu0 %1871
      %v1873 = vrcp.pop %v1872
      %v1874 = vmul.f32 %v1869, %v1873
      %1875 = vrot.lane.b32.xlu0 %v813, 64
      %v1876 = vpop.permute.xlu0 %1875
      %v1879 = vsel %vm824, %v1874, 0
      %1881 = vmatprep.subr.mxu0 0.0
      %1882 = vmatpush1.msra.mxu0 0.0
      %1883 = vmatprep.subr.mxu0 0.0
      %1884 = vmatpush1.msra.mxu0 0.0
      %1885 = vmatprep.subr.mxu0 0.0
      %1886 = vmatpush1.msra.mxu0 0.0
      %1887 = vmatprep.subr.mxu0 0.0
      %1888 = vmatpush1.msra.mxu0 0.0
      %1889 = vmatprep.subr.mxu0 0.0
      %1890 = vmatpush1.msra.mxu0 0.0
      %1891 = vmatprep.subr.mxu0 0.0
      %1892 = vmatpush1.msra.mxu0 0.0
      %1893 = vmatprep.subr.mxu0 0.0
      %1894 = vmatpush1.msra.mxu0 0.0
      %1895 = vmatprep.subr.mxu0 0.0
      %1896 = vmatpush1.msra.mxu0 0.0
      %1897 = vmatprep.subr.mxu0 0.0
      %1898 = vmatpush1.msra.mxu0 0.0
      %1899 = vmatprep.subr.mxu0 0.0
      %1900 = vmatpush1.msra.mxu0 0.0
      %1901 = vmatprep.subr.mxu0 0.0
      %1902 = vmatpush1.msra.mxu0 0.0
      %1903 = vmatprep.subr.mxu0 0.0
      %1904 = vmatpush1.msra.mxu0 0.0
      %1905 = vmatprep.subr.mxu0 0.0
      %1906 = vmatpush1.msra.mxu0 0.0
      %1907 = vmatprep.subr.mxu0 0.0
      %1908 = vmatpush1.msra.mxu0 0.0
      %1909 = vmatprep.subr.mxu0 0.0
      %1910 = vmatpush1.msra.mxu0 0.0
      %1911 = vmatprep.subr.mxu0 0.0
      %1912 = vmatpush1.msra.mxu0 %v1876
      %1913 = vmatprep.subr.mxu0 0.0
      %1914 = vmatpush2.msra.mxu0 0.0
      %1915 = vmatprep.subr.mxu0 0.0
      %1916 = vmatpush2.msra.mxu0 0.0
      %1917 = vmatprep.subr.mxu0 0.0
      %1918 = vmatpush2.msra.mxu0 0.0
      %1919 = vmatprep.subr.mxu0 0.0
      %1920 = vmatpush2.msra.mxu0 0.0
      %1921 = vmatprep.subr.mxu0 0.0
      %1922 = vmatpush2.msra.mxu0 0.0
      %1923 = vmatprep.subr.mxu0 0.0
      %1924 = vmatpush2.msra.mxu0 0.0
      %1925 = vmatprep.subr.mxu0 0.0
      %1926 = vmatpush2.msra.mxu0 0.0
      %1927 = vmatprep.subr.mxu0 0.0
      %1928 = vmatpush2.msra.mxu0 0.0
      %1929 = vmatprep.subr.mxu0 0.0
      %1930 = vmatpush2.msra.mxu0 0.0
      %1931 = vmatprep.subr.mxu0 0.0
      %1932 = vmatpush2.msra.mxu0 0.0
      %1933 = vmatprep.subr.mxu0 0.0
      %1934 = vmatpush2.msra.mxu0 0.0
      %1935 = vmatprep.subr.mxu0 0.0
      %1936 = vmatpush2.msra.mxu0 0.0
      %1937 = vmatprep.subr.mxu0 0.0
      %1938 = vmatpush2.msra.mxu0 0.0
      %1939 = vmatprep.subr.mxu0 0.0
      %1940 = vmatpush2.msra.mxu0 0.0
      %1941 = vmatprep.subr.mxu0 0.0
      %1942 = vmatpush2.msra.mxu0 0.0
      %1943 = vmatprep.subr.mxu0 0.0
      %1944 = vmatpush2.msra.mxu0 0.0
      %1945 = vmatprep.mubr.f32.mxu0 0.0
      %1946 = vmatmul.mubr.f32.gmra.mxu0 %v1879
      %v1947 = vpop.f32.mrf.mxu0
      %v1948 = vadd.f32 0.0, %v1947
      %v1949 = vpop.f32.mrf.mxu0
      %1950 = vdwg.mxu0
      %1951 = vrot.lane.b32.xlu0 %v813, 120
      %v1952 = vpop.permute.xlu0 %1951
      %1953 = vrot.lane.b32.xlu0 %v813, 88
      %v1954 = vpop.permute.xlu0 %1953
      %v1955 = vsel %vm824, %v1952, 0
      %v1957 = vsel %vm824, %v1954, 0
      %1959 = vmatprep.subr.mxu0 0.0
      %1960 = vmatpush1.xpose.msra.mxu0 0.0
      %1961 = vmatprep.subr.mxu0 0.0
      %1962 = vmatpush1.xpose.msra.mxu0 0.0
      %1963 = vmatprep.subr.mxu0 0.0
      %1964 = vmatpush1.xpose.msra.mxu0 0.0
      %1965 = vmatprep.subr.mxu0 0.0
      %1966 = vmatpush1.xpose.msra.mxu0 0.0
      %1967 = vmatprep.subr.mxu0 0.0
      %1968 = vmatpush1.xpose.msra.mxu0 0.0
      %1969 = vmatprep.subr.mxu0 0.0
      %1970 = vmatpush1.xpose.msra.mxu0 0.0
      %1971 = vmatprep.subr.mxu0 0.0
      %1972 = vmatpush1.xpose.msra.mxu0 0.0
      %1973 = vmatprep.subr.mxu0 0.0
      %1974 = vmatpush1.xpose.msra.mxu0 0.0
      %1975 = vmatprep.subr.mxu0 0.0
      %1976 = vmatpush1.xpose.msra.mxu0 0.0
      %1977 = vmatprep.subr.mxu0 0.0
      %1978 = vmatpush1.xpose.msra.mxu0 0.0
      %1979 = vmatprep.subr.mxu0 0.0
      %1980 = vmatpush1.xpose.msra.mxu0 0.0
      %1981 = vmatprep.subr.mxu0 0.0
      %1982 = vmatpush1.xpose.msra.mxu0 0.0
      %1983 = vmatprep.subr.mxu0 0.0
      %1984 = vmatpush1.xpose.msra.mxu0 0.0
      %1985 = vmatprep.subr.mxu0 0.0
      %1986 = vmatpush1.xpose.msra.mxu0 0.0
      %1987 = vmatprep.subr.mxu0 0.0
      %1988 = vmatpush1.xpose.msra.mxu0 0.0
      %1989 = vmatprep.subr.mxu0 0.0
      %1990 = vmatpush1.xpose.msra.mxu0 %v1957
      %1991 = vmatprep.subr.mxu0 0.0
      %1992 = vmatpush2.xpose.msra.mxu0 0.0
      %1993 = vmatprep.subr.mxu0 0.0
      %1994 = vmatpush2.xpose.msra.mxu0 0.0
      %1995 = vmatprep.subr.mxu0 0.0
      %1996 = vmatpush2.xpose.msra.mxu0 0.0
      %1997 = vmatprep.subr.mxu0 0.0
      %1998 = vmatpush2.xpose.msra.mxu0 0.0
      %1999 = vmatprep.subr.mxu0 0.0
      %2000 = vmatpush2.xpose.msra.mxu0 0.0
      %2001 = vmatprep.subr.mxu0 0.0
      %2002 = vmatpush2.xpose.msra.mxu0 0.0
      %2003 = vmatprep.subr.mxu0 0.0
      %2004 = vmatpush2.xpose.msra.mxu0 0.0
      %2005 = vmatprep.subr.mxu0 0.0
      %2006 = vmatpush2.xpose.msra.mxu0 0.0
      %2007 = vmatprep.subr.mxu0 0.0
      %2008 = vmatpush2.xpose.msra.mxu0 0.0
      %2009 = vmatprep.subr.mxu0 0.0
      %2010 = vmatpush2.xpose.msra.mxu0 0.0
      %2011 = vmatprep.subr.mxu0 0.0
      %2012 = vmatpush2.xpose.msra.mxu0 0.0
      %2013 = vmatprep.subr.mxu0 0.0
      %2014 = vmatpush2.xpose.msra.mxu0 0.0
      %2015 = vmatprep.subr.mxu0 0.0
      %2016 = vmatpush2.xpose.msra.mxu0 0.0
      %2017 = vmatprep.subr.mxu0 0.0
      %2018 = vmatpush2.xpose.msra.mxu0 0.0
      %2019 = vmatprep.subr.mxu0 0.0
      %2020 = vmatpush2.xpose.msra.mxu0 0.0
      %2021 = vmatprep.subr.mxu0 0.0
      %2022 = vmatpush2.xpose.msra.mxu0 0.0
      %2023 = vmatprep.mubr.f32.mxu0 0.0
      %2024 = vmatmul.mubr.f32.gmra.mxu0 %v1955
      %v2025 = vpop.f32.mrf.mxu0
      %v2026 = vadd.f32 0.0, %v2025
      %v2027 = vpop.f32.mrf.mxu0
      %2028 = vdwg.mxu0
      %v2029 = vmul.f32 %v2026, 0.35355338
      %v2030 = vadd.f32 %v2029, %v1784
      %v2031 = vsel %vm824, %v2030, -inf
      %2032 = vmax.xlane.f32.xlu0 %v2031
      %v2033 = vpop.xlane.xlu0 %2032
      %v2034 = vsub.f32 %v2030, %v2033
      %v2035 = vmul.f32 %v2034, 1.442695
      %v2036 = vpow.pop %v2035
      %v2037 = vsel %vm824, %v2036, 0.0
      %2038 = vadd.xlane.f32.xlu0 %v2037
      %v2039 = vpop.xlane.xlu0 %2038
      %v2040 = vrcp.pop %v2039
      %v2041 = vmul.f32 %v2036, %v2040
      %2042 = vrot.lane.b32.xlu0 %v813, 56
      %v2043 = vpop.permute.xlu0 %2042
      %v2046 = vsel %vm824, %v2041, 0
      %2048 = vmatprep.subr.mxu0 0.0
      %2049 = vmatpush1.msra.mxu0 0.0
      %2050 = vmatprep.subr.mxu0 0.0
      %2051 = vmatpush1.msra.mxu0 0.0
      %2052 = vmatprep.subr.mxu0 0.0
      %2053 = vmatpush1.msra.mxu0 0.0
      %2054 = vmatprep.subr.mxu0 0.0
      %2055 = vmatpush1.msra.mxu0 0.0
      %2056 = vmatprep.subr.mxu0 0.0
      %2057 = vmatpush1.msra.mxu0 0.0
      %2058 = vmatprep.subr.mxu0 0.0
      %2059 = vmatpush1.msra.mxu0 0.0
      %2060 = vmatprep.subr.mxu0 0.0
      %2061 = vmatpush1.msra.mxu0 0.0
      %2062 = vmatprep.subr.mxu0 0.0
      %2063 = vmatpush1.msra.mxu0 0.0
      %2064 = vmatprep.subr.mxu0 0.0
      %2065 = vmatpush1.msra.mxu0 0.0
      %2066 = vmatprep.subr.mxu0 0.0
      %2067 = vmatpush1.msra.mxu0 0.0
      %2068 = vmatprep.subr.mxu0 0.0
      %2069 = vmatpush1.msra.mxu0 0.0
      %2070 = vmatprep.subr.mxu0 0.0
      %2071 = vmatpush1.msra.mxu0 0.0
      %2072 = vmatprep.subr.mxu0 0.0
      %2073 = vmatpush1.msra.mxu0 0.0
      %2074 = vmatprep.subr.mxu0 0.0
      %2075 = vmatpush1.msra.mxu0 0.0
      %2076 = vmatprep.subr.mxu0 0.0
      %2077 = vmatpush1.msra.mxu0 0.0
      %2078 = vmatprep.subr.mxu0 0.0
      %2079 = vmatpush1.msra.mxu0 %v2043
      %2080 = vmatprep.subr.mxu0 0.0
      %2081 = vmatpush2.msra.mxu0 0.0
      %2082 = vmatprep.subr.mxu0 0.0
      %2083 = vmatpush2.msra.mxu0 0.0
      %2084 = vmatprep.subr.mxu0 0.0
      %2085 = vmatpush2.msra.mxu0 0.0
      %2086 = vmatprep.subr.mxu0 0.0
      %2087 = vmatpush2.msra.mxu0 0.0
      %2088 = vmatprep.subr.mxu0 0.0
      %2089 = vmatpush2.msra.mxu0 0.0
      %2090 = vmatprep.subr.mxu0 0.0
      %2091 = vmatpush2.msra.mxu0 0.0
      %2092 = vmatprep.subr.mxu0 0.0
      %2093 = vmatpush2.msra.mxu0 0.0
      %2094 = vmatprep.subr.mxu0 0.0
      %2095 = vmatpush2.msra.mxu0 0.0
      %2096 = vmatprep.subr.mxu0 0.0
      %2097 = vmatpush2.msra.mxu0 0.0
      %2098 = vmatprep.subr.mxu0 0.0
      %2099 = vmatpush2.msra.mxu0 0.0
      %2100 = vmatprep.subr.mxu0 0.0
      %2101 = vmatpush2.msra.mxu0 0.0
      %2102 = vmatprep.subr.mxu0 0.0
      %2103 = vmatpush2.msra.mxu0 0.0
      %2104 = vmatprep.subr.mxu0 0.0
      %2105 = vmatpush2.msra.mxu0 0.0
      %2106 = vmatprep.subr.mxu0 0.0
      %2107 = vmatpush2.msra.mxu0 0.0
      %2108 = vmatprep.subr.mxu0 0.0
      %2109 = vmatpush2.msra.mxu0 0.0
      %2110 = vmatprep.subr.mxu0 0.0
      %2111 = vmatpush2.msra.mxu0 0.0
      %2112 = vmatprep.mubr.f32.mxu0 0.0
      %2113 = vmatmul.mubr.f32.gmra.mxu0 %v2046
      %v2114 = vpop.f32.mrf.mxu0
      %v2115 = vadd.f32 0.0, %v2114
      %v2116 = vpop.f32.mrf.mxu0
      %2117 = vdwg.mxu0
      %v2119 = vsel %vm824, %v2115, 0
      %2121 = vmatprep.subr.mxu0 0.0
      %2122 = vmatpush1.msra.mxu0 0.0
      %2123 = vmatprep.subr.mxu0 0.0
      %2124 = vmatpush1.msra.mxu0 0.0
      %2125 = vmatprep.subr.mxu0 0.0
      %2126 = vmatpush1.msra.mxu0 0.0
      %2127 = vmatprep.subr.mxu0 0.0
      %2128 = vmatpush1.msra.mxu0 0.0
      %2129 = vmatprep.subr.mxu0 0.0
      %2130 = vmatpush1.msra.mxu0 0.0
      %2131 = vmatprep.subr.mxu0 0.0
      %2132 = vmatpush1.msra.mxu0 0.0
      %2133 = vmatprep.subr.mxu0 0.0
      %2134 = vmatpush1.msra.mxu0 0.0
      %2135 = vmatprep.subr.mxu0 0.0
      %2136 = vmatpush1.msra.mxu0 0.0
      %2137 = vmatprep.subr.mxu0 0.0
      %2138 = vmatpush1.msra.mxu0 0.0
      %2139 = vmatprep.subr.mxu0 0.0
      %2140 = vmatpush1.msra.mxu0 0.0
      %2141 = vmatprep.subr.mxu0 0.0
      %2142 = vmatpush1.msra.mxu0 0.0
      %2143 = vmatprep.subr.mxu0 0.0
      %2144 = vmatpush1.msra.mxu0 0.0
      %2145 = vmatprep.subr.mxu0 0.0
      %2146 = vmatpush1.msra.mxu0 0.0
      %2147 = vmatprep.subr.mxu0 0.0
      %2148 = vmatpush1.msra.mxu0 0.0
      %2149 = vmatprep.subr.mxu0 0.0
      %2150 = vmatpush1.msra.mxu0 0.0
      %2151 = vmatprep.subr.mxu0 0.0
      %2152 = vmatpush1.msra.mxu0 %v817
      %2153 = vmatprep.subr.mxu0 0.0
      %2154 = vmatpush2.msra.mxu0 0.0
      %2155 = vmatprep.subr.mxu0 0.0
      %2156 = vmatpush2.msra.mxu0 0.0
      %2157 = vmatprep.subr.mxu0 0.0
      %2158 = vmatpush2.msra.mxu0 0.0
      %2159 = vmatprep.subr.mxu0 0.0
      %2160 = vmatpush2.msra.mxu0 0.0
      %2161 = vmatprep.subr.mxu0 0.0
      %2162 = vmatpush2.msra.mxu0 0.0
      %2163 = vmatprep.subr.mxu0 0.0
      %2164 = vmatpush2.msra.mxu0 0.0
      %2165 = vmatprep.subr.mxu0 0.0
      %2166 = vmatpush2.msra.mxu0 0.0
      %2167 = vmatprep.subr.mxu0 0.0
      %2168 = vmatpush2.msra.mxu0 0.0
      %2169 = vmatprep.subr.mxu0 0.0
      %2170 = vmatpush2.msra.mxu0 0.0
      %2171 = vmatprep.subr.mxu0 0.0
      %2172 = vmatpush2.msra.mxu0 0.0
      %2173 = vmatprep.subr.mxu0 0.0
      %2174 = vmatpush2.msra.mxu0 0.0
      %2175 = vmatprep.subr.mxu0 0.0
      %2176 = vmatpush2.msra.mxu0 0.0
      %2177 = vmatprep.subr.mxu0 0.0
      %2178 = vmatpush2.msra.mxu0 0.0
      %2179 = vmatprep.subr.mxu0 0.0
      %2180 = vmatpush2.msra.mxu0 0.0
      %2181 = vmatprep.subr.mxu0 0.0
      %2182 = vmatpush2.msra.mxu0 0.0
      %2183 = vmatprep.subr.mxu0 0.0
      %2184 = vmatpush2.msra.mxu0 0.0
      %2185 = vmatprep.mubr.f32.mxu0 0.0
      %2186 = vmatmul.mubr.f32.gmra.mxu0 %v2119
      %v2187 = vpop.f32.mrf.mxu0
      %v2188 = vadd.f32 0.0, %v2187
      %v2189 = vpop.f32.mrf.mxu0
      %2190 = vdwg.mxu0
      %v2192 = vsel %vm824, %v1948, 0
      %2194 = vmatprep.subr.mxu0 0.0
      %2195 = vmatpush1.msra.mxu0 0.0
      %2196 = vmatprep.subr.mxu0 0.0
      %2197 = vmatpush1.msra.mxu0 0.0
      %2198 = vmatprep.subr.mxu0 0.0
      %2199 = vmatpush1.msra.mxu0 0.0
      %2200 = vmatprep.subr.mxu0 0.0
      %2201 = vmatpush1.msra.mxu0 0.0
      %2202 = vmatprep.subr.mxu0 0.0
      %2203 = vmatpush1.msra.mxu0 0.0
      %2204 = vmatprep.subr.mxu0 0.0
      %2205 = vmatpush1.msra.mxu0 0.0
      %2206 = vmatprep.subr.mxu0 0.0
      %2207 = vmatpush1.msra.mxu0 0.0
      %2208 = vmatprep.subr.mxu0 0.0
      %2209 = vmatpush1.msra.mxu0 0.0
      %2210 = vmatprep.subr.mxu0 0.0
      %2211 = vmatpush1.msra.mxu0 0.0
      %2212 = vmatprep.subr.mxu0 0.0
      %2213 = vmatpush1.msra.mxu0 0.0
      %2214 = vmatprep.subr.mxu0 0.0
      %2215 = vmatpush1.msra.mxu0 0.0
      %2216 = vmatprep.subr.mxu0 0.0
      %2217 = vmatpush1.msra.mxu0 0.0
      %2218 = vmatprep.subr.mxu0 0.0
      %2219 = vmatpush1.msra.mxu0 0.0
      %2220 = vmatprep.subr.mxu0 0.0
      %2221 = vmatpush1.msra.mxu0 0.0
      %2222 = vmatprep.subr.mxu0 0.0
      %2223 = vmatpush1.msra.mxu0 0.0
      %2224 = vmatprep.subr.mxu0 0.0
      %2225 = vmatpush1.msra.mxu0 %v816
      %2226 = vmatprep.subr.mxu0 0.0
      %2227 = vmatpush2.msra.mxu0 0.0
      %2228 = vmatprep.subr.mxu0 0.0
      %2229 = vmatpush2.msra.mxu0 0.0
      %2230 = vmatprep.subr.mxu0 0.0
      %2231 = vmatpush2.msra.mxu0 0.0
      %2232 = vmatprep.subr.mxu0 0.0
      %2233 = vmatpush2.msra.mxu0 0.0
      %2234 = vmatprep.subr.mxu0 0.0
      %2235 = vmatpush2.msra.mxu0 0.0
      %2236 = vmatprep.subr.mxu0 0.0
      %2237 = vmatpush2.msra.mxu0 0.0
      %2238 = vmatprep.subr.mxu0 0.0
      %2239 = vmatpush2.msra.mxu0 0.0
      %2240 = vmatprep.subr.mxu0 0.0
      %2241 = vmatpush2.msra.mxu0 0.0
      %2242 = vmatprep.subr.mxu0 0.0
      %2243 = vmatpush2.msra.mxu0 0.0
      %2244 = vmatprep.subr.mxu0 0.0
      %2245 = vmatpush2.msra.mxu0 0.0
      %2246 = vmatprep.subr.mxu0 0.0
      %2247 = vmatpush2.msra.mxu0 0.0
      %2248 = vmatprep.subr.mxu0 0.0
      %2249 = vmatpush2.msra.mxu0 0.0
      %2250 = vmatprep.subr.mxu0 0.0
      %2251 = vmatpush2.msra.mxu0 0.0
      %2252 = vmatprep.subr.mxu0 0.0
      %2253 = vmatpush2.msra.mxu0 0.0
      %2254 = vmatprep.subr.mxu0 0.0
      %2255 = vmatpush2.msra.mxu0 0.0
      %2256 = vmatprep.subr.mxu0 0.0
      %2257 = vmatpush2.msra.mxu0 0.0
      %2258 = vmatprep.mubr.f32.mxu0 0.0
      %2259 = vmatmul.mubr.f32.gmra.mxu0 %v2192
      %v2260 = vpop.f32.mrf.mxu0
      %v2261 = vadd.f32 %v2188, %v2260
      %v2262 = vpop.f32.mrf.mxu0
      %2263 = vdwg.mxu0
      %2264 = vrot.lane.b32.xlu0 %v813, 112
      %v2265 = vpop.permute.xlu0 %2264
      %2266 = vrot.lane.b32.xlu0 %v813, 80
      %v2267 = vpop.permute.xlu0 %2266
      %v2268 = vsel %vm824, %v2265, 0
      %v2270 = vsel %vm824, %v2267, 0
      %2272 = vmatprep.subr.mxu0 0.0
      %2273 = vmatpush1.xpose.msra.mxu0 0.0
      %2274 = vmatprep.subr.mxu0 0.0
      %2275 = vmatpush1.xpose.msra.mxu0 0.0
      %2276 = vmatprep.subr.mxu0 0.0
      %2277 = vmatpush1.xpose.msra.mxu0 0.0
      %2278 = vmatprep.subr.mxu0 0.0
      %2279 = vmatpush1.xpose.msra.mxu0 0.0
      %2280 = vmatprep.subr.mxu0 0.0
      %2281 = vmatpush1.xpose.msra.mxu0 0.0
      %2282 = vmatprep.subr.mxu0 0.0
      %2283 = vmatpush1.xpose.msra.mxu0 0.0
      %2284 = vmatprep.subr.mxu0 0.0
      %2285 = vmatpush1.xpose.msra.mxu0 0.0
      %2286 = vmatprep.subr.mxu0 0.0
      %2287 = vmatpush1.xpose.msra.mxu0 0.0
      %2288 = vmatprep.subr.mxu0 0.0
      %2289 = vmatpush1.xpose.msra.mxu0 0.0
      %2290 = vmatprep.subr.mxu0 0.0
      %2291 = vmatpush1.xpose.msra.mxu0 0.0
      %2292 = vmatprep.subr.mxu0 0.0
      %2293 = vmatpush1.xpose.msra.mxu0 0.0
      %2294 = vmatprep.subr.mxu0 0.0
      %2295 = vmatpush1.xpose.msra.mxu0 0.0
      %2296 = vmatprep.subr.mxu0 0.0
      %2297 = vmatpush1.xpose.msra.mxu0 0.0
      %2298 = vmatprep.subr.mxu0 0.0
      %2299 = vmatpush1.xpose.msra.mxu0 0.0
      %2300 = vmatprep.subr.mxu0 0.0
      %2301 = vmatpush1.xpose.msra.mxu0 0.0
      %2302 = vmatprep.subr.mxu0 0.0
      %2303 = vmatpush1.xpose.msra.mxu0 %v2270
      %2304 = vmatprep.subr.mxu0 0.0
      %2305 = vmatpush2.xpose.msra.mxu0 0.0
      %2306 = vmatprep.subr.mxu0 0.0
      %2307 = vmatpush2.xpose.msra.mxu0 0.0
      %2308 = vmatprep.subr.mxu0 0.0
      %2309 = vmatpush2.xpose.msra.mxu0 0.0
      %2310 = vmatprep.subr.mxu0 0.0
      %2311 = vmatpush2.xpose.msra.mxu0 0.0
      %2312 = vmatprep.subr.mxu0 0.0
      %2313 = vmatpush2.xpose.msra.mxu0 0.0
      %2314 = vmatprep.subr.mxu0 0.0
      %2315 = vmatpush2.xpose.msra.mxu0 0.0
      %2316 = vmatprep.subr.mxu0 0.0
      %2317 = vmatpush2.xpose.msra.mxu0 0.0
      %2318 = vmatprep.subr.mxu0 0.0
      %2319 = vmatpush2.xpose.msra.mxu0 0.0
      %2320 = vmatprep.subr.mxu0 0.0
      %2321 = vmatpush2.xpose.msra.mxu0 0.0
      %2322 = vmatprep.subr.mxu0 0.0
      %2323 = vmatpush2.xpose.msra.mxu0 0.0
      %2324 = vmatprep.subr.mxu0 0.0
      %2325 = vmatpush2.xpose.msra.mxu0 0.0
      %2326 = vmatprep.subr.mxu0 0.0
      %2327 = vmatpush2.xpose.msra.mxu0 0.0
      %2328 = vmatprep.subr.mxu0 0.0
      %2329 = vmatpush2.xpose.msra.mxu0 0.0
      %2330 = vmatprep.subr.mxu0 0.0
      %2331 = vmatpush2.xpose.msra.mxu0 0.0
      %2332 = vmatprep.subr.mxu0 0.0
      %2333 = vmatpush2.xpose.msra.mxu0 0.0
      %2334 = vmatprep.subr.mxu0 0.0
      %2335 = vmatpush2.xpose.msra.mxu0 0.0
      %2336 = vmatprep.mubr.f32.mxu0 0.0
      %2337 = vmatmul.mubr.f32.gmra.mxu0 %v2268
      %v2338 = vpop.f32.mrf.mxu0
      %v2339 = vadd.f32 0.0, %v2338
      %v2340 = vpop.f32.mrf.mxu0
      %2341 = vdwg.mxu0
      %v2342 = vmul.f32 %v2339, 0.35355338
      %v2343 = vadd.f32 %v2342, %v1784
      %v2344 = vsel %vm824, %v2343, -inf
      %2345 = vmax.xlane.f32.xlu0 %v2344
      %v2346 = vpop.xlane.xlu0 %2345
      %v2347 = vsub.f32 %v2343, %v2346
      %v2348 = vmul.f32 %v2347, 1.442695
      %v2349 = vpow.pop %v2348
      %v2350 = vsel %vm824, %v2349, 0.0
      %2351 = vadd.xlane.f32.xlu0 %v2350
      %v2352 = vpop.xlane.xlu0 %2351
      %v2353 = vrcp.pop %v2352
      %v2354 = vmul.f32 %v2349, %v2353
      %2355 = vrot.lane.b32.xlu0 %v813, 48
      %v2356 = vpop.permute.xlu0 %2355
      %v2359 = vsel %vm824, %v2354, 0
      %2361 = vmatprep.subr.mxu0 0.0
      %2362 = vmatpush1.msra.mxu0 0.0
      %2363 = vmatprep.subr.mxu0 0.0
      %2364 = vmatpush1.msra.mxu0 0.0
      %2365 = vmatprep.subr.mxu0 0.0
      %2366 = vmatpush1.msra.mxu0 0.0
      %2367 = vmatprep.subr.mxu0 0.0
      %2368 = vmatpush1.msra.mxu0 0.0
      %2369 = vmatprep.subr.mxu0 0.0
      %2370 = vmatpush1.msra.mxu0 0.0
      %2371 = vmatprep.subr.mxu0 0.0
      %2372 = vmatpush1.msra.mxu0 0.0
      %2373 = vmatprep.subr.mxu0 0.0
      %2374 = vmatpush1.msra.mxu0 0.0
      %2375 = vmatprep.subr.mxu0 0.0
      %2376 = vmatpush1.msra.mxu0 0.0
      %2377 = vmatprep.subr.mxu0 0.0
      %2378 = vmatpush1.msra.mxu0 0.0
      %2379 = vmatprep.subr.mxu0 0.0
      %2380 = vmatpush1.msra.mxu0 0.0
      %2381 = vmatprep.subr.mxu0 0.0
      %2382 = vmatpush1.msra.mxu0 0.0
      %2383 = vmatprep.subr.mxu0 0.0
      %2384 = vmatpush1.msra.mxu0 0.0
      %2385 = vmatprep.subr.mxu0 0.0
      %2386 = vmatpush1.msra.mxu0 0.0
      %2387 = vmatprep.subr.mxu0 0.0
      %2388 = vmatpush1.msra.mxu0 0.0
      %2389 = vmatprep.subr.mxu0 0.0
      %2390 = vmatpush1.msra.mxu0 0.0
      %2391 = vmatprep.subr.mxu0 0.0
      %2392 = vmatpush1.msra.mxu0 %v2356
      %2393 = vmatprep.subr.mxu0 0.0
      %2394 = vmatpush2.msra.mxu0 0.0
      %2395 = vmatprep.subr.mxu0 0.0
      %2396 = vmatpush2.msra.mxu0 0.0
      %2397 = vmatprep.subr.mxu0 0.0
      %2398 = vmatpush2.msra.mxu0 0.0
      %2399 = vmatprep.subr.mxu0 0.0
      %2400 = vmatpush2.msra.mxu0 0.0
      %2401 = vmatprep.subr.mxu0 0.0
      %2402 = vmatpush2.msra.mxu0 0.0
      %2403 = vmatprep.subr.mxu0 0.0
      %2404 = vmatpush2.msra.mxu0 0.0
      %2405 = vmatprep.subr.mxu0 0.0
      %2406 = vmatpush2.msra.mxu0 0.0
      %2407 = vmatprep.subr.mxu0 0.0
      %2408 = vmatpush2.msra.mxu0 0.0
      %2409 = vmatprep.subr.mxu0 0.0
      %2410 = vmatpush2.msra.mxu0 0.0
      %2411 = vmatprep.subr.mxu0 0.0
      %2412 = vmatpush2.msra.mxu0 0.0
      %2413 = vmatprep.subr.mxu0 0.0
      %2414 = vmatpush2.msra.mxu0 0.0
      %2415 = vmatprep.subr.mxu0 0.0
      %2416 = vmatpush2.msra.mxu0 0.0
      %2417 = vmatprep.subr.mxu0 0.0
      %2418 = vmatpush2.msra.mxu0 0.0
      %2419 = vmatprep.subr.mxu0 0.0
      %2420 = vmatpush2.msra.mxu0 0.0
      %2421 = vmatprep.subr.mxu0 0.0
      %2422 = vmatpush2.msra.mxu0 0.0
      %2423 = vmatprep.subr.mxu0 0.0
      %2424 = vmatpush2.msra.mxu0 0.0
      %2425 = vmatprep.mubr.f32.mxu0 0.0
      %2426 = vmatmul.mubr.f32.gmra.mxu0 %v2359
      %v2427 = vpop.f32.mrf.mxu0
      %v2428 = vadd.f32 0.0, %v2427
      %v2429 = vpop.f32.mrf.mxu0
      %2430 = vdwg.mxu0
      %v2432 = vsel %vm824, %v2428, 0
      %2434 = vmatprep.subr.mxu0 0.0
      %2435 = vmatpush1.msra.mxu0 0.0
      %2436 = vmatprep.subr.mxu0 0.0
      %2437 = vmatpush1.msra.mxu0 0.0
      %2438 = vmatprep.subr.mxu0 0.0
      %2439 = vmatpush1.msra.mxu0 0.0
      %2440 = vmatprep.subr.mxu0 0.0
      %2441 = vmatpush1.msra.mxu0 0.0
      %2442 = vmatprep.subr.mxu0 0.0
      %2443 = vmatpush1.msra.mxu0 0.0
      %2444 = vmatprep.subr.mxu0 0.0
      %2445 = vmatpush1.msra.mxu0 0.0
      %2446 = vmatprep.subr.mxu0 0.0
      %2447 = vmatpush1.msra.mxu0 0.0
      %2448 = vmatprep.subr.mxu0 0.0
      %2449 = vmatpush1.msra.mxu0 0.0
      %2450 = vmatprep.subr.mxu0 0.0
      %2451 = vmatpush1.msra.mxu0 0.0
      %2452 = vmatprep.subr.mxu0 0.0
      %2453 = vmatpush1.msra.mxu0 0.0
      %2454 = vmatprep.subr.mxu0 0.0
      %2455 = vmatpush1.msra.mxu0 0.0
      %2456 = vmatprep.subr.mxu0 0.0
      %2457 = vmatpush1.msra.mxu0 0.0
      %2458 = vmatprep.subr.mxu0 0.0
      %2459 = vmatpush1.msra.mxu0 0.0
      %2460 = vmatprep.subr.mxu0 0.0
      %2461 = vmatpush1.msra.mxu0 0.0
      %2462 = vmatprep.subr.mxu0 0.0
      %2463 = vmatpush1.msra.mxu0 0.0
      %2464 = vmatprep.subr.mxu0 0.0
      %2465 = vmatpush1.msra.mxu0 %v818
      %2466 = vmatprep.subr.mxu0 0.0
      %2467 = vmatpush2.msra.mxu0 0.0
      %2468 = vmatprep.subr.mxu0 0.0
      %2469 = vmatpush2.msra.mxu0 0.0
      %2470 = vmatprep.subr.mxu0 0.0
      %2471 = vmatpush2.msra.mxu0 0.0
      %2472 = vmatprep.subr.mxu0 0.0
      %2473 = vmatpush2.msra.mxu0 0.0
      %2474 = vmatprep.subr.mxu0 0.0
      %2475 = vmatpush2.msra.mxu0 0.0
      %2476 = vmatprep.subr.mxu0 0.0
      %2477 = vmatpush2.msra.mxu0 0.0
      %2478 = vmatprep.subr.mxu0 0.0
      %2479 = vmatpush2.msra.mxu0 0.0
      %2480 = vmatprep.subr.mxu0 0.0
      %2481 = vmatpush2.msra.mxu0 0.0
      %2482 = vmatprep.subr.mxu0 0.0
      %2483 = vmatpush2.msra.mxu0 0.0
      %2484 = vmatprep.subr.mxu0 0.0
      %2485 = vmatpush2.msra.mxu0 0.0
      %2486 = vmatprep.subr.mxu0 0.0
      %2487 = vmatpush2.msra.mxu0 0.0
      %2488 = vmatprep.subr.mxu0 0.0
      %2489 = vmatpush2.msra.mxu0 0.0
      %2490 = vmatprep.subr.mxu0 0.0
      %2491 = vmatpush2.msra.mxu0 0.0
      %2492 = vmatprep.subr.mxu0 0.0
      %2493 = vmatpush2.msra.mxu0 0.0
      %2494 = vmatprep.subr.mxu0 0.0
      %2495 = vmatpush2.msra.mxu0 0.0
      %2496 = vmatprep.subr.mxu0 0.0
      %2497 = vmatpush2.msra.mxu0 0.0
      %2498 = vmatprep.mubr.f32.mxu0 0.0
      %2499 = vmatmul.mubr.f32.gmra.mxu0 %v2432
      %v2500 = vpop.f32.mrf.mxu0
      %v2501 = vadd.f32 0.0, %v2500
      %v2502 = vpop.f32.mrf.mxu0
      %2503 = vdwg.mxu0
      %v2504 = vadd.f32 %v2261, %v2501
      %2505 = vrot.lane.b32.xlu0 %v813, 104
      %v2506 = vpop.permute.xlu0 %2505
      %2507 = vrot.lane.b32.xlu0 %v813, 72
      %v2508 = vpop.permute.xlu0 %2507
      %v2509 = vsel %vm824, %v2506, 0
      %v2511 = vsel %vm824, %v2508, 0
      %2513 = vmatprep.subr.mxu0 0.0
      %2514 = vmatpush1.xpose.msra.mxu0 0.0
      %2515 = vmatprep.subr.mxu0 0.0
      %2516 = vmatpush1.xpose.msra.mxu0 0.0
      %2517 = vmatprep.subr.mxu0 0.0
      %2518 = vmatpush1.xpose.msra.mxu0 0.0
      %2519 = vmatprep.subr.mxu0 0.0
      %2520 = vmatpush1.xpose.msra.mxu0 0.0
      %2521 = vmatprep.subr.mxu0 0.0
      %2522 = vmatpush1.xpose.msra.mxu0 0.0
      %2523 = vmatprep.subr.mxu0 0.0
      %2524 = vmatpush1.xpose.msra.mxu0 0.0
      %2525 = vmatprep.subr.mxu0 0.0
      %2526 = vmatpush1.xpose.msra.mxu0 0.0
      %2527 = vmatprep.subr.mxu0 0.0
      %2528 = vmatpush1.xpose.msra.mxu0 0.0
      %2529 = vmatprep.subr.mxu0 0.0
      %2530 = vmatpush1.xpose.msra.mxu0 0.0
      %2531 = vmatprep.subr.mxu0 0.0
      %2532 = vmatpush1.xpose.msra.mxu0 0.0
      %2533 = vmatprep.subr.mxu0 0.0
      %2534 = vmatpush1.xpose.msra.mxu0 0.0
      %2535 = vmatprep.subr.mxu0 0.0
      %2536 = vmatpush1.xpose.msra.mxu0 0.0
      %2537 = vmatprep.subr.mxu0 0.0
      %2538 = vmatpush1.xpose.msra.mxu0 0.0
      %2539 = vmatprep.subr.mxu0 0.0
      %2540 = vmatpush1.xpose.msra.mxu0 0.0
      %2541 = vmatprep.subr.mxu0 0.0
      %2542 = vmatpush1.xpose.msra.mxu0 0.0
      %2543 = vmatprep.subr.mxu0 0.0
      %2544 = vmatpush1.xpose.msra.mxu0 %v2511
      %2545 = vmatprep.subr.mxu0 0.0
      %2546 = vmatpush2.xpose.msra.mxu0 0.0
      %2547 = vmatprep.subr.mxu0 0.0
      %2548 = vmatpush2.xpose.msra.mxu0 0.0
      %2549 = vmatprep.subr.mxu0 0.0
      %2550 = vmatpush2.xpose.msra.mxu0 0.0
      %2551 = vmatprep.subr.mxu0 0.0
      %2552 = vmatpush2.xpose.msra.mxu0 0.0
      %2553 = vmatprep.subr.mxu0 0.0
      %2554 = vmatpush2.xpose.msra.mxu0 0.0
      %2555 = vmatprep.subr.mxu0 0.0
      %2556 = vmatpush2.xpose.msra.mxu0 0.0
      %2557 = vmatprep.subr.mxu0 0.0
      %2558 = vmatpush2.xpose.msra.mxu0 0.0
      %2559 = vmatprep.subr.mxu0 0.0
      %2560 = vmatpush2.xpose.msra.mxu0 0.0
      %2561 = vmatprep.subr.mxu0 0.0
      %2562 = vmatpush2.xpose.msra.mxu0 0.0
      %2563 = vmatprep.subr.mxu0 0.0
      %2564 = vmatpush2.xpose.msra.mxu0 0.0
      %2565 = vmatprep.subr.mxu0 0.0
      %2566 = vmatpush2.xpose.msra.mxu0 0.0
      %2567 = vmatprep.subr.mxu0 0.0
      %2568 = vmatpush2.xpose.msra.mxu0 0.0
      %2569 = vmatprep.subr.mxu0 0.0
      %2570 = vmatpush2.xpose.msra.mxu0 0.0
      %2571 = vmatprep.subr.mxu0 0.0
      %2572 = vmatpush2.xpose.msra.mxu0 0.0
      %2573 = vmatprep.subr.mxu0 0.0
      %2574 = vmatpush2.xpose.msra.mxu0 0.0
      %2575 = vmatprep.subr.mxu0 0.0
      %2576 = vmatpush2.xpose.msra.mxu0 0.0
      %2577 = vmatprep.mubr.f32.mxu0 0.0
      %2578 = vmatmul.mubr.f32.gmra.mxu0 %v2509
      %v2579 = vpop.f32.mrf.mxu0
      %v2580 = vadd.f32 0.0, %v2579
      %v2581 = vpop.f32.mrf.mxu0
      %2582 = vdwg.mxu0
      %v2583 = vmul.f32 %v2580, 0.35355338
      %v2584 = vadd.f32 %v2583, %v1784
      %v2585 = vsel %vm824, %v2584, -inf
      %2586 = vmax.xlane.f32.xlu0 %v2585
      %v2587 = vpop.xlane.xlu0 %2586
      %v2588 = vsub.f32 %v2584, %v2587
      %v2589 = vmul.f32 %v2588, 1.442695
      %v2590 = vpow.pop %v2589
      %v2591 = vsel %vm824, %v2590, 0.0
      %2592 = vadd.xlane.f32.xlu0 %v2591
      %v2593 = vpop.xlane.xlu0 %2592
      %v2594 = vrcp.pop %v2593
      %v2595 = vmul.f32 %v2590, %v2594
      %2596 = vrot.lane.b32.xlu0 %v813, 40
      %v2597 = vpop.permute.xlu0 %2596
      %v2600 = vsel %vm824, %v2595, 0
      %2602 = vmatprep.subr.mxu0 0.0
      %2603 = vmatpush1.msra.mxu0 0.0
      %2604 = vmatprep.subr.mxu0 0.0
      %2605 = vmatpush1.msra.mxu0 0.0
      %2606 = vmatprep.subr.mxu0 0.0
      %2607 = vmatpush1.msra.mxu0 0.0
      %2608 = vmatprep.subr.mxu0 0.0
      %2609 = vmatpush1.msra.mxu0 0.0
      %2610 = vmatprep.subr.mxu0 0.0
      %2611 = vmatpush1.msra.mxu0 0.0
      %2612 = vmatprep.subr.mxu0 0.0
      %2613 = vmatpush1.msra.mxu0 0.0
      %2614 = vmatprep.subr.mxu0 0.0
      %2615 = vmatpush1.msra.mxu0 0.0
      %2616 = vmatprep.subr.mxu0 0.0
      %2617 = vmatpush1.msra.mxu0 0.0
      %2618 = vmatprep.subr.mxu0 0.0
      %2619 = vmatpush1.msra.mxu0 0.0
      %2620 = vmatprep.subr.mxu0 0.0
      %2621 = vmatpush1.msra.mxu0 0.0
      %2622 = vmatprep.subr.mxu0 0.0
      %2623 = vmatpush1.msra.mxu0 0.0
      %2624 = vmatprep.subr.mxu0 0.0
      %2625 = vmatpush1.msra.mxu0 0.0
      %2626 = vmatprep.subr.mxu0 0.0
      %2627 = vmatpush1.msra.mxu0 0.0
      %2628 = vmatprep.subr.mxu0 0.0
      %2629 = vmatpush1.msra.mxu0 0.0
      %2630 = vmatprep.subr.mxu0 0.0
      %2631 = vmatpush1.msra.mxu0 0.0
      %2632 = vmatprep.subr.mxu0 0.0
      %2633 = vmatpush1.msra.mxu0 %v2597
      %2634 = vmatprep.subr.mxu0 0.0
      %2635 = vmatpush2.msra.mxu0 0.0
      %2636 = vmatprep.subr.mxu0 0.0
      %2637 = vmatpush2.msra.mxu0 0.0
      %2638 = vmatprep.subr.mxu0 0.0
      %2639 = vmatpush2.msra.mxu0 0.0
      %2640 = vmatprep.subr.mxu0 0.0
      %2641 = vmatpush2.msra.mxu0 0.0
      %2642 = vmatprep.subr.mxu0 0.0
      %2643 = vmatpush2.msra.mxu0 0.0
      %2644 = vmatprep.subr.mxu0 0.0
      %2645 = vmatpush2.msra.mxu0 0.0
      %2646 = vmatprep.subr.mxu0 0.0
      %2647 = vmatpush2.msra.mxu0 0.0
      %2648 = vmatprep.subr.mxu0 0.0
      %2649 = vmatpush2.msra.mxu0 0.0
      %2650 = vmatprep.subr.mxu0 0.0
      %2651 = vmatpush2.msra.mxu0 0.0
      %2652 = vmatprep.subr.mxu0 0.0
      %2653 = vmatpush2.msra.mxu0 0.0
      %2654 = vmatprep.subr.mxu0 0.0
      %2655 = vmatpush2.msra.mxu0 0.0
      %2656 = vmatprep.subr.mxu0 0.0
      %2657 = vmatpush2.msra.mxu0 0.0
      %2658 = vmatprep.subr.mxu0 0.0
      %2659 = vmatpush2.msra.mxu0 0.0
      %2660 = vmatprep.subr.mxu0 0.0
      %2661 = vmatpush2.msra.mxu0 0.0
      %2662 = vmatprep.subr.mxu0 0.0
      %2663 = vmatpush2.msra.mxu0 0.0
      %2664 = vmatprep.subr.mxu0 0.0
      %2665 = vmatpush2.msra.mxu0 0.0
      %2666 = vmatprep.mubr.f32.mxu0 0.0
      %2667 = vmatmul.mubr.f32.gmra.mxu0 %v2600
      %v2668 = vpop.f32.mrf.mxu0
      %v2669 = vadd.f32 0.0, %v2668
      %v2670 = vpop.f32.mrf.mxu0
      %2671 = vdwg.mxu0
      %v2673 = vsel %vm824, %v2669, 0
      %2675 = vmatprep.subr.mxu0 0.0
      %2676 = vmatpush1.msra.mxu0 0.0
      %2677 = vmatprep.subr.mxu0 0.0
      %2678 = vmatpush1.msra.mxu0 0.0
      %2679 = vmatprep.subr.mxu0 0.0
      %2680 = vmatpush1.msra.mxu0 0.0
      %2681 = vmatprep.subr.mxu0 0.0
      %2682 = vmatpush1.msra.mxu0 0.0
      %2683 = vmatprep.subr.mxu0 0.0
      %2684 = vmatpush1.msra.mxu0 0.0
      %2685 = vmatprep.subr.mxu0 0.0
      %2686 = vmatpush1.msra.mxu0 0.0
      %2687 = vmatprep.subr.mxu0 0.0
      %2688 = vmatpush1.msra.mxu0 0.0
      %2689 = vmatprep.subr.mxu0 0.0
      %2690 = vmatpush1.msra.mxu0 0.0
      %2691 = vmatprep.subr.mxu0 0.0
      %2692 = vmatpush1.msra.mxu0 0.0
      %2693 = vmatprep.subr.mxu0 0.0
      %2694 = vmatpush1.msra.mxu0 0.0
      %2695 = vmatprep.subr.mxu0 0.0
      %2696 = vmatpush1.msra.mxu0 0.0
      %2697 = vmatprep.subr.mxu0 0.0
      %2698 = vmatpush1.msra.mxu0 0.0
      %2699 = vmatprep.subr.mxu0 0.0
      %2700 = vmatpush1.msra.mxu0 0.0
      %2701 = vmatprep.subr.mxu0 0.0
      %2702 = vmatpush1.msra.mxu0 0.0
      %2703 = vmatprep.subr.mxu0 0.0
      %2704 = vmatpush1.msra.mxu0 0.0
      %2705 = vmatprep.subr.mxu0 0.0
      %2706 = vmatpush1.msra.mxu0 %v819
      %2707 = vmatprep.subr.mxu0 0.0
      %2708 = vmatpush2.msra.mxu0 0.0
      %2709 = vmatprep.subr.mxu0 0.0
      %2710 = vmatpush2.msra.mxu0 0.0
      %2711 = vmatprep.subr.mxu0 0.0
      %2712 = vmatpush2.msra.mxu0 0.0
      %2713 = vmatprep.subr.mxu0 0.0
      %2714 = vmatpush2.msra.mxu0 0.0
      %2715 = vmatprep.subr.mxu0 0.0
      %2716 = vmatpush2.msra.mxu0 0.0
      %2717 = vmatprep.subr.mxu0 0.0
      %2718 = vmatpush2.msra.mxu0 0.0
      %2719 = vmatprep.subr.mxu0 0.0
      %2720 = vmatpush2.msra.mxu0 0.0
      %2721 = vmatprep.subr.mxu0 0.0
      %2722 = vmatpush2.msra.mxu0 0.0
      %2723 = vmatprep.subr.mxu0 0.0
      %2724 = vmatpush2.msra.mxu0 0.0
      %2725 = vmatprep.subr.mxu0 0.0
      %2726 = vmatpush2.msra.mxu0 0.0
      %2727 = vmatprep.subr.mxu0 0.0
      %2728 = vmatpush2.msra.mxu0 0.0
      %2729 = vmatprep.subr.mxu0 0.0
      %2730 = vmatpush2.msra.mxu0 0.0
      %2731 = vmatprep.subr.mxu0 0.0
      %2732 = vmatpush2.msra.mxu0 0.0
      %2733 = vmatprep.subr.mxu0 0.0
      %2734 = vmatpush2.msra.mxu0 0.0
      %2735 = vmatprep.subr.mxu0 0.0
      %2736 = vmatpush2.msra.mxu0 0.0
      %2737 = vmatprep.subr.mxu0 0.0
      %2738 = vmatpush2.msra.mxu0 0.0
      %2739 = vmatprep.mubr.f32.mxu0 0.0
      %2740 = vmatmul.mubr.f32.gmra.mxu0 %v2673
      %v2741 = vpop.f32.mrf.mxu0
      %v2742 = vadd.f32 0.0, %v2741
      %v2743 = vpop.f32.mrf.mxu0
      %2744 = vdwg.mxu0
      %v2745 = vadd.f32 %v2504, %v2742
      %v2746 = vld [vmem:[%s677] sm:$0x1]
      %v2748 = vlaneseq
      %v2749 = vshrl.u32 %v2748, 7
      %v2750 = vsub.s32 0, %v2749
      %v2751 = vrot.slane %v2746, %v2750
      %v2753 = vadd.f32 %v1782, %v2751
      %v2754 = vadd.f32 %v2745, %v2751
      %v2755 = vadd.f32 %v721, %v2753
      %v2756 = vadd.f32 %v722, %v2754
      %v2757 = vsel %vm734, %v2755, 0.0
      %2758 = vadd.xlane.f32.xlu0 %v2757
      %v2759 = vpop.xlane.xlu0 %2758
      %v2760 = vsel %vm734, %v2756, 0.0
      %2761 = vadd.xlane.f32.xlu0 %v2760
      %v2762 = vpop.xlane.xlu0 %2761
      %v2763 = vrcp.pop 32.0
      %v2764 = vmul.f32 %v2759, %v2763
      %v2765 = vmul.f32 %v2762, %v2763
      %v2766 = vsub.f32 %v2755, %v2764
      %v2767 = vsub.f32 %v2756, %v2765
      %v2768 = vmul.f32 %v2766, %v2766
      %v2769 = vmul.f32 %v2767, %v2767
      %v2770 = vsel %vm734, %v2768, 0.0
      %2771 = vadd.xlane.f32.xlu0 %v2770
      %v2772 = vpop.xlane.xlu0 %2771
      %v2773 = vsel %vm734, %v2769, 0.0
      %2774 = vadd.xlane.f32.xlu0 %v2773
      %v2775 = vpop.xlane.xlu0 %2774
      %v2776 = vmul.f32 %v2772, %v2763
      %v2777 = vmul.f32 %v2775, %v2763
      %v2778 = vadd.f32 %v2776, 1e-05
      %v2779 = vadd.f32 %v2777, 1e-05
      %v2780 = vrsqrt.pop %v2778
      %v2781 = vrsqrt.pop %v2779
      %v2782 = vmul.f32 %v2766, %v2780
      %v2783 = vmul.f32 %v2767, %v2781
      %v2784 = vld [vmem:[%s680] sm:$0x1]
      %v2786 = vlaneseq
      %v2787 = vshrl.u32 %v2786, 7
      %v2788 = vsub.s32 0, %v2787
      %v2789 = vrot.slane %v2784, %v2788
      %v2791 = vmul.f32 %v2782, %v2789
      %v2792 = vmul.f32 %v2783, %v2789
      %v2793 = vld [vmem:[%s683] sm:$0x1]
      %v2795 = vlaneseq
      %v2796 = vshrl.u32 %v2795, 7
      %v2797 = vsub.s32 0, %v2796
      %v2798 = vrot.slane %v2793, %v2797
      %v2800 = vadd.f32 %v2791, %v2798
      %v2801 = vadd.f32 %v2792, %v2798
      %v2802 = vld [vmem:[%s688] sm:$0xff]
      %v2803 = vld [vmem:[%s688 + $0x8] sm:$0xff]
      %v2804 = vld [vmem:[%s688 + $0x10] sm:$0xff]
      %v2805 = vld [vmem:[%s688 + $0x18] sm:$0xff]
      %v2806 = vld [vmem:[%s691] sm:$0x1]
      %v2808 = vlaneseq
      %v2809 = vshrl.u32 %v2808, 7
      %v2810 = vsub.s32 0, %v2809
      %v2811 = vrot.slane %v2806, %v2810
      %v2814 = vsel %vm734, %v2800, 0
      %v2817 = vsel %vm734, %v2801, 0
      %2819 = vmatprep.subr.mxu0 0.0
      %2820 = vmatpush1.msra.mxu0 0.0
      %2821 = vmatprep.subr.mxu0 0.0
      %2822 = vmatpush1.msra.mxu0 0.0
      %2823 = vmatprep.subr.mxu0 0.0
      %2824 = vmatpush1.msra.mxu0 0.0
      %2825 = vmatprep.subr.mxu0 0.0
      %2826 = vmatpush1.msra.mxu0 0.0
      %2827 = vmatprep.subr.mxu0 0.0
      %2828 = vmatpush1.msra.mxu0 0.0
      %2829 = vmatprep.subr.mxu0 0.0
      %2830 = vmatpush1.msra.mxu0 0.0
      %2831 = vmatprep.subr.mxu0 0.0
      %2832 = vmatpush1.msra.mxu0 0.0
      %2833 = vmatprep.subr.mxu0 0.0
      %2834 = vmatpush1.msra.mxu0 0.0
      %2835 = vmatprep.subr.mxu0 0.0
      %2836 = vmatpush1.msra.mxu0 0.0
      %2837 = vmatprep.subr.mxu0 0.0
      %2838 = vmatpush1.msra.mxu0 0.0
      %2839 = vmatprep.subr.mxu0 0.0
      %2840 = vmatpush1.msra.mxu0 0.0
      %2841 = vmatprep.subr.mxu0 0.0
      %2842 = vmatpush1.msra.mxu0 0.0
      %2843 = vmatprep.subr.mxu0 0.0
      %2844 = vmatpush1.msra.mxu0 %v2805
      %2845 = vmatprep.subr.mxu0 0.0
      %2846 = vmatpush1.msra.mxu0 %v2804
      %2847 = vmatprep.subr.mxu0 0.0
      %2848 = vmatpush1.msra.mxu0 %v2803
      %2849 = vmatprep.subr.mxu0 0.0
      %2850 = vmatpush1.msra.mxu0 %v2802
      %2851 = vmatprep.subr.mxu0 0.0
      %2852 = vmatpush2.msra.mxu0 0.0
      %2853 = vmatprep.subr.mxu0 0.0
      %2854 = vmatpush2.msra.mxu0 0.0
      %2855 = vmatprep.subr.mxu0 0.0
      %2856 = vmatpush2.msra.mxu0 0.0
      %2857 = vmatprep.subr.mxu0 0.0
      %2858 = vmatpush2.msra.mxu0 0.0
      %2859 = vmatprep.subr.mxu0 0.0
      %2860 = vmatpush2.msra.mxu0 0.0
      %2861 = vmatprep.subr.mxu0 0.0
      %2862 = vmatpush2.msra.mxu0 0.0
      %2863 = vmatprep.subr.mxu0 0.0
      %2864 = vmatpush2.msra.mxu0 0.0
      %2865 = vmatprep.subr.mxu0 0.0
      %2866 = vmatpush2.msra.mxu0 0.0
      %2867 = vmatprep.subr.mxu0 0.0
      %2868 = vmatpush2.msra.mxu0 0.0
      %2869 = vmatprep.subr.mxu0 0.0
      %2870 = vmatpush2.msra.mxu0 0.0
      %2871 = vmatprep.subr.mxu0 0.0
      %2872 = vmatpush2.msra.mxu0 0.0
      %2873 = vmatprep.subr.mxu0 0.0
      %2874 = vmatpush2.msra.mxu0 0.0
      %2875 = vmatprep.subr.mxu0 0.0
      %2876 = vmatpush2.msra.mxu0 0.0
      %2877 = vmatprep.subr.mxu0 0.0
      %2878 = vmatpush2.msra.mxu0 0.0
      %2879 = vmatprep.subr.mxu0 0.0
      %2880 = vmatpush2.msra.mxu0 0.0
      %2881 = vmatprep.subr.mxu0 0.0
      %2882 = vmatpush2.msra.mxu0 0.0
      %2883 = vmatprep.mubr.f32.mxu0 0.0
      %2884 = vmatmul.mubr.f32.gmra.mxu0 %v2814
      %v2885 = vpop.f32.mrf.mxu0
      %v2886 = vadd.f32 %v2811, %v2885
      %v2887 = vpop.f32.mrf.mxu0
      %2888 = vmatprep.mubr.f32.mxu0 0.0
      %2889 = vmatmul.mubr.f32.gmra.mxu0 %v2817
      %v2890 = vpop.f32.mrf.mxu0
      %v2891 = vadd.f32 %v2811, %v2890
      %v2892 = vpop.f32.mrf.mxu0
      %2893 = vdwg.mxu0
      %v2894 = vmax.f32 %v2886, 0.0
      %v2895 = vmax.f32 %v2891, 0.0
      %v2896 = vld [vmem:[%s696] sm:$0xff]
      %v2897 = vld [vmem:[%s696 + $0x8] sm:$0xff]
      %v2898 = vld [vmem:[%s696 + $0x10] sm:$0xff]
      %v2899 = vld [vmem:[%s696 + $0x18] sm:$0xff]
      %v2900 = vld [vmem:[%s696 + $0x20] sm:$0xff]
      %v2901 = vld [vmem:[%s696 + $0x28] sm:$0xff]
      %v2902 = vld [vmem:[%s696 + $0x30] sm:$0xff]
      %v2903 = vld [vmem:[%s696 + $0x38] sm:$0xff]
      %v2904 = vld [vmem:[%s699] sm:$0x1]
      %v2906 = vlaneseq
      %v2907 = vshrl.u32 %v2906, 7
      %v2908 = vsub.s32 0, %v2907
      %v2909 = vrot.slane %v2904, %v2908
      %vm2911 = vcmask 523264
      %v2913 = vsel %vm2911, %v2894, 0
      %v2916 = vsel %vm2911, %v2895, 0
      %2918 = vmatprep.subr.mxu0 0.0
      %2919 = vmatpush1.msra.mxu0 0.0
      %2920 = vmatprep.subr.mxu0 0.0
      %2921 = vmatpush1.msra.mxu0 0.0
      %2922 = vmatprep.subr.mxu0 0.0
      %2923 = vmatpush1.msra.mxu0 0.0
      %2924 = vmatprep.subr.mxu0 0.0
      %2925 = vmatpush1.msra.mxu0 0.0
      %2926 = vmatprep.subr.mxu0 0.0
      %2927 = vmatpush1.msra.mxu0 0.0
      %2928 = vmatprep.subr.mxu0 0.0
      %2929 = vmatpush1.msra.mxu0 0.0
      %2930 = vmatprep.subr.mxu0 0.0
      %2931 = vmatpush1.msra.mxu0 0.0
      %2932 = vmatprep.subr.mxu0 0.0
      %2933 = vmatpush1.msra.mxu0 0.0
      %2934 = vmatprep.subr.mxu0 0.0
      %2935 = vmatpush1.msra.mxu0 %v2903
      %2936 = vmatprep.subr.mxu0 0.0
      %2937 = vmatpush1.msra.mxu0 %v2902
      %2938 = vmatprep.subr.mxu0 0.0
      %2939 = vmatpush1.msra.mxu0 %v2901
      %2940 = vmatprep.subr.mxu0 0.0
      %2941 = vmatpush1.msra.mxu0 %v2900
      %2942 = vmatprep.subr.mxu0 0.0
      %2943 = vmatpush1.msra.mxu0 %v2899
      %2944 = vmatprep.subr.mxu0 0.0
      %2945 = vmatpush1.msra.mxu0 %v2898
      %2946 = vmatprep.subr.mxu0 0.0
      %2947 = vmatpush1.msra.mxu0 %v2897
      %2948 = vmatprep.subr.mxu0 0.0
      %2949 = vmatpush1.msra.mxu0 %v2896
      %2950 = vmatprep.subr.mxu0 0.0
      %2951 = vmatpush2.msra.mxu0 0.0
      %2952 = vmatprep.subr.mxu0 0.0
      %2953 = vmatpush2.msra.mxu0 0.0
      %2954 = vmatprep.subr.mxu0 0.0
      %2955 = vmatpush2.msra.mxu0 0.0
      %2956 = vmatprep.subr.mxu0 0.0
      %2957 = vmatpush2.msra.mxu0 0.0
      %2958 = vmatprep.subr.mxu0 0.0
      %2959 = vmatpush2.msra.mxu0 0.0
      %2960 = vmatprep.subr.mxu0 0.0
      %2961 = vmatpush2.msra.mxu0 0.0
      %2962 = vmatprep.subr.mxu0 0.0
      %2963 = vmatpush2.msra.mxu0 0.0
      %2964 = vmatprep.subr.mxu0 0.0
      %2965 = vmatpush2.msra.mxu0 0.0
      %2966 = vmatprep.subr.mxu0 0.0
      %2967 = vmatpush2.msra.mxu0 0.0
      %2968 = vmatprep.subr.mxu0 0.0
      %2969 = vmatpush2.msra.mxu0 0.0
      %2970 = vmatprep.subr.mxu0 0.0
      %2971 = vmatpush2.msra.mxu0 0.0
      %2972 = vmatprep.subr.mxu0 0.0
      %2973 = vmatpush2.msra.mxu0 0.0
      %2974 = vmatprep.subr.mxu0 0.0
      %2975 = vmatpush2.msra.mxu0 0.0
      %2976 = vmatprep.subr.mxu0 0.0
      %2977 = vmatpush2.msra.mxu0 0.0
      %2978 = vmatprep.subr.mxu0 0.0
      %2979 = vmatpush2.msra.mxu0 0.0
      %2980 = vmatprep.subr.mxu0 0.0
      %2981 = vmatpush2.msra.mxu0 0.0
      %2982 = vmatprep.mubr.f32.mxu0 0.0
      %2983 = vmatmul.mubr.f32.gmra.mxu0 %v2913
      %v2984 = vpop.f32.mrf.mxu0
      %v2985 = vadd.f32 %v2909, %v2984
      %v2986 = vpop.f32.mrf.mxu0
      %2987 = vmatprep.mubr.f32.mxu0 0.0
      %2988 = vmatmul.mubr.f32.gmra.mxu0 %v2916
      %v2989 = vpop.f32.mrf.mxu0
      %v2990 = vadd.f32 %v2909, %v2989
      %v2991 = vpop.f32.mrf.mxu0
      %2992 = vdwg.mxu0
      %v2993 = vadd.f32 %v2800, %v2985
      %v2994 = vadd.f32 %v2801, %v2990
      %v2995 = vsel %vm734, %v2993, 0.0
      %2996 = vadd.xlane.f32.xlu0 %v2995
      %v2997 = vpop.xlane.xlu0 %2996
      %v2998 = vsel %vm734, %v2994, 0.0
      %2999 = vadd.xlane.f32.xlu0 %v2998
      %v3000 = vpop.xlane.xlu0 %2999
      %v3001 = vmul.f32 %v2997, %v2763
      %v3002 = vmul.f32 %v3000, %v2763
      %v3003 = vsub.f32 %v2993, %v3001
      %v3004 = vsub.f32 %v2994, %v3002
      %v3005 = vmul.f32 %v3003, %v3003
      %v3006 = vmul.f32 %v3004, %v3004
      %v3007 = vsel %vm734, %v3005, 0.0
      %3008 = vadd.xlane.f32.xlu0 %v3007
      %v3009 = vpop.xlane.xlu0 %3008
      %v3010 = vsel %vm734, %v3006, 0.0
      %3011 = vadd.xlane.f32.xlu0 %v3010
      %v3012 = vpop.xlane.xlu0 %3011
      %v3013 = vmul.f32 %v3009, %v2763
      %v3014 = vmul.f32 %v3012, %v2763
      %v3015 = vadd.f32 %v3013, 1e-05
      %v3016 = vadd.f32 %v3014, 1e-05
      %v3017 = vrsqrt.pop %v3015
      %v3018 = vrsqrt.pop %v3016
      %v3019 = vmul.f32 %v3003, %v3017
      %v3020 = vmul.f32 %v3004, %v3018
      %v3021 = vld [vmem:[%s702] sm:$0x1]
      %v3023 = vlaneseq
      %v3024 = vshrl.u32 %v3023, 7
      %v3025 = vsub.s32 0, %v3024
      %v3026 = vrot.slane %v3021, %v3025
      %v3028 = vmul.f32 %v3019, %v3026
      %v3029 = vmul.f32 %v3020, %v3026
      %v3030 = vld [vmem:[%s705] sm:$0x1]
      %v3032 = vlaneseq
      %v3033 = vshrl.u32 %v3032, 7
      %v3034 = vsub.s32 0, %v3033
      %v3035 = vrot.slane %v3030, %v3034
      %v3037 = vadd.f32 %v3028, %v3035
      %v3038 = vadd.f32 %v3029, %v3035
      %3039 = vst.msk [vmem:[#allocation2] sm:$0xff] %vm734, %v3037
      %3040 = vst.msk [vmem:[#allocation2 + $0x8] sm:$0xff] %vm734, %v3038
      %p3041 = scmp.eq.s32.totalorder %s28, 1
      // Predicated region
      $region93: #{pretrain_model_forward.1} parent=87 // pred_check
        %p3042 = pneg %p3041
      $region94: #{pretrain_model_forward.1} parent=87 // pred_check_branch
        %3044 = sbr.rel (%p3042) target = $region96
      $region95: #{pretrain_model_forward.1} parent=87 // pred_region
        %v3045 = vld [vmem:[#allocation2] sm:$0xff]
        %v3046 = vld [vmem:[#allocation2 + $0x8] sm:$0xff]
        %v3047 = vld [vmem:[%s15] sm:$0xff]
        %v3048 = vld [vmem:[%s15 + $0x8] sm:$0xff]
        %v3049 = vld [vmem:[%s15 + $0x10] sm:$0xff]
        %v3050 = vld [vmem:[%s15 + $0x18] sm:$0xff]
        %v3051 = vld [vmem:[%s16] sm:$0x1]
        %v3053 = vlaneseq
        %v3054 = vshrl.u32 %v3053, 7
        %v3055 = vsub.s32 0, %v3054
        %v3056 = vrot.slane %v3051, %v3055
        %v3059 = vsel %vm734, %v3045, 0
        %v3062 = vsel %vm734, %v3046, 0
        %3064 = vmatprep.subr.mxu0 0.0
        %3065 = vmatpush1.msra.mxu0 0.0
        %3066 = vmatprep.subr.mxu0 0.0
        %3067 = vmatpush1.msra.mxu0 0.0
        %3068 = vmatprep.subr.mxu0 0.0
        %3069 = vmatpush1.msra.mxu0 0.0
        %3070 = vmatprep.subr.mxu0 0.0
        %3071 = vmatpush1.msra.mxu0 0.0
        %3072 = vmatprep.subr.mxu0 0.0
        %3073 = vmatpush1.msra.mxu0 0.0
        %3074 = vmatprep.subr.mxu0 0.0
        %3075 = vmatpush1.msra.mxu0 0.0
        %3076 = vmatprep.subr.mxu0 0.0
        %3077 = vmatpush1.msra.mxu0 0.0
        %3078 = vmatprep.subr.mxu0 0.0
        %3079 = vmatpush1.msra.mxu0 0.0
        %3080 = vmatprep.subr.mxu0 0.0
        %3081 = vmatpush1.msra.mxu0 0.0
        %3082 = vmatprep.subr.mxu0 0.0
        %3083 = vmatpush1.msra.mxu0 0.0
        %3084 = vmatprep.subr.mxu0 0.0
        %3085 = vmatpush1.msra.mxu0 0.0
        %3086 = vmatprep.subr.mxu0 0.0
        %3087 = vmatpush1.msra.mxu0 0.0
        %3088 = vmatprep.subr.mxu0 0.0
        %3089 = vmatpush1.msra.mxu0 %v3050
        %3090 = vmatprep.subr.mxu0 0.0
        %3091 = vmatpush1.msra.mxu0 %v3049
        %3092 = vmatprep.subr.mxu0 0.0
        %3093 = vmatpush1.msra.mxu0 %v3048
        %3094 = vmatprep.subr.mxu0 0.0
        %3095 = vmatpush1.msra.mxu0 %v3047
        %3096 = vmatprep.subr.mxu0 0.0
        %3097 = vmatpush2.msra.mxu0 0.0
        %3098 = vmatprep.subr.mxu0 0.0
        %3099 = vmatpush2.msra.mxu0 0.0
        %3100 = vmatprep.subr.mxu0 0.0
        %3101 = vmatpush2.msra.mxu0 0.0
        %3102 = vmatprep.subr.mxu0 0.0
        %3103 = vmatpush2.msra.mxu0 0.0
        %3104 = vmatprep.subr.mxu0 0.0
        %3105 = vmatpush2.msra.mxu0 0.0
        %3106 = vmatprep.subr.mxu0 0.0
        %3107 = vmatpush2.msra.mxu0 0.0
        %3108 = vmatprep.subr.mxu0 0.0
        %3109 = vmatpush2.msra.mxu0 0.0
        %3110 = vmatprep.subr.mxu0 0.0
        %3111 = vmatpush2.msra.mxu0 0.0
        %3112 = vmatprep.subr.mxu0 0.0
        %3113 = vmatpush2.msra.mxu0 0.0
        %3114 = vmatprep.subr.mxu0 0.0
        %3115 = vmatpush2.msra.mxu0 0.0
        %3116 = vmatprep.subr.mxu0 0.0
        %3117 = vmatpush2.msra.mxu0 0.0
        %3118 = vmatprep.subr.mxu0 0.0
        %3119 = vmatpush2.msra.mxu0 0.0
        %3120 = vmatprep.subr.mxu0 0.0
        %3121 = vmatpush2.msra.mxu0 0.0
        %3122 = vmatprep.subr.mxu0 0.0
        %3123 = vmatpush2.msra.mxu0 0.0
        %3124 = vmatprep.subr.mxu0 0.0
        %3125 = vmatpush2.msra.mxu0 0.0
        %3126 = vmatprep.subr.mxu0 0.0
        %3127 = vmatpush2.msra.mxu0 0.0
        %3128 = vmatprep.mubr.f32.mxu0 0.0
        %3129 = vmatmul.mubr.f32.gmra.mxu0 %v3059
        %v3130 = vpop.f32.mrf.mxu0
        %v3131 = vadd.f32 %v3056, %v3130
        %v3132 = vpop.f32.mrf.mxu0
        %3133 = vmatprep.mubr.f32.mxu0 0.0
        %3134 = vmatmul.mubr.f32.gmra.mxu0 %v3062
        %v3135 = vpop.f32.mrf.mxu0
        %v3136 = vadd.f32 %v3056, %v3135
        %v3137 = vpop.f32.mrf.mxu0
        %3138 = vdwg.mxu0
        %3139 = vst [vmem:[%s17] sm:$0xff] %v3131
        %3140 = vst [vmem:[%s17 + $0x8] sm:$0xff] %v3136
      $region96: #{pretrain_model_forward.1} parent=87 // pred_fallthru
        _
      // Predicated region
      $region97: #{pretrain_model_forward.1} parent=87 // pred_check
        %p3141 = pneg %p458
      $region98: #{pretrain_model_forward.1} parent=87 // pred_check_branch
        %3143 = sbr.rel (%p3141) target = $region100
      $region99: #{pretrain_model_forward.1} parent=87 // pred_region
        _
      $region100: #{pretrain_model_forward.1} parent=87 // pred_fallthru
        _
      // Predicated region
      $region101: #{pretrain_model_forward.1} parent=87 // pred_check
        %p3144 = pneg %p458
      $region102: #{pretrain_model_forward.1} parent=87 // pred_check_branch
        %3146 = sbr.rel (%p3144) target = $region104
      $region103: #{pretrain_model_forward.1} parent=87 // pred_region
        _
      $region104: #{pretrain_model_forward.1} parent=87 // pred_fallthru
        _
    $region88: #{pretrain_model_forward.1} parent=5 // pred_fallthru
      _
    %p3147 = scmp.le.s32.totalorder 2, %s23
    // Predicated region
    $region105: #{pretrain_model_forward.1} parent=5 // pred_check
      %p3148 = pneg %p3147
    $region106: #{pretrain_model_forward.1} parent=5 // pred_check_branch
      %3150 = sbr.rel (%p3148) target = $region108
    $region107: #{pretrain_model_forward.1} parent=5 // pred_region
      %s3151 = ssub.s32 %s23, 2
    $region108: #{pretrain_model_forward.1} parent=5 // pred_fallthru
      _
  $region6: #{pretrain_model_forward.1} parent=0 // loop_footer
    %s27 = sadd.s32 1, %s23
  $region7: #{pretrain_model_forward.1} parent=0 // loop_footer_branch
    %22 = sbr.rel target = $region3
  $region8: #{pretrain_model_forward.1} parent=0 // loop_exit
    _

</llo_original>
